<compile_context>
chip_gen: v6e
topology: v6e:2x2x1
jax: 0.10.0
libtpu: 0.0.40
codegen_flags: <defaults>
</compile_context>

<pallas_src>
import jax
import jax.numpy as jnp
import numpy as np
from jax.experimental import pallas as pl
from jax.experimental.pallas import tpu as pltpu


def _round_up(x, m):
    return (x + m - 1) // m * m


# ----------------------------------------------------------------------------
# Kernel 1: one bidirectional LSTM layer, single invocation, fori_loop over S.
# ----------------------------------------------------------------------------
def bidir_lstm_layer_kernel(x_ref, wih_ref, whh_f_ref, whh_b_ref, bias_ref,
                            out_ref, hn_ref, gx_sc):
    S, BP, DinP = x_ref.shape
    HP = whh_f_ref.shape[0]
    G = 4 * HP

    # Hoisted input projection: one big MXU matmul for all timesteps and both
    # directions: (S*B, Din) @ (Din, 8H)  (+ fused b_ih + b_hh bias).
    x2 = x_ref[...].reshape(S * BP, DinP)
    gx = jnp.dot(x2, wih_ref[...], preferred_element_type=jnp.float32)
    gx_sc[...] = (gx + bias_ref[...]).reshape(S, BP, 2 * G)

    def cell(gates, c):
        # HP is a multiple of 128, so every gate slice is lane-aligned.
        i = jax.nn.sigmoid(gates[:, 0 * HP:1 * HP])
        f = jax.nn.sigmoid(gates[:, 1 * HP:2 * HP])
        g = jnp.tanh(gates[:, 2 * HP:3 * HP])
        o = jax.nn.sigmoid(gates[:, 3 * HP:4 * HP])
        c_new = f * c + i * g
        h_new = o * jnp.tanh(c_new)
        return h_new, c_new

    def step(t, carry):
        h_f, c_f, h_b, c_b = carry
        tb = S - 1 - t
        # Only the unavoidable h @ W_hh remains on the serial critical path;
        # the two independent direction streams are interleaved so one
        # stream's EUP sigmoid/tanh hides the other's MXU latency.
        g_f = gx_sc[t, :, 0:G] + jnp.dot(
            h_f, whh_f_ref[...], preferred_element_type=jnp.float32)
        g_b = gx_sc[tb, :, G:2 * G] + jnp.dot(
            h_b, whh_b_ref[...], preferred_element_type=jnp.float32)
        h_f, c_f = cell(g_f, c_f)
        h_b, c_b = cell(g_b, c_b)
        out_ref[t, :, 0:HP] = h_f          # fwd half, lane-aligned column block
        out_ref[tb, :, HP:2 * HP] = h_b    # bwd half written in reversed order
        return h_f, c_f, h_b, c_b

    zero = jnp.zeros((BP, HP), jnp.float32)
    h_f, c_f, h_b, c_b = jax.lax.fori_loop(
        0, S, step, (zero, zero, zero, zero), unroll=(S <= 32))

    # Final hidden, written once.  PyTorch attention query order is
    # cat((hn[-1], hn[-2])) = [backward-final | forward-final].
    hn_ref[:, 0:HP] = h_b
    hn_ref[:, HP:2 * HP] = h_f


def run_bidir_lstm_layer(x, wih_cat, whh_f, whh_b, bias_cat):
    """x: (S, BP, DinP) f32 -> (out (S, BP, 2HP), hn (BP, 2HP) [bwd|fwd])."""
    S, BP, DinP = x.shape
    HP = whh_f.shape[0]
    return pl.pallas_call(
        bidir_lstm_layer_kernel,
        out_shape=(jax.ShapeDtypeStruct((S, BP, 2 * HP), jnp.float32),
                   jax.ShapeDtypeStruct((BP, 2 * HP), jnp.float32)),
        grid_spec=pltpu.PrefetchScalarGridSpec(
            num_scalar_prefetch=0,
            grid=(1,),
            in_specs=[
                pl.BlockSpec((S, BP, DinP), lambda i: (0, 0, 0)),
                pl.BlockSpec((DinP, 8 * HP), lambda i: (0, 0)),
                pl.BlockSpec((HP, 4 * HP), lambda i: (0, 0)),
                pl.BlockSpec((HP, 4 * HP), lambda i: (0, 0)),
                pl.BlockSpec((1, 8 * HP), lambda i: (0, 0)),
            ],
            out_specs=[
                pl.BlockSpec((S, BP, 2 * HP), lambda i: (0, 0, 0)),
                pl.BlockSpec((BP, 2 * HP), lambda i: (0, 0)),
            ],
            scratch_shapes=[pltpu.VMEM((S, BP, 8 * HP), jnp.float32)],
        ),
        compiler_params=pltpu.CompilerParams(
            dimension_semantics=("arbitrary",)),
    )(x, wih_cat, whh_f, whh_b, bias_cat)


# ----------------------------------------------------------------------------
# Kernel 2: attention over time (time-major input, no wrapper transpose) +
# fused output linear.  Logits tile is lane-dense (BP, CP=128k).
# ----------------------------------------------------------------------------
def attn_head_kernel(lo_ref, hn_ref, w_ref, b_ref, out_ref):
    lo = lo_ref[...]                                  # (S, BP, 2HP) time-major
    hn = hn_ref[...]                                  # (BP, 2HP)

    # scores[s, b] = <lstm_out[s, b, :], hn[b, :]>
    aw = jnp.sum(lo * hn[None, :, :], axis=2)         # (S, BP)

    # Softmax over time (axis 0).  EUP reciprocal + one Newton step keeps f32
    # accuracy while avoiding the divide path.
    m = jnp.max(aw, axis=0, keepdims=True)
    e = jnp.exp(aw - m)
    denom = jnp.sum(e, axis=0, keepdims=True)
    inv = pl.reciprocal(denom, approx=True)
    inv = inv * (2.0 - denom * inv)
    p = e * inv                                       # (S, BP)

    # context[b, d] = sum_s lstm_out[s, b, d] * p[s, b]
    ctx = jnp.sum(lo * p[:, :, None], axis=0)         # (BP, 2HP)

    out_ref[...] = (jnp.dot(ctx, w_ref[...],
                            preferred_element_type=jnp.float32)
                    + b_ref[...]).astype(out_ref.dtype)


def run_attention_head(lstm_out_tm, hn_cat, w_t_p, b_p):
    S, BP, D2 = lstm_out_tm.shape
    CP = w_t_p.shape[1]
    return pl.pallas_call(
        attn_head_kernel,
        out_shape=jax.ShapeDtypeStruct((BP, CP), jnp.float32),
        grid_spec=pl.GridSpec(
            grid=(1,),
            in_specs=[
                pl.BlockSpec((S, BP, D2), lambda i: (0, 0, 0)),
                pl.BlockSpec((BP, D2), lambda i: (0, 0)),
                pl.BlockSpec((D2, CP), lambda i: (0, 0)),
                pl.BlockSpec((1, CP), lambda i: (0, 0)),
            ],
            out_specs=pl.BlockSpec((BP, CP), lambda i: (0, 0)),
        ),
        compiler_params=pltpu.CompilerParams(
            dimension_semantics=("arbitrary",)),
    )(lstm_out_tm, hn_cat, w_t_p, b_p)


# ----------------------------------------------------------------------------
# Weight padding to lane/sublane-aligned, gate-block-aligned layout.
# ----------------------------------------------------------------------------
def _pad_gate_matrix(w, H, HP, in_blocks):
    """(4H, Din) gate-stacked weight -> transposed (DinP, 4HP), each i/f/g/o
    block starting on a 128-lane boundary; input columns placed per block."""
    DinP = sum(dp for _, dp in in_blocks)
    out = jnp.zeros((4 * HP, DinP), jnp.float32)
    col, colp = 0, 0
    for d, dp in in_blocks:
        for k in range(4):
            out = out.at[k * HP:k * HP + H, colp:colp + d].set(
                w[k * H:(k + 1) * H, col:col + d])
        col += d
        colp += dp
    return out.T


def _pad_gate_bias(b, H, HP):
    out = jnp.zeros((4 * HP,), jnp.float32)
    for k in range(4):
        out = out.at[k * HP:k * HP + H].set(b[k * H:(k + 1) * H])
    return out


def _pad_bidir_layer(layer, H, HP, in_blocks):
    w_ih_f, w_hh_f, b_ih_f, b_hh_f = layer["fwd"]
    w_ih_b, w_hh_b, b_ih_b, b_hh_b = layer["bwd"]
    wih_cat = jnp.concatenate(
        [_pad_gate_matrix(w_ih_f, H, HP, in_blocks),
         _pad_gate_matrix(w_ih_b, H, HP, in_blocks)], axis=1)   # (DinP, 8HP)
    whh_f = _pad_gate_matrix(w_hh_f, H, HP, [(H, HP)])          # (HP, 4HP)
    whh_b = _pad_gate_matrix(w_hh_b, H, HP, [(H, HP)])
    bias_cat = jnp.concatenate(
        [_pad_gate_bias(b_ih_f + b_hh_f, H, HP),
         _pad_gate_bias(b_ih_b + b_hh_b, H, HP)]).reshape(1, 8 * HP)
    return wih_cat, whh_f, whh_b, bias_cat


# ----------------------------------------------------------------------------
# Full forward.
# ----------------------------------------------------------------------------
def seq_classifier_forward(tokens, params, hidden):
    B, S = tokens.shape
    H = hidden
    E = params["embed"].shape[1]
    C = params["w_out"].shape[0]
    BP = _round_up(B, 8)      # sublane alignment for f32
    HP = _round_up(H, 128)    # lane alignment for gate blocks / stores
    EP = _round_up(E, 128)
    CP = _round_up(C, 128)    # lane-dense logits tile

    # Embedding gather (glue, not the hot path), padded to tile boundaries.
    emb_p = jnp.pad(params["embed"].astype(jnp.float32), ((0, 0), (0, EP - E)))
    tok_p = jnp.pad(tokens, ((0, BP - B), (0, 0)))   # padded batch uses token 0
    x = jnp.take(emb_p, tok_p.T, axis=0)             # (S, BP, EP) time-major

    hn_cat = None
    for li, layer in enumerate(params["lstm"]):
        in_blocks = [(E, EP)] if li == 0 else [(H, HP), (H, HP)]
        wih_cat, whh_f, whh_b, bias_cat = _pad_bidir_layer(
            layer, H, HP, in_blocks)
        x, hn_cat = run_bidir_lstm_layer(x, wih_cat, whh_f, whh_b, bias_cat)
        # x: (S, BP, 2HP) [fwd|bwd] halves; hn_cat: (BP, 2HP) [bwd|fwd]

    # Output projection weights, placed to match the padded [fwd|bwd] context.
    w_out = params["w_out"].astype(jnp.float32)
    w_t_p = jnp.zeros((2 * HP, CP), jnp.float32)
    w_t_p = w_t_p.at[0:H, 0:C].set(w_out[:, 0:H].T)
    w_t_p = w_t_p.at[HP:HP + H, 0:C].set(w_out[:, H:2 * H].T)
    b_p = jnp.zeros((1, CP), jnp.float32).at[0, 0:C].set(
        params["b_out"].astype(jnp.float32))

    logits_p = run_attention_head(x, hn_cat, w_t_p, b_p)    # (BP, CP)
    return logits_p[:B, :C]


# ----------------------------------------------------------------------------
# Pure-JAX reference (for correctness check).
# ----------------------------------------------------------------------------
def lstm_layer_ref(x, w_ih, w_hh, b_ih, b_hh):
    S, B, Din = x.shape
    H = w_hh.shape[1]

    def step(carry, xt):
        h, c = carry
        gates = xt @ w_ih.T + h @ w_hh.T + b_ih + b_hh
        i = jax.nn.sigmoid(gates[:, :H])
        f = jax.nn.sigmoid(gates[:, H:2 * H])
        g = jnp.tanh(gates[:, 2 * H:3 * H])
        o = jax.nn.sigmoid(gates[:, 3 * H:])
        c = f * c + i * g
        h = o * jnp.tanh(c)
        return (h, c), h

    (h, _), out = jax.lax.scan(step, (jnp.zeros((B, H), jnp.float32),
                                      jnp.zeros((B, H), jnp.float32)), x)
    return out, h


def seq_classifier_ref(tokens, params):
    x = jnp.take(params["embed"], tokens.T, axis=0).astype(jnp.float32)
    h_finals = []
    for layer in params["lstm"]:
        out_f, hf_f = lstm_layer_ref(x, *layer["fwd"])
        out_b_rev, hf_b = lstm_layer_ref(x[::-1], *layer["bwd"])
        x = jnp.concatenate([out_f, out_b_rev[::-1]], axis=-1)
        h_finals.extend([hf_f, hf_b])
    hn_cat = jnp.concatenate([h_finals[-1], h_finals[-2]], axis=1)
    lo = jnp.transpose(x, (1, 0, 2))                          # (B, S, 2H)
    aw = jnp.einsum("bsd,bd->bs", lo, hn_cat)
    p = jax.nn.softmax(aw, axis=1)
    ctx = jnp.einsum("bsd,bs->bd", lo, p)
    return ctx @ params["w_out"].T + params["b_out"]


# ----------------------------------------------------------------------------
# Deterministic parameter construction.
# ----------------------------------------------------------------------------
def make_params(key, vocab, embed_dim, hidden, num_layers, num_class):
    keys = iter(jax.random.split(key, 64))
    k = 1.0 / np.sqrt(hidden)
    params = {"embed": jax.random.normal(next(keys), (vocab, embed_dim),
                                         jnp.float32) * 0.1}
    layers = []
    for l in range(num_layers):
        din = embed_dim if l == 0 else 2 * hidden
        layer = {}
        for d in ("fwd", "bwd"):
            w_ih = jax.random.uniform(next(keys), (4 * hidden, din),
                                      jnp.float32, -k, k)
            w_hh = jax.random.uniform(next(keys), (4 * hidden, hidden),
                                      jnp.float32, -k, k)
            b_ih = jax.random.uniform(next(keys), (4 * hidden,),
                                      jnp.float32, -k, k)
            b_hh = jax.random.uniform(next(keys), (4 * hidden,),
                                      jnp.float32, -k, k)
            layer[d] = (w_ih, w_hh, b_ih, b_hh)
        layers.append(layer)
    params["lstm"] = layers
    params["w_out"] = jax.random.uniform(next(keys), (num_class, 2 * hidden),
                                         jnp.float32, -k, k)
    params["b_out"] = jax.random.uniform(next(keys), (num_class,),
                                         jnp.float32, -k, k)
    return params


if __name__ == "__main__":
    B, S = 2, 8
    VOCAB, E, H = 32, 16, 16
    NUM_LAYERS, NUM_CLASS = 2, 8

    key = jax.random.PRNGKey(0)
    k_tok, k_par = jax.random.split(key)
    tokens = jax.random.randint(k_tok, (B, S), 0, VOCAB, dtype=jnp.int32)
    params = make_params(k_par, VOCAB, E, H, NUM_LAYERS, NUM_CLASS)

    out = jax.block_until_ready(seq_classifier_forward(tokens, params, H))
    ref = jax.block_until_ready(seq_classifier_ref(tokens, params))
    np.testing.assert_allclose(np.asarray(out), np.asarray(ref),
                               rtol=1e-4, atol=1e-4)
    assert out.shape == (B, NUM_CLASS)
    print("KERNEL_OK")
</pallas_src>

<mosaic_0001>
module attributes {stable_mosaic.version = 11 : i64} {
  func.func @bidir_lstm_layer_kernel(%arg0: i32, %arg1: memref<8x8x128xf32, #tpu.memory_space<vmem>>, %arg2: memref<128x1024xf32, #tpu.memory_space<vmem>>, %arg3: memref<128x512xf32, #tpu.memory_space<vmem>>, %arg4: memref<128x512xf32, #tpu.memory_space<vmem>>, %arg5: memref<1x1024xf32, #tpu.memory_space<vmem>>, %arg6: memref<8x8x256xf32, #tpu.memory_space<vmem>>, %arg7: memref<8x256xf32, #tpu.memory_space<vmem>>, %arg8: memref<8x8x1024xf32, #tpu.memory_space<vmem>>) attributes {dimension_semantics = [#tpu.dimension_semantics<arbitrary>], iteration_bounds = array<i64: 1>, scalar_prefetch = 0 : i64, scratch_operands = 1 : i64, tpu.core_type = #tpu.core_type<tc>, window_params = [{pipeline_mode = #tpu.pipeline_mode<synchronous>, transform_indices = @transform_0, window_bounds = array<i64: 8, 8, 128>}, {pipeline_mode = #tpu.pipeline_mode<synchronous>, transform_indices = @transform_1, window_bounds = array<i64: 128, 1024>}, {pipeline_mode = #tpu.pipeline_mode<synchronous>, transform_indices = @transform_2, window_bounds = array<i64: 128, 512>}, {pipeline_mode = #tpu.pipeline_mode<synchronous>, transform_indices = @transform_3, window_bounds = array<i64: 128, 512>}, {pipeline_mode = #tpu.pipeline_mode<synchronous>, transform_indices = @transform_4, window_bounds = array<i64: 1, 1024>}, {pipeline_mode = #tpu.pipeline_mode<synchronous>, transform_indices = @transform_5, window_bounds = array<i64: 8, 8, 256>}, {pipeline_mode = #tpu.pipeline_mode<synchronous>, transform_indices = @transform_6, window_bounds = array<i64: 8, 256>}]} {
    %c0 = arith.constant 0 : index
    %c0_0 = arith.constant 0 : index
    %c0_1 = arith.constant 0 : index
    %0 = vector.load %arg1[%c0, %c0_0, %c0_1] : memref<8x8x128xf32, #tpu.memory_space<vmem>>, vector<8x8x128xf32>
    %1 = vector.shape_cast %0 : vector<8x8x128xf32> to vector<64x128xf32>
    %c0_2 = arith.constant 0 : index
    %c0_3 = arith.constant 0 : index
    %2 = vector.load %arg2[%c0_2, %c0_3] : memref<128x1024xf32, #tpu.memory_space<vmem>>, vector<128x1024xf32>
    %cst = arith.constant dense<0.000000e+00> : vector<64x1024xf32>
    %3 = tpu.matmul %1, %2, %cst {dimension_numbers = #tpu.dot_dimension_numbers<[1], [0], [0], [1], [0, 0, 1, 1], [], []>} : vector<64x128xf32>, vector<128x1024xf32>, vector<64x1024xf32> -> vector<64x1024xf32>
    %c0_4 = arith.constant 0 : index
    %c0_5 = arith.constant 0 : index
    %4 = vector.load %arg5[%c0_4, %c0_5] : memref<1x1024xf32, #tpu.memory_space<vmem>>, vector<1x1024xf32>
    %5 = vector.broadcast %4 : vector<1x1024xf32> to vector<64x1024xf32>
    %6 = arith.addf %3, %5 : vector<64x1024xf32>
    %7 = vector.shape_cast %6 : vector<64x1024xf32> to vector<8x8x1024xf32>
    %c0_6 = arith.constant 0 : index
    %c0_7 = arith.constant 0 : index
    %c0_8 = arith.constant 0 : index
    %8 = vector.load %arg8[%c0_6, %c0_7, %c0_8] : memref<8x8x1024xf32, #tpu.memory_space<vmem>>, vector<8x8x1024xf32>
    tpu.vector_store %arg8[%c0_6, %c0_7, %c0_8], %7 {strides = array<i32>} : memref<8x8x1024xf32, #tpu.memory_space<vmem>>, vector<8x8x1024xf32>,
    %cst_9 = arith.constant 0.000000e+00 : f32
    %9 = vector.broadcast %cst_9 : f32 to vector<8x128xf32>
    %c0_i32 = arith.constant 0 : i32
    %c7_i32 = arith.constant 7 : i32
    %10 = arith.subi %c7_i32, %c0_i32 : i32
    %11 = arith.index_cast %c0_i32 : i32 to index
    %c0_10 = arith.constant 0 : index
    %c0_11 = arith.constant 0 : index
    %12 = vector.load %arg8[%11, %c0_10, %c0_11] : memref<8x8x1024xf32, #tpu.memory_space<vmem>>, vector<1x8x512xf32>
    %13 = vector.shape_cast %12 : vector<1x8x512xf32> to vector<8x512xf32>
    %c0_12 = arith.constant 0 : index
    %c0_13 = arith.constant 0 : index
    %14 = vector.load %arg3[%c0_12, %c0_13] : memref<128x512xf32, #tpu.memory_space<vmem>>, vector<128x512xf32>
    %cst_14 = arith.constant dense<0.000000e+00> : vector<8x512xf32>
    %15 = tpu.matmul %9, %14, %cst_14 {dimension_numbers = #tpu.dot_dimension_numbers<[1], [0], [0], [1], [0, 0, 1, 1], [], []>} : vector<8x128xf32>, vector<128x512xf32>, vector<8x512xf32> -> vector<8x512xf32>
    %16 = arith.addf %13, %15 : vector<8x512xf32>
    %17 = arith.index_cast %10 : i32 to index
    %c0_15 = arith.constant 0 : index
    %c512 = arith.constant 512 : index
    %18 = vector.load %arg8[%17, %c0_15, %c512] : memref<8x8x1024xf32, #tpu.memory_space<vmem>>, vector<1x8x512xf32>
    %19 = vector.shape_cast %18 : vector<1x8x512xf32> to vector<8x512xf32>
    %c0_16 = arith.constant 0 : index
    %c0_17 = arith.constant 0 : index
    %20 = vector.load %arg4[%c0_16, %c0_17] : memref<128x512xf32, #tpu.memory_space<vmem>>, vector<128x512xf32>
    %cst_18 = arith.constant dense<0.000000e+00> : vector<8x512xf32>
    %21 = tpu.matmul %9, %20, %cst_18 {dimension_numbers = #tpu.dot_dimension_numbers<[1], [0], [0], [1], [0, 0, 1, 1], [], []>} : vector<8x128xf32>, vector<128x512xf32>, vector<8x512xf32> -> vector<8x512xf32>
    %22 = arith.addf %19, %21 : vector<8x512xf32>
    %23 = vector.extract_strided_slice %16 {offsets = [0, 0], sizes = [8, 128], strides = [1, 1]} : vector<8x512xf32> to vector<8x128xf32>
    %24 = arith.negf %23 : vector<8x128xf32>
    %25 = math.exp %24 : vector<8x128xf32>
    %cst_19 = arith.constant 1.000000e+00 : f32
    %26 = vector.broadcast %cst_19 : f32 to vector<8x128xf32>
    %27 = arith.addf %26, %25 : vector<8x128xf32>
    %28 = arith.divf %26, %27 : vector<8x128xf32>
    %29 = vector.extract_strided_slice %16 {offsets = [0, 128], sizes = [8, 128], strides = [1, 1]} : vector<8x512xf32> to vector<8x128xf32>
    %30 = arith.negf %29 : vector<8x128xf32>
    %31 = math.exp %30 : vector<8x128xf32>
    %cst_20 = arith.constant 1.000000e+00 : f32
    %32 = vector.broadcast %cst_20 : f32 to vector<8x128xf32>
    %33 = arith.addf %32, %31 : vector<8x128xf32>
    %34 = arith.divf %32, %33 : vector<8x128xf32>
    %35 = vector.extract_strided_slice %16 {offsets = [0, 256], sizes = [8, 128], strides = [1, 1]} : vector<8x512xf32> to vector<8x128xf32>
    %36 = math.tanh %35 : vector<8x128xf32>
    %37 = vector.extract_strided_slice %16 {offsets = [0, 384], sizes = [8, 128], strides = [1, 1]} : vector<8x512xf32> to vector<8x128xf32>
    %38 = arith.negf %37 : vector<8x128xf32>
    %39 = math.exp %38 : vector<8x128xf32>
    %cst_21 = arith.constant 1.000000e+00 : f32
    %40 = vector.broadcast %cst_21 : f32 to vector<8x128xf32>
    %41 = arith.addf %40, %39 : vector<8x128xf32>
    %42 = arith.divf %40, %41 : vector<8x128xf32>
    %43 = arith.mulf %34, %9 : vector<8x128xf32>
    %44 = arith.mulf %28, %36 : vector<8x128xf32>
    %45 = arith.addf %43, %44 : vector<8x128xf32>
    %46 = math.tanh %45 : vector<8x128xf32>
    %47 = arith.mulf %42, %46 : vector<8x128xf32>
    %48 = vector.extract_strided_slice %22 {offsets = [0, 0], sizes = [8, 128], strides = [1, 1]} : vector<8x512xf32> to vector<8x128xf32>
    %49 = arith.negf %48 : vector<8x128xf32>
    %50 = math.exp %49 : vector<8x128xf32>
    %cst_22 = arith.constant 1.000000e+00 : f32
    %51 = vector.broadcast %cst_22 : f32 to vector<8x128xf32>
    %52 = arith.addf %51, %50 : vector<8x128xf32>
    %53 = arith.divf %51, %52 : vector<8x128xf32>
    %54 = vector.extract_strided_slice %22 {offsets = [0, 128], sizes = [8, 128], strides = [1, 1]} : vector<8x512xf32> to vector<8x128xf32>
    %55 = arith.negf %54 : vector<8x128xf32>
    %56 = math.exp %55 : vector<8x128xf32>
    %cst_23 = arith.constant 1.000000e+00 : f32
    %57 = vector.broadcast %cst_23 : f32 to vector<8x128xf32>
    %58 = arith.addf %57, %56 : vector<8x128xf32>
    %59 = arith.divf %57, %58 : vector<8x128xf32>
    %60 = vector.extract_strided_slice %22 {offsets = [0, 256], sizes = [8, 128], strides = [1, 1]} : vector<8x512xf32> to vector<8x128xf32>
    %61 = math.tanh %60 : vector<8x128xf32>
    %62 = vector.extract_strided_slice %22 {offsets = [0, 384], sizes = [8, 128], strides = [1, 1]} : vector<8x512xf32> to vector<8x128xf32>
    %63 = arith.negf %62 : vector<8x128xf32>
    %64 = math.exp %63 : vector<8x128xf32>
    %cst_24 = arith.constant 1.000000e+00 : f32
    %65 = vector.broadcast %cst_24 : f32 to vector<8x128xf32>
    %66 = arith.addf %65, %64 : vector<8x128xf32>
    %67 = arith.divf %65, %66 : vector<8x128xf32>
    %68 = arith.mulf %59, %9 : vector<8x128xf32>
    %69 = arith.mulf %53, %61 : vector<8x128xf32>
    %70 = arith.addf %68, %69 : vector<8x128xf32>
    %71 = math.tanh %70 : vector<8x128xf32>
    %72 = arith.mulf %67, %71 : vector<8x128xf32>
    %73 = arith.index_cast %c0_i32 : i32 to index
    %c0_25 = arith.constant 0 : index
    %c0_26 = arith.constant 0 : index
    %74 = vector.load %arg6[%73, %c0_25, %c0_26] : memref<8x8x256xf32, #tpu.memory_space<vmem>>, vector<1x8x128xf32>
    %75 = vector.shape_cast %74 : vector<1x8x128xf32> to vector<8x128xf32>
    %76 = vector.shape_cast %47 : vector<8x128xf32> to vector<1x8x128xf32>
    tpu.vector_store %arg6[%73, %c0_25, %c0_26], %76 {strides = array<i32>} : memref<8x8x256xf32, #tpu.memory_space<vmem>>, vector<1x8x128xf32>,
    %77 = arith.index_cast %10 : i32 to index
    %c0_27 = arith.constant 0 : index
    %c128 = arith.constant 128 : index
    %78 = vector.load %arg6[%77, %c0_27, %c128] : memref<8x8x256xf32, #tpu.memory_space<vmem>>, vector<1x8x128xf32>
    %79 = vector.shape_cast %78 : vector<1x8x128xf32> to vector<8x128xf32>
    %80 = vector.shape_cast %72 : vector<8x128xf32> to vector<1x8x128xf32>
    tpu.vector_store %arg6[%77, %c0_27, %c128], %80 {strides = array<i32>} : memref<8x8x256xf32, #tpu.memory_space<vmem>>, vector<1x8x128xf32>,
    %c1_i32 = arith.constant 1 : i32
    %c7_i32_28 = arith.constant 7 : i32
    %81 = arith.subi %c7_i32_28, %c1_i32 : i32
    %82 = arith.index_cast %c1_i32 : i32 to index
    %c0_29 = arith.constant 0 : index
    %c0_30 = arith.constant 0 : index
    %83 = vector.load %arg8[%82, %c0_29, %c0_30] : memref<8x8x1024xf32, #tpu.memory_space<vmem>>, vector<1x8x512xf32>
    %84 = vector.shape_cast %83 : vector<1x8x512xf32> to vector<8x512xf32>
    %c0_31 = arith.constant 0 : index
    %c0_32 = arith.constant 0 : index
    %85 = vector.load %arg3[%c0_31, %c0_32] : memref<128x512xf32, #tpu.memory_space<vmem>>, vector<128x512xf32>
    %cst_33 = arith.constant dense<0.000000e+00> : vector<8x512xf32>
    %86 = tpu.matmul %47, %85, %cst_33 {dimension_numbers = #tpu.dot_dimension_numbers<[1], [0], [0], [1], [0, 0, 1, 1], [], []>} : vector<8x128xf32>, vector<128x512xf32>, vector<8x512xf32> -> vector<8x512xf32>
    %87 = arith.addf %84, %86 : vector<8x512xf32>
    %88 = arith.index_cast %81 : i32 to index
    %c0_34 = arith.constant 0 : index
    %c512_35 = arith.constant 512 : index
    %89 = vector.load %arg8[%88, %c0_34, %c512_35] : memref<8x8x1024xf32, #tpu.memory_space<vmem>>, vector<1x8x512xf32>
    %90 = vector.shape_cast %89 : vector<1x8x512xf32> to vector<8x512xf32>
    %c0_36 = arith.constant 0 : index
    %c0_37 = arith.constant 0 : index
    %91 = vector.load %arg4[%c0_36, %c0_37] : memref<128x512xf32, #tpu.memory_space<vmem>>, vector<128x512xf32>
    %cst_38 = arith.constant dense<0.000000e+00> : vector<8x512xf32>
    %92 = tpu.matmul %72, %91, %cst_38 {dimension_numbers = #tpu.dot_dimension_numbers<[1], [0], [0], [1], [0, 0, 1, 1], [], []>} : vector<8x128xf32>, vector<128x512xf32>, vector<8x512xf32> -> vector<8x512xf32>
    %93 = arith.addf %90, %92 : vector<8x512xf32>
    %94 = vector.extract_strided_slice %87 {offsets = [0, 0], sizes = [8, 128], strides = [1, 1]} : vector<8x512xf32> to vector<8x128xf32>
    %95 = arith.negf %94 : vector<8x128xf32>
    %96 = math.exp %95 : vector<8x128xf32>
    %cst_39 = arith.constant 1.000000e+00 : f32
    %97 = vector.broadcast %cst_39 : f32 to vector<8x128xf32>
    %98 = arith.addf %97, %96 : vector<8x128xf32>
    %99 = arith.divf %97, %98 : vector<8x128xf32>
    %100 = vector.extract_strided_slice %87 {offsets = [0, 128], sizes = [8, 128], strides = [1, 1]} : vector<8x512xf32> to vector<8x128xf32>
    %101 = arith.negf %100 : vector<8x128xf32>
    %102 = math.exp %101 : vector<8x128xf32>
    %cst_40 = arith.constant 1.000000e+00 : f32
    %103 = vector.broadcast %cst_40 : f32 to vector<8x128xf32>
    %104 = arith.addf %103, %102 : vector<8x128xf32>
    %105 = arith.divf %103, %104 : vector<8x128xf32>
    %106 = vector.extract_strided_slice %87 {offsets = [0, 256], sizes = [8, 128], strides = [1, 1]} : vector<8x512xf32> to vector<8x128xf32>
    %107 = math.tanh %106 : vector<8x128xf32>
    %108 = vector.extract_strided_slice %87 {offsets = [0, 384], sizes = [8, 128], strides = [1, 1]} : vector<8x512xf32> to vector<8x128xf32>
    %109 = arith.negf %108 : vector<8x128xf32>
    %110 = math.exp %109 : vector<8x128xf32>
    %cst_41 = arith.constant 1.000000e+00 : f32
    %111 = vector.broadcast %cst_41 : f32 to vector<8x128xf32>
    %112 = arith.addf %111, %110 : vector<8x128xf32>
    %113 = arith.divf %111, %112 : vector<8x128xf32>
    %114 = arith.mulf %105, %45 : vector<8x128xf32>
    %115 = arith.mulf %99, %107 : vector<8x128xf32>
    %116 = arith.addf %114, %115 : vector<8x128xf32>
    %117 = math.tanh %116 : vector<8x128xf32>
    %118 = arith.mulf %113, %117 : vector<8x128xf32>
    %119 = vector.extract_strided_slice %93 {offsets = [0, 0], sizes = [8, 128], strides = [1, 1]} : vector<8x512xf32> to vector<8x128xf32>
    %120 = arith.negf %119 : vector<8x128xf32>
    %121 = math.exp %120 : vector<8x128xf32>
    %cst_42 = arith.constant 1.000000e+00 : f32
    %122 = vector.broadcast %cst_42 : f32 to vector<8x128xf32>
    %123 = arith.addf %122, %121 : vector<8x128xf32>
    %124 = arith.divf %122, %123 : vector<8x128xf32>
    %125 = vector.extract_strided_slice %93 {offsets = [0, 128], sizes = [8, 128], strides = [1, 1]} : vector<8x512xf32> to vector<8x128xf32>
    %126 = arith.negf %125 : vector<8x128xf32>
    %127 = math.exp %126 : vector<8x128xf32>
    %cst_43 = arith.constant 1.000000e+00 : f32
    %128 = vector.broadcast %cst_43 : f32 to vector<8x128xf32>
    %129 = arith.addf %128, %127 : vector<8x128xf32>
    %130 = arith.divf %128, %129 : vector<8x128xf32>
    %131 = vector.extract_strided_slice %93 {offsets = [0, 256], sizes = [8, 128], strides = [1, 1]} : vector<8x512xf32> to vector<8x128xf32>
    %132 = math.tanh %131 : vector<8x128xf32>
    %133 = vector.extract_strided_slice %93 {offsets = [0, 384], sizes = [8, 128], strides = [1, 1]} : vector<8x512xf32> to vector<8x128xf32>
    %134 = arith.negf %133 : vector<8x128xf32>
    %135 = math.exp %134 : vector<8x128xf32>
    %cst_44 = arith.constant 1.000000e+00 : f32
    %136 = vector.broadcast %cst_44 : f32 to vector<8x128xf32>
    %137 = arith.addf %136, %135 : vector<8x128xf32>
    %138 = arith.divf %136, %137 : vector<8x128xf32>
    %139 = arith.mulf %130, %70 : vector<8x128xf32>
    %140 = arith.mulf %124, %132 : vector<8x128xf32>
    %141 = arith.addf %139, %140 : vector<8x128xf32>
    %142 = math.tanh %141 : vector<8x128xf32>
    %143 = arith.mulf %138, %142 : vector<8x128xf32>
    %144 = arith.index_cast %c1_i32 : i32 to index
    %c0_45 = arith.constant 0 : index
    %c0_46 = arith.constant 0 : index
    %145 = vector.load %arg6[%144, %c0_45, %c0_46] : memref<8x8x256xf32, #tpu.memory_space<vmem>>, vector<1x8x128xf32>
    %146 = vector.shape_cast %145 : vector<1x8x128xf32> to vector<8x128xf32>
    %147 = vector.shape_cast %118 : vector<8x128xf32> to vector<1x8x128xf32>
    tpu.vector_store %arg6[%144, %c0_45, %c0_46], %147 {strides = array<i32>} : memref<8x8x256xf32, #tpu.memory_space<vmem>>, vector<1x8x128xf32>,
    %148 = arith.index_cast %81 : i32 to index
    %c0_47 = arith.constant 0 : index
    %c128_48 = arith.constant 128 : index
    %149 = vector.load %arg6[%148, %c0_47, %c128_48] : memref<8x8x256xf32, #tpu.memory_space<vmem>>, vector<1x8x128xf32>
    %150 = vector.shape_cast %149 : vector<1x8x128xf32> to vector<8x128xf32>
    %151 = vector.shape_cast %143 : vector<8x128xf32> to vector<1x8x128xf32>
    tpu.vector_store %arg6[%148, %c0_47, %c128_48], %151 {strides = array<i32>} : memref<8x8x256xf32, #tpu.memory_space<vmem>>, vector<1x8x128xf32>,
    %c2_i32 = arith.constant 2 : i32
    %c7_i32_49 = arith.constant 7 : i32
    %152 = arith.subi %c7_i32_49, %c2_i32 : i32
    %153 = arith.index_cast %c2_i32 : i32 to index
    %c0_50 = arith.constant 0 : index
    %c0_51 = arith.constant 0 : index
    %154 = vector.load %arg8[%153, %c0_50, %c0_51] : memref<8x8x1024xf32, #tpu.memory_space<vmem>>, vector<1x8x512xf32>
    %155 = vector.shape_cast %154 : vector<1x8x512xf32> to vector<8x512xf32>
    %c0_52 = arith.constant 0 : index
    %c0_53 = arith.constant 0 : index
    %156 = vector.load %arg3[%c0_52, %c0_53] : memref<128x512xf32, #tpu.memory_space<vmem>>, vector<128x512xf32>
    %cst_54 = arith.constant dense<0.000000e+00> : vector<8x512xf32>
    %157 = tpu.matmul %118, %156, %cst_54 {dimension_numbers = #tpu.dot_dimension_numbers<[1], [0], [0], [1], [0, 0, 1, 1], [], []>} : vector<8x128xf32>, vector<128x512xf32>, vector<8x512xf32> -> vector<8x512xf32>
    %158 = arith.addf %155, %157 : vector<8x512xf32>
    %159 = arith.index_cast %152 : i32 to index
    %c0_55 = arith.constant 0 : index
    %c512_56 = arith.constant 512 : index
    %160 = vector.load %arg8[%159, %c0_55, %c512_56] : memref<8x8x1024xf32, #tpu.memory_space<vmem>>, vector<1x8x512xf32>
    %161 = vector.shape_cast %160 : vector<1x8x512xf32> to vector<8x512xf32>
    %c0_57 = arith.constant 0 : index
    %c0_58 = arith.constant 0 : index
    %162 = vector.load %arg4[%c0_57, %c0_58] : memref<128x512xf32, #tpu.memory_space<vmem>>, vector<128x512xf32>
    %cst_59 = arith.constant dense<0.000000e+00> : vector<8x512xf32>
    %163 = tpu.matmul %143, %162, %cst_59 {dimension_numbers = #tpu.dot_dimension_numbers<[1], [0], [0], [1], [0, 0, 1, 1], [], []>} : vector<8x128xf32>, vector<128x512xf32>, vector<8x512xf32> -> vector<8x512xf32>
    %164 = arith.addf %161, %163 : vector<8x512xf32>
    %165 = vector.extract_strided_slice %158 {offsets = [0, 0], sizes = [8, 128], strides = [1, 1]} : vector<8x512xf32> to vector<8x128xf32>
    %166 = arith.negf %165 : vector<8x128xf32>
    %167 = math.exp %166 : vector<8x128xf32>
    %cst_60 = arith.constant 1.000000e+00 : f32
    %168 = vector.broadcast %cst_60 : f32 to vector<8x128xf32>
    %169 = arith.addf %168, %167 : vector<8x128xf32>
    %170 = arith.divf %168, %169 : vector<8x128xf32>
    %171 = vector.extract_strided_slice %158 {offsets = [0, 128], sizes = [8, 128], strides = [1, 1]} : vector<8x512xf32> to vector<8x128xf32>
    %172 = arith.negf %171 : vector<8x128xf32>
    %173 = math.exp %172 : vector<8x128xf32>
    %cst_61 = arith.constant 1.000000e+00 : f32
    %174 = vector.broadcast %cst_61 : f32 to vector<8x128xf32>
    %175 = arith.addf %174, %173 : vector<8x128xf32>
    %176 = arith.divf %174, %175 : vector<8x128xf32>
    %177 = vector.extract_strided_slice %158 {offsets = [0, 256], sizes = [8, 128], strides = [1, 1]} : vector<8x512xf32> to vector<8x128xf32>
    %178 = math.tanh %177 : vector<8x128xf32>
    %179 = vector.extract_strided_slice %158 {offsets = [0, 384], sizes = [8, 128], strides = [1, 1]} : vector<8x512xf32> to vector<8x128xf32>
    %180 = arith.negf %179 : vector<8x128xf32>
    %181 = math.exp %180 : vector<8x128xf32>
    %cst_62 = arith.constant 1.000000e+00 : f32
    %182 = vector.broadcast %cst_62 : f32 to vector<8x128xf32>
    %183 = arith.addf %182, %181 : vector<8x128xf32>
    %184 = arith.divf %182, %183 : vector<8x128xf32>
    %185 = arith.mulf %176, %116 : vector<8x128xf32>
    %186 = arith.mulf %170, %178 : vector<8x128xf32>
    %187 = arith.addf %185, %186 : vector<8x128xf32>
    %188 = math.tanh %187 : vector<8x128xf32>
    %189 = arith.mulf %184, %188 : vector<8x128xf32>
    %190 = vector.extract_strided_slice %164 {offsets = [0, 0], sizes = [8, 128], strides = [1, 1]} : vector<8x512xf32> to vector<8x128xf32>
    %191 = arith.negf %190 : vector<8x128xf32>
    %192 = math.exp %191 : vector<8x128xf32>
    %cst_63 = arith.constant 1.000000e+00 : f32
    %193 = vector.broadcast %cst_63 : f32 to vector<8x128xf32>
    %194 = arith.addf %193, %192 : vector<8x128xf32>
    %195 = arith.divf %193, %194 : vector<8x128xf32>
    %196 = vector.extract_strided_slice %164 {offsets = [0, 128], sizes = [8, 128], strides = [1, 1]} : vector<8x512xf32> to vector<8x128xf32>
    %197 = arith.negf %196 : vector<8x128xf32>
    %198 = math.exp %197 : vector<8x128xf32>
    %cst_64 = arith.constant 1.000000e+00 : f32
    %199 = vector.broadcast %cst_64 : f32 to vector<8x128xf32>
    %200 = arith.addf %199, %198 : vector<8x128xf32>
    %201 = arith.divf %199, %200 : vector<8x128xf32>
    %202 = vector.extract_strided_slice %164 {offsets = [0, 256], sizes = [8, 128], strides = [1, 1]} : vector<8x512xf32> to vector<8x128xf32>
    %203 = math.tanh %202 : vector<8x128xf32>
    %204 = vector.extract_strided_slice %164 {offsets = [0, 384], sizes = [8, 128], strides = [1, 1]} : vector<8x512xf32> to vector<8x128xf32>
    %205 = arith.negf %204 : vector<8x128xf32>
    %206 = math.exp %205 : vector<8x128xf32>
    %cst_65 = arith.constant 1.000000e+00 : f32
    %207 = vector.broadcast %cst_65 : f32 to vector<8x128xf32>
    %208 = arith.addf %207, %206 : vector<8x128xf32>
    %209 = arith.divf %207, %208 : vector<8x128xf32>
    %210 = arith.mulf %201, %141 : vector<8x128xf32>
    %211 = arith.mulf %195, %203 : vector<8x128xf32>
    %212 = arith.addf %210, %211 : vector<8x128xf32>
    %213 = math.tanh %212 : vector<8x128xf32>
    %214 = arith.mulf %209, %213 : vector<8x128xf32>
    %215 = arith.index_cast %c2_i32 : i32 to index
    %c0_66 = arith.constant 0 : index
    %c0_67 = arith.constant 0 : index
    %216 = vector.load %arg6[%215, %c0_66, %c0_67] : memref<8x8x256xf32, #tpu.memory_space<vmem>>, vector<1x8x128xf32>
    %217 = vector.shape_cast %216 : vector<1x8x128xf32> to vector<8x128xf32>
    %218 = vector.shape_cast %189 : vector<8x128xf32> to vector<1x8x128xf32>
    tpu.vector_store %arg6[%215, %c0_66, %c0_67], %218 {strides = array<i32>} : memref<8x8x256xf32, #tpu.memory_space<vmem>>, vector<1x8x128xf32>,
    %219 = arith.index_cast %152 : i32 to index
    %c0_68 = arith.constant 0 : index
    %c128_69 = arith.constant 128 : index
    %220 = vector.load %arg6[%219, %c0_68, %c128_69] : memref<8x8x256xf32, #tpu.memory_space<vmem>>, vector<1x8x128xf32>
    %221 = vector.shape_cast %220 : vector<1x8x128xf32> to vector<8x128xf32>
    %222 = vector.shape_cast %214 : vector<8x128xf32> to vector<1x8x128xf32>
    tpu.vector_store %arg6[%219, %c0_68, %c128_69], %222 {strides = array<i32>} : memref<8x8x256xf32, #tpu.memory_space<vmem>>, vector<1x8x128xf32>,
    %c3_i32 = arith.constant 3 : i32
    %c7_i32_70 = arith.constant 7 : i32
    %223 = arith.subi %c7_i32_70, %c3_i32 : i32
    %224 = arith.index_cast %c3_i32 : i32 to index
    %c0_71 = arith.constant 0 : index
    %c0_72 = arith.constant 0 : index
    %225 = vector.load %arg8[%224, %c0_71, %c0_72] : memref<8x8x1024xf32, #tpu.memory_space<vmem>>, vector<1x8x512xf32>
    %226 = vector.shape_cast %225 : vector<1x8x512xf32> to vector<8x512xf32>
    %c0_73 = arith.constant 0 : index
    %c0_74 = arith.constant 0 : index
    %227 = vector.load %arg3[%c0_73, %c0_74] : memref<128x512xf32, #tpu.memory_space<vmem>>, vector<128x512xf32>
    %cst_75 = arith.constant dense<0.000000e+00> : vector<8x512xf32>
    %228 = tpu.matmul %189, %227, %cst_75 {dimension_numbers = #tpu.dot_dimension_numbers<[1], [0], [0], [1], [0, 0, 1, 1], [], []>} : vector<8x128xf32>, vector<128x512xf32>, vector<8x512xf32> -> vector<8x512xf32>
    %229 = arith.addf %226, %228 : vector<8x512xf32>
    %230 = arith.index_cast %223 : i32 to index
    %c0_76 = arith.constant 0 : index
    %c512_77 = arith.constant 512 : index
    %231 = vector.load %arg8[%230, %c0_76, %c512_77] : memref<8x8x1024xf32, #tpu.memory_space<vmem>>, vector<1x8x512xf32>
    %232 = vector.shape_cast %231 : vector<1x8x512xf32> to vector<8x512xf32>
    %c0_78 = arith.constant 0 : index
    %c0_79 = arith.constant 0 : index
    %233 = vector.load %arg4[%c0_78, %c0_79] : memref<128x512xf32, #tpu.memory_space<vmem>>, vector<128x512xf32>
    %cst_80 = arith.constant dense<0.000000e+00> : vector<8x512xf32>
    %234 = tpu.matmul %214, %233, %cst_80 {dimension_numbers = #tpu.dot_dimension_numbers<[1], [0], [0], [1], [0, 0, 1, 1], [], []>} : vector<8x128xf32>, vector<128x512xf32>, vector<8x512xf32> -> vector<8x512xf32>
    %235 = arith.addf %232, %234 : vector<8x512xf32>
    %236 = vector.extract_strided_slice %229 {offsets = [0, 0], sizes = [8, 128], strides = [1, 1]} : vector<8x512xf32> to vector<8x128xf32>
    %237 = arith.negf %236 : vector<8x128xf32>
    %238 = math.exp %237 : vector<8x128xf32>
    %cst_81 = arith.constant 1.000000e+00 : f32
    %239 = vector.broadcast %cst_81 : f32 to vector<8x128xf32>
    %240 = arith.addf %239, %238 : vector<8x128xf32>
    %241 = arith.divf %239, %240 : vector<8x128xf32>
    %242 = vector.extract_strided_slice %229 {offsets = [0, 128], sizes = [8, 128], strides = [1, 1]} : vector<8x512xf32> to vector<8x128xf32>
    %243 = arith.negf %242 : vector<8x128xf32>
    %244 = math.exp %243 : vector<8x128xf32>
    %cst_82 = arith.constant 1.000000e+00 : f32
    %245 = vector.broadcast %cst_82 : f32 to vector<8x128xf32>
    %246 = arith.addf %245, %244 : vector<8x128xf32>
    %247 = arith.divf %245, %246 : vector<8x128xf32>
    %248 = vector.extract_strided_slice %229 {offsets = [0, 256], sizes = [8, 128], strides = [1, 1]} : vector<8x512xf32> to vector<8x128xf32>
    %249 = math.tanh %248 : vector<8x128xf32>
    %250 = vector.extract_strided_slice %229 {offsets = [0, 384], sizes = [8, 128], strides = [1, 1]} : vector<8x512xf32> to vector<8x128xf32>
    %251 = arith.negf %250 : vector<8x128xf32>
    %252 = math.exp %251 : vector<8x128xf32>
    %cst_83 = arith.constant 1.000000e+00 : f32
    %253 = vector.broadcast %cst_83 : f32 to vector<8x128xf32>
    %254 = arith.addf %253, %252 : vector<8x128xf32>
    %255 = arith.divf %253, %254 : vector<8x128xf32>
    %256 = arith.mulf %247, %187 : vector<8x128xf32>
    %257 = arith.mulf %241, %249 : vector<8x128xf32>
    %258 = arith.addf %256, %257 : vector<8x128xf32>
    %259 = math.tanh %258 : vector<8x128xf32>
    %260 = arith.mulf %255, %259 : vector<8x128xf32>
    %261 = vector.extract_strided_slice %235 {offsets = [0, 0], sizes = [8, 128], strides = [1, 1]} : vector<8x512xf32> to vector<8x128xf32>
    %262 = arith.negf %261 : vector<8x128xf32>
    %263 = math.exp %262 : vector<8x128xf32>
    %cst_84 = arith.constant 1.000000e+00 : f32
    %264 = vector.broadcast %cst_84 : f32 to vector<8x128xf32>
    %265 = arith.addf %264, %263 : vector<8x128xf32>
    %266 = arith.divf %264, %265 : vector<8x128xf32>
    %267 = vector.extract_strided_slice %235 {offsets = [0, 128], sizes = [8, 128], strides = [1, 1]} : vector<8x512xf32> to vector<8x128xf32>
    %268 = arith.negf %267 : vector<8x128xf32>
    %269 = math.exp %268 : vector<8x128xf32>
    %cst_85 = arith.constant 1.000000e+00 : f32
    %270 = vector.broadcast %cst_85 : f32 to vector<8x128xf32>
    %271 = arith.addf %270, %269 : vector<8x128xf32>
    %272 = arith.divf %270, %271 : vector<8x128xf32>
    %273 = vector.extract_strided_slice %235 {offsets = [0, 256], sizes = [8, 128], strides = [1, 1]} : vector<8x512xf32> to vector<8x128xf32>
    %274 = math.tanh %273 : vector<8x128xf32>
    %275 = vector.extract_strided_slice %235 {offsets = [0, 384], sizes = [8, 128], strides = [1, 1]} : vector<8x512xf32> to vector<8x128xf32>
    %276 = arith.negf %275 : vector<8x128xf32>
    %277 = math.exp %276 : vector<8x128xf32>
    %cst_86 = arith.constant 1.000000e+00 : f32
    %278 = vector.broadcast %cst_86 : f32 to vector<8x128xf32>
    %279 = arith.addf %278, %277 : vector<8x128xf32>
    %280 = arith.divf %278, %279 : vector<8x128xf32>
    %281 = arith.mulf %272, %212 : vector<8x128xf32>
    %282 = arith.mulf %266, %274 : vector<8x128xf32>
    %283 = arith.addf %281, %282 : vector<8x128xf32>
    %284 = math.tanh %283 : vector<8x128xf32>
    %285 = arith.mulf %280, %284 : vector<8x128xf32>
    %286 = arith.index_cast %c3_i32 : i32 to index
    %c0_87 = arith.constant 0 : index
    %c0_88 = arith.constant 0 : index
    %287 = vector.load %arg6[%286, %c0_87, %c0_88] : memref<8x8x256xf32, #tpu.memory_space<vmem>>, vector<1x8x128xf32>
    %288 = vector.shape_cast %287 : vector<1x8x128xf32> to vector<8x128xf32>
    %289 = vector.shape_cast %260 : vector<8x128xf32> to vector<1x8x128xf32>
    tpu.vector_store %arg6[%286, %c0_87, %c0_88], %289 {strides = array<i32>} : memref<8x8x256xf32, #tpu.memory_space<vmem>>, vector<1x8x128xf32>,
    %290 = arith.index_cast %223 : i32 to index
    %c0_89 = arith.constant 0 : index
    %c128_90 = arith.constant 128 : index
    %291 = vector.load %arg6[%290, %c0_89, %c128_90] : memref<8x8x256xf32, #tpu.memory_space<vmem>>, vector<1x8x128xf32>
    %292 = vector.shape_cast %291 : vector<1x8x128xf32> to vector<8x128xf32>
    %293 = vector.shape_cast %285 : vector<8x128xf32> to vector<1x8x128xf32>
    tpu.vector_store %arg6[%290, %c0_89, %c128_90], %293 {strides = array<i32>} : memref<8x8x256xf32, #tpu.memory_space<vmem>>, vector<1x8x128xf32>,
    %c4_i32 = arith.constant 4 : i32
    %c7_i32_91 = arith.constant 7 : i32
    %294 = arith.subi %c7_i32_91, %c4_i32 : i32
    %295 = arith.index_cast %c4_i32 : i32 to index
    %c0_92 = arith.constant 0 : index
    %c0_93 = arith.constant 0 : index
    %296 = vector.load %arg8[%295, %c0_92, %c0_93] : memref<8x8x1024xf32, #tpu.memory_space<vmem>>, vector<1x8x512xf32>
    %297 = vector.shape_cast %296 : vector<1x8x512xf32> to vector<8x512xf32>
    %c0_94 = arith.constant 0 : index
    %c0_95 = arith.constant 0 : index
    %298 = vector.load %arg3[%c0_94, %c0_95] : memref<128x512xf32, #tpu.memory_space<vmem>>, vector<128x512xf32>
    %cst_96 = arith.constant dense<0.000000e+00> : vector<8x512xf32>
    %299 = tpu.matmul %260, %298, %cst_96 {dimension_numbers = #tpu.dot_dimension_numbers<[1], [0], [0], [1], [0, 0, 1, 1], [], []>} : vector<8x128xf32>, vector<128x512xf32>, vector<8x512xf32> -> vector<8x512xf32>
    %300 = arith.addf %297, %299 : vector<8x512xf32>
    %301 = arith.index_cast %294 : i32 to index
    %c0_97 = arith.constant 0 : index
    %c512_98 = arith.constant 512 : index
    %302 = vector.load %arg8[%301, %c0_97, %c512_98] : memref<8x8x1024xf32, #tpu.memory_space<vmem>>, vector<1x8x512xf32>
    %303 = vector.shape_cast %302 : vector<1x8x512xf32> to vector<8x512xf32>
    %c0_99 = arith.constant 0 : index
    %c0_100 = arith.constant 0 : index
    %304 = vector.load %arg4[%c0_99, %c0_100] : memref<128x512xf32, #tpu.memory_space<vmem>>, vector<128x512xf32>
    %cst_101 = arith.constant dense<0.000000e+00> : vector<8x512xf32>
    %305 = tpu.matmul %285, %304, %cst_101 {dimension_numbers = #tpu.dot_dimension_numbers<[1], [0], [0], [1], [0, 0, 1, 1], [], []>} : vector<8x128xf32>, vector<128x512xf32>, vector<8x512xf32> -> vector<8x512xf32>
    %306 = arith.addf %303, %305 : vector<8x512xf32>
    %307 = vector.extract_strided_slice %300 {offsets = [0, 0], sizes = [8, 128], strides = [1, 1]} : vector<8x512xf32> to vector<8x128xf32>
    %308 = arith.negf %307 : vector<8x128xf32>
    %309 = math.exp %308 : vector<8x128xf32>
    %cst_102 = arith.constant 1.000000e+00 : f32
    %310 = vector.broadcast %cst_102 : f32 to vector<8x128xf32>
    %311 = arith.addf %310, %309 : vector<8x128xf32>
    %312 = arith.divf %310, %311 : vector<8x128xf32>
    %313 = vector.extract_strided_slice %300 {offsets = [0, 128], sizes = [8, 128], strides = [1, 1]} : vector<8x512xf32> to vector<8x128xf32>
    %314 = arith.negf %313 : vector<8x128xf32>
    %315 = math.exp %314 : vector<8x128xf32>
    %cst_103 = arith.constant 1.000000e+00 : f32
    %316 = vector.broadcast %cst_103 : f32 to vector<8x128xf32>
    %317 = arith.addf %316, %315 : vector<8x128xf32>
    %318 = arith.divf %316, %317 : vector<8x128xf32>
    %319 = vector.extract_strided_slice %300 {offsets = [0, 256], sizes = [8, 128], strides = [1, 1]} : vector<8x512xf32> to vector<8x128xf32>
    %320 = math.tanh %319 : vector<8x128xf32>
    %321 = vector.extract_strided_slice %300 {offsets = [0, 384], sizes = [8, 128], strides = [1, 1]} : vector<8x512xf32> to vector<8x128xf32>
    %322 = arith.negf %321 : vector<8x128xf32>
    %323 = math.exp %322 : vector<8x128xf32>
    %cst_104 = arith.constant 1.000000e+00 : f32
    %324 = vector.broadcast %cst_104 : f32 to vector<8x128xf32>
    %325 = arith.addf %324, %323 : vector<8x128xf32>
    %326 = arith.divf %324, %325 : vector<8x128xf32>
    %327 = arith.mulf %318, %258 : vector<8x128xf32>
    %328 = arith.mulf %312, %320 : vector<8x128xf32>
    %329 = arith.addf %327, %328 : vector<8x128xf32>
    %330 = math.tanh %329 : vector<8x128xf32>
    %331 = arith.mulf %326, %330 : vector<8x128xf32>
    %332 = vector.extract_strided_slice %306 {offsets = [0, 0], sizes = [8, 128], strides = [1, 1]} : vector<8x512xf32> to vector<8x128xf32>
    %333 = arith.negf %332 : vector<8x128xf32>
    %334 = math.exp %333 : vector<8x128xf32>
    %cst_105 = arith.constant 1.000000e+00 : f32
    %335 = vector.broadcast %cst_105 : f32 to vector<8x128xf32>
    %336 = arith.addf %335, %334 : vector<8x128xf32>
    %337 = arith.divf %335, %336 : vector<8x128xf32>
    %338 = vector.extract_strided_slice %306 {offsets = [0, 128], sizes = [8, 128], strides = [1, 1]} : vector<8x512xf32> to vector<8x128xf32>
    %339 = arith.negf %338 : vector<8x128xf32>
    %340 = math.exp %339 : vector<8x128xf32>
    %cst_106 = arith.constant 1.000000e+00 : f32
    %341 = vector.broadcast %cst_106 : f32 to vector<8x128xf32>
    %342 = arith.addf %341, %340 : vector<8x128xf32>
    %343 = arith.divf %341, %342 : vector<8x128xf32>
    %344 = vector.extract_strided_slice %306 {offsets = [0, 256], sizes = [8, 128], strides = [1, 1]} : vector<8x512xf32> to vector<8x128xf32>
    %345 = math.tanh %344 : vector<8x128xf32>
    %346 = vector.extract_strided_slice %306 {offsets = [0, 384], sizes = [8, 128], strides = [1, 1]} : vector<8x512xf32> to vector<8x128xf32>
    %347 = arith.negf %346 : vector<8x128xf32>
    %348 = math.exp %347 : vector<8x128xf32>
    %cst_107 = arith.constant 1.000000e+00 : f32
    %349 = vector.broadcast %cst_107 : f32 to vector<8x128xf32>
    %350 = arith.addf %349, %348 : vector<8x128xf32>
    %351 = arith.divf %349, %350 : vector<8x128xf32>
    %352 = arith.mulf %343, %283 : vector<8x128xf32>
    %353 = arith.mulf %337, %345 : vector<8x128xf32>
    %354 = arith.addf %352, %353 : vector<8x128xf32>
    %355 = math.tanh %354 : vector<8x128xf32>
    %356 = arith.mulf %351, %355 : vector<8x128xf32>
    %357 = arith.index_cast %c4_i32 : i32 to index
    %c0_108 = arith.constant 0 : index
    %c0_109 = arith.constant 0 : index
    %358 = vector.load %arg6[%357, %c0_108, %c0_109] : memref<8x8x256xf32, #tpu.memory_space<vmem>>, vector<1x8x128xf32>
    %359 = vector.shape_cast %358 : vector<1x8x128xf32> to vector<8x128xf32>
    %360 = vector.shape_cast %331 : vector<8x128xf32> to vector<1x8x128xf32>
    tpu.vector_store %arg6[%357, %c0_108, %c0_109], %360 {strides = array<i32>} : memref<8x8x256xf32, #tpu.memory_space<vmem>>, vector<1x8x128xf32>,
    %361 = arith.index_cast %294 : i32 to index
    %c0_110 = arith.constant 0 : index
    %c128_111 = arith.constant 128 : index
    %362 = vector.load %arg6[%361, %c0_110, %c128_111] : memref<8x8x256xf32, #tpu.memory_space<vmem>>, vector<1x8x128xf32>
    %363 = vector.shape_cast %362 : vector<1x8x128xf32> to vector<8x128xf32>
    %364 = vector.shape_cast %356 : vector<8x128xf32> to vector<1x8x128xf32>
    tpu.vector_store %arg6[%361, %c0_110, %c128_111], %364 {strides = array<i32>} : memref<8x8x256xf32, #tpu.memory_space<vmem>>, vector<1x8x128xf32>,
    %c5_i32 = arith.constant 5 : i32
    %c7_i32_112 = arith.constant 7 : i32
    %365 = arith.subi %c7_i32_112, %c5_i32 : i32
    %366 = arith.index_cast %c5_i32 : i32 to index
    %c0_113 = arith.constant 0 : index
    %c0_114 = arith.constant 0 : index
    %367 = vector.load %arg8[%366, %c0_113, %c0_114] : memref<8x8x1024xf32, #tpu.memory_space<vmem>>, vector<1x8x512xf32>
    %368 = vector.shape_cast %367 : vector<1x8x512xf32> to vector<8x512xf32>
    %c0_115 = arith.constant 0 : index
    %c0_116 = arith.constant 0 : index
    %369 = vector.load %arg3[%c0_115, %c0_116] : memref<128x512xf32, #tpu.memory_space<vmem>>, vector<128x512xf32>
    %cst_117 = arith.constant dense<0.000000e+00> : vector<8x512xf32>
    %370 = tpu.matmul %331, %369, %cst_117 {dimension_numbers = #tpu.dot_dimension_numbers<[1], [0], [0], [1], [0, 0, 1, 1], [], []>} : vector<8x128xf32>, vector<128x512xf32>, vector<8x512xf32> -> vector<8x512xf32>
    %371 = arith.addf %368, %370 : vector<8x512xf32>
    %372 = arith.index_cast %365 : i32 to index
    %c0_118 = arith.constant 0 : index
    %c512_119 = arith.constant 512 : index
    %373 = vector.load %arg8[%372, %c0_118, %c512_119] : memref<8x8x1024xf32, #tpu.memory_space<vmem>>, vector<1x8x512xf32>
    %374 = vector.shape_cast %373 : vector<1x8x512xf32> to vector<8x512xf32>
    %c0_120 = arith.constant 0 : index
    %c0_121 = arith.constant 0 : index
    %375 = vector.load %arg4[%c0_120, %c0_121] : memref<128x512xf32, #tpu.memory_space<vmem>>, vector<128x512xf32>
    %cst_122 = arith.constant dense<0.000000e+00> : vector<8x512xf32>
    %376 = tpu.matmul %356, %375, %cst_122 {dimension_numbers = #tpu.dot_dimension_numbers<[1], [0], [0], [1], [0, 0, 1, 1], [], []>} : vector<8x128xf32>, vector<128x512xf32>, vector<8x512xf32> -> vector<8x512xf32>
    %377 = arith.addf %374, %376 : vector<8x512xf32>
    %378 = vector.extract_strided_slice %371 {offsets = [0, 0], sizes = [8, 128], strides = [1, 1]} : vector<8x512xf32> to vector<8x128xf32>
    %379 = arith.negf %378 : vector<8x128xf32>
    %380 = math.exp %379 : vector<8x128xf32>
    %cst_123 = arith.constant 1.000000e+00 : f32
    %381 = vector.broadcast %cst_123 : f32 to vector<8x128xf32>
    %382 = arith.addf %381, %380 : vector<8x128xf32>
    %383 = arith.divf %381, %382 : vector<8x128xf32>
    %384 = vector.extract_strided_slice %371 {offsets = [0, 128], sizes = [8, 128], strides = [1, 1]} : vector<8x512xf32> to vector<8x128xf32>
    %385 = arith.negf %384 : vector<8x128xf32>
    %386 = math.exp %385 : vector<8x128xf32>
    %cst_124 = arith.constant 1.000000e+00 : f32
    %387 = vector.broadcast %cst_124 : f32 to vector<8x128xf32>
    %388 = arith.addf %387, %386 : vector<8x128xf32>
    %389 = arith.divf %387, %388 : vector<8x128xf32>
    %390 = vector.extract_strided_slice %371 {offsets = [0, 256], sizes = [8, 128], strides = [1, 1]} : vector<8x512xf32> to vector<8x128xf32>
    %391 = math.tanh %390 : vector<8x128xf32>
    %392 = vector.extract_strided_slice %371 {offsets = [0, 384], sizes = [8, 128], strides = [1, 1]} : vector<8x512xf32> to vector<8x128xf32>
    %393 = arith.negf %392 : vector<8x128xf32>
    %394 = math.exp %393 : vector<8x128xf32>
    %cst_125 = arith.constant 1.000000e+00 : f32
    %395 = vector.broadcast %cst_125 : f32 to vector<8x128xf32>
    %396 = arith.addf %395, %394 : vector<8x128xf32>
    %397 = arith.divf %395, %396 : vector<8x128xf32>
    %398 = arith.mulf %389, %329 : vector<8x128xf32>
    %399 = arith.mulf %383, %391 : vector<8x128xf32>
    %400 = arith.addf %398, %399 : vector<8x128xf32>
    %401 = math.tanh %400 : vector<8x128xf32>
    %402 = arith.mulf %397, %401 : vector<8x128xf32>
    %403 = vector.extract_strided_slice %377 {offsets = [0, 0], sizes = [8, 128], strides = [1, 1]} : vector<8x512xf32> to vector<8x128xf32>
    %404 = arith.negf %403 : vector<8x128xf32>
    %405 = math.exp %404 : vector<8x128xf32>
    %cst_126 = arith.constant 1.000000e+00 : f32
    %406 = vector.broadcast %cst_126 : f32 to vector<8x128xf32>
    %407 = arith.addf %406, %405 : vector<8x128xf32>
    %408 = arith.divf %406, %407 : vector<8x128xf32>
    %409 = vector.extract_strided_slice %377 {offsets = [0, 128], sizes = [8, 128], strides = [1, 1]} : vector<8x512xf32> to vector<8x128xf32>
    %410 = arith.negf %409 : vector<8x128xf32>
    %411 = math.exp %410 : vector<8x128xf32>
    %cst_127 = arith.constant 1.000000e+00 : f32
    %412 = vector.broadcast %cst_127 : f32 to vector<8x128xf32>
    %413 = arith.addf %412, %411 : vector<8x128xf32>
    %414 = arith.divf %412, %413 : vector<8x128xf32>
    %415 = vector.extract_strided_slice %377 {offsets = [0, 256], sizes = [8, 128], strides = [1, 1]} : vector<8x512xf32> to vector<8x128xf32>
    %416 = math.tanh %415 : vector<8x128xf32>
    %417 = vector.extract_strided_slice %377 {offsets = [0, 384], sizes = [8, 128], strides = [1, 1]} : vector<8x512xf32> to vector<8x128xf32>
    %418 = arith.negf %417 : vector<8x128xf32>
    %419 = math.exp %418 : vector<8x128xf32>
    %cst_128 = arith.constant 1.000000e+00 : f32
    %420 = vector.broadcast %cst_128 : f32 to vector<8x128xf32>
    %421 = arith.addf %420, %419 : vector<8x128xf32>
    %422 = arith.divf %420, %421 : vector<8x128xf32>
    %423 = arith.mulf %414, %354 : vector<8x128xf32>
    %424 = arith.mulf %408, %416 : vector<8x128xf32>
    %425 = arith.addf %423, %424 : vector<8x128xf32>
    %426 = math.tanh %425 : vector<8x128xf32>
    %427 = arith.mulf %422, %426 : vector<8x128xf32>
    %428 = arith.index_cast %c5_i32 : i32 to index
    %c0_129 = arith.constant 0 : index
    %c0_130 = arith.constant 0 : index
    %429 = vector.load %arg6[%428, %c0_129, %c0_130] : memref<8x8x256xf32, #tpu.memory_space<vmem>>, vector<1x8x128xf32>
    %430 = vector.shape_cast %429 : vector<1x8x128xf32> to vector<8x128xf32>
    %431 = vector.shape_cast %402 : vector<8x128xf32> to vector<1x8x128xf32>
    tpu.vector_store %arg6[%428, %c0_129, %c0_130], %431 {strides = array<i32>} : memref<8x8x256xf32, #tpu.memory_space<vmem>>, vector<1x8x128xf32>,
    %432 = arith.index_cast %365 : i32 to index
    %c0_131 = arith.constant 0 : index
    %c128_132 = arith.constant 128 : index
    %433 = vector.load %arg6[%432, %c0_131, %c128_132] : memref<8x8x256xf32, #tpu.memory_space<vmem>>, vector<1x8x128xf32>
    %434 = vector.shape_cast %433 : vector<1x8x128xf32> to vector<8x128xf32>
    %435 = vector.shape_cast %427 : vector<8x128xf32> to vector<1x8x128xf32>
    tpu.vector_store %arg6[%432, %c0_131, %c128_132], %435 {strides = array<i32>} : memref<8x8x256xf32, #tpu.memory_space<vmem>>, vector<1x8x128xf32>,
    %c6_i32 = arith.constant 6 : i32
    %c7_i32_133 = arith.constant 7 : i32
    %436 = arith.subi %c7_i32_133, %c6_i32 : i32
    %437 = arith.index_cast %c6_i32 : i32 to index
    %c0_134 = arith.constant 0 : index
    %c0_135 = arith.constant 0 : index
    %438 = vector.load %arg8[%437, %c0_134, %c0_135] : memref<8x8x1024xf32, #tpu.memory_space<vmem>>, vector<1x8x512xf32>
    %439 = vector.shape_cast %438 : vector<1x8x512xf32> to vector<8x512xf32>
    %c0_136 = arith.constant 0 : index
    %c0_137 = arith.constant 0 : index
    %440 = vector.load %arg3[%c0_136, %c0_137] : memref<128x512xf32, #tpu.memory_space<vmem>>, vector<128x512xf32>
    %cst_138 = arith.constant dense<0.000000e+00> : vector<8x512xf32>
    %441 = tpu.matmul %402, %440, %cst_138 {dimension_numbers = #tpu.dot_dimension_numbers<[1], [0], [0], [1], [0, 0, 1, 1], [], []>} : vector<8x128xf32>, vector<128x512xf32>, vector<8x512xf32> -> vector<8x512xf32>
    %442 = arith.addf %439, %441 : vector<8x512xf32>
    %443 = arith.index_cast %436 : i32 to index
    %c0_139 = arith.constant 0 : index
    %c512_140 = arith.constant 512 : index
    %444 = vector.load %arg8[%443, %c0_139, %c512_140] : memref<8x8x1024xf32, #tpu.memory_space<vmem>>, vector<1x8x512xf32>
    %445 = vector.shape_cast %444 : vector<1x8x512xf32> to vector<8x512xf32>
    %c0_141 = arith.constant 0 : index
    %c0_142 = arith.constant 0 : index
    %446 = vector.load %arg4[%c0_141, %c0_142] : memref<128x512xf32, #tpu.memory_space<vmem>>, vector<128x512xf32>
    %cst_143 = arith.constant dense<0.000000e+00> : vector<8x512xf32>
    %447 = tpu.matmul %427, %446, %cst_143 {dimension_numbers = #tpu.dot_dimension_numbers<[1], [0], [0], [1], [0, 0, 1, 1], [], []>} : vector<8x128xf32>, vector<128x512xf32>, vector<8x512xf32> -> vector<8x512xf32>
    %448 = arith.addf %445, %447 : vector<8x512xf32>
    %449 = vector.extract_strided_slice %442 {offsets = [0, 0], sizes = [8, 128], strides = [1, 1]} : vector<8x512xf32> to vector<8x128xf32>
    %450 = arith.negf %449 : vector<8x128xf32>
    %451 = math.exp %450 : vector<8x128xf32>
    %cst_144 = arith.constant 1.000000e+00 : f32
    %452 = vector.broadcast %cst_144 : f32 to vector<8x128xf32>
    %453 = arith.addf %452, %451 : vector<8x128xf32>
    %454 = arith.divf %452, %453 : vector<8x128xf32>
    %455 = vector.extract_strided_slice %442 {offsets = [0, 128], sizes = [8, 128], strides = [1, 1]} : vector<8x512xf32> to vector<8x128xf32>
    %456 = arith.negf %455 : vector<8x128xf32>
    %457 = math.exp %456 : vector<8x128xf32>
    %cst_145 = arith.constant 1.000000e+00 : f32
    %458 = vector.broadcast %cst_145 : f32 to vector<8x128xf32>
    %459 = arith.addf %458, %457 : vector<8x128xf32>
    %460 = arith.divf %458, %459 : vector<8x128xf32>
    %461 = vector.extract_strided_slice %442 {offsets = [0, 256], sizes = [8, 128], strides = [1, 1]} : vector<8x512xf32> to vector<8x128xf32>
    %462 = math.tanh %461 : vector<8x128xf32>
    %463 = vector.extract_strided_slice %442 {offsets = [0, 384], sizes = [8, 128], strides = [1, 1]} : vector<8x512xf32> to vector<8x128xf32>
    %464 = arith.negf %463 : vector<8x128xf32>
    %465 = math.exp %464 : vector<8x128xf32>
    %cst_146 = arith.constant 1.000000e+00 : f32
    %466 = vector.broadcast %cst_146 : f32 to vector<8x128xf32>
    %467 = arith.addf %466, %465 : vector<8x128xf32>
    %468 = arith.divf %466, %467 : vector<8x128xf32>
    %469 = arith.mulf %460, %400 : vector<8x128xf32>
    %470 = arith.mulf %454, %462 : vector<8x128xf32>
    %471 = arith.addf %469, %470 : vector<8x128xf32>
    %472 = math.tanh %471 : vector<8x128xf32>
    %473 = arith.mulf %468, %472 : vector<8x128xf32>
    %474 = vector.extract_strided_slice %448 {offsets = [0, 0], sizes = [8, 128], strides = [1, 1]} : vector<8x512xf32> to vector<8x128xf32>
    %475 = arith.negf %474 : vector<8x128xf32>
    %476 = math.exp %475 : vector<8x128xf32>
    %cst_147 = arith.constant 1.000000e+00 : f32
    %477 = vector.broadcast %cst_147 : f32 to vector<8x128xf32>
    %478 = arith.addf %477, %476 : vector<8x128xf32>
    %479 = arith.divf %477, %478 : vector<8x128xf32>
    %480 = vector.extract_strided_slice %448 {offsets = [0, 128], sizes = [8, 128], strides = [1, 1]} : vector<8x512xf32> to vector<8x128xf32>
    %481 = arith.negf %480 : vector<8x128xf32>
    %482 = math.exp %481 : vector<8x128xf32>
    %cst_148 = arith.constant 1.000000e+00 : f32
    %483 = vector.broadcast %cst_148 : f32 to vector<8x128xf32>
    %484 = arith.addf %483, %482 : vector<8x128xf32>
    %485 = arith.divf %483, %484 : vector<8x128xf32>
    %486 = vector.extract_strided_slice %448 {offsets = [0, 256], sizes = [8, 128], strides = [1, 1]} : vector<8x512xf32> to vector<8x128xf32>
    %487 = math.tanh %486 : vector<8x128xf32>
    %488 = vector.extract_strided_slice %448 {offsets = [0, 384], sizes = [8, 128], strides = [1, 1]} : vector<8x512xf32> to vector<8x128xf32>
    %489 = arith.negf %488 : vector<8x128xf32>
    %490 = math.exp %489 : vector<8x128xf32>
    %cst_149 = arith.constant 1.000000e+00 : f32
    %491 = vector.broadcast %cst_149 : f32 to vector<8x128xf32>
    %492 = arith.addf %491, %490 : vector<8x128xf32>
    %493 = arith.divf %491, %492 : vector<8x128xf32>
    %494 = arith.mulf %485, %425 : vector<8x128xf32>
    %495 = arith.mulf %479, %487 : vector<8x128xf32>
    %496 = arith.addf %494, %495 : vector<8x128xf32>
    %497 = math.tanh %496 : vector<8x128xf32>
    %498 = arith.mulf %493, %497 : vector<8x128xf32>
    %499 = arith.index_cast %c6_i32 : i32 to index
    %c0_150 = arith.constant 0 : index
    %c0_151 = arith.constant 0 : index
    %500 = vector.load %arg6[%499, %c0_150, %c0_151] : memref<8x8x256xf32, #tpu.memory_space<vmem>>, vector<1x8x128xf32>
    %501 = vector.shape_cast %500 : vector<1x8x128xf32> to vector<8x128xf32>
    %502 = vector.shape_cast %473 : vector<8x128xf32> to vector<1x8x128xf32>
    tpu.vector_store %arg6[%499, %c0_150, %c0_151], %502 {strides = array<i32>} : memref<8x8x256xf32, #tpu.memory_space<vmem>>, vector<1x8x128xf32>,
    %503 = arith.index_cast %436 : i32 to index
    %c0_152 = arith.constant 0 : index
    %c128_153 = arith.constant 128 : index
    %504 = vector.load %arg6[%503, %c0_152, %c128_153] : memref<8x8x256xf32, #tpu.memory_space<vmem>>, vector<1x8x128xf32>
    %505 = vector.shape_cast %504 : vector<1x8x128xf32> to vector<8x128xf32>
    %506 = vector.shape_cast %498 : vector<8x128xf32> to vector<1x8x128xf32>
    tpu.vector_store %arg6[%503, %c0_152, %c128_153], %506 {strides = array<i32>} : memref<8x8x256xf32, #tpu.memory_space<vmem>>, vector<1x8x128xf32>,
    %c7_i32_154 = arith.constant 7 : i32
    %c7_i32_155 = arith.constant 7 : i32
    %507 = arith.subi %c7_i32_155, %c7_i32_154 : i32
    %508 = arith.index_cast %c7_i32_154 : i32 to index
    %c0_156 = arith.constant 0 : index
    %c0_157 = arith.constant 0 : index
    %509 = vector.load %arg8[%508, %c0_156, %c0_157] : memref<8x8x1024xf32, #tpu.memory_space<vmem>>, vector<1x8x512xf32>
    %510 = vector.shape_cast %509 : vector<1x8x512xf32> to vector<8x512xf32>
    %c0_158 = arith.constant 0 : index
    %c0_159 = arith.constant 0 : index
    %511 = vector.load %arg3[%c0_158, %c0_159] : memref<128x512xf32, #tpu.memory_space<vmem>>, vector<128x512xf32>
    %cst_160 = arith.constant dense<0.000000e+00> : vector<8x512xf32>
    %512 = tpu.matmul %473, %511, %cst_160 {dimension_numbers = #tpu.dot_dimension_numbers<[1], [0], [0], [1], [0, 0, 1, 1], [], []>} : vector<8x128xf32>, vector<128x512xf32>, vector<8x512xf32> -> vector<8x512xf32>
    %513 = arith.addf %510, %512 : vector<8x512xf32>
    %514 = arith.index_cast %507 : i32 to index
    %c0_161 = arith.constant 0 : index
    %c512_162 = arith.constant 512 : index
    %515 = vector.load %arg8[%514, %c0_161, %c512_162] : memref<8x8x1024xf32, #tpu.memory_space<vmem>>, vector<1x8x512xf32>
    %516 = vector.shape_cast %515 : vector<1x8x512xf32> to vector<8x512xf32>
    %c0_163 = arith.constant 0 : index
    %c0_164 = arith.constant 0 : index
    %517 = vector.load %arg4[%c0_163, %c0_164] : memref<128x512xf32, #tpu.memory_space<vmem>>, vector<128x512xf32>
    %cst_165 = arith.constant dense<0.000000e+00> : vector<8x512xf32>
    %518 = tpu.matmul %498, %517, %cst_165 {dimension_numbers = #tpu.dot_dimension_numbers<[1], [0], [0], [1], [0, 0, 1, 1], [], []>} : vector<8x128xf32>, vector<128x512xf32>, vector<8x512xf32> -> vector<8x512xf32>
    %519 = arith.addf %516, %518 : vector<8x512xf32>
    %520 = vector.extract_strided_slice %513 {offsets = [0, 0], sizes = [8, 128], strides = [1, 1]} : vector<8x512xf32> to vector<8x128xf32>
    %521 = arith.negf %520 : vector<8x128xf32>
    %522 = math.exp %521 : vector<8x128xf32>
    %cst_166 = arith.constant 1.000000e+00 : f32
    %523 = vector.broadcast %cst_166 : f32 to vector<8x128xf32>
    %524 = arith.addf %523, %522 : vector<8x128xf32>
    %525 = arith.divf %523, %524 : vector<8x128xf32>
    %526 = vector.extract_strided_slice %513 {offsets = [0, 128], sizes = [8, 128], strides = [1, 1]} : vector<8x512xf32> to vector<8x128xf32>
    %527 = arith.negf %526 : vector<8x128xf32>
    %528 = math.exp %527 : vector<8x128xf32>
    %cst_167 = arith.constant 1.000000e+00 : f32
    %529 = vector.broadcast %cst_167 : f32 to vector<8x128xf32>
    %530 = arith.addf %529, %528 : vector<8x128xf32>
    %531 = arith.divf %529, %530 : vector<8x128xf32>
    %532 = vector.extract_strided_slice %513 {offsets = [0, 256], sizes = [8, 128], strides = [1, 1]} : vector<8x512xf32> to vector<8x128xf32>
    %533 = math.tanh %532 : vector<8x128xf32>
    %534 = vector.extract_strided_slice %513 {offsets = [0, 384], sizes = [8, 128], strides = [1, 1]} : vector<8x512xf32> to vector<8x128xf32>
    %535 = arith.negf %534 : vector<8x128xf32>
    %536 = math.exp %535 : vector<8x128xf32>
    %cst_168 = arith.constant 1.000000e+00 : f32
    %537 = vector.broadcast %cst_168 : f32 to vector<8x128xf32>
    %538 = arith.addf %537, %536 : vector<8x128xf32>
    %539 = arith.divf %537, %538 : vector<8x128xf32>
    %540 = arith.mulf %531, %471 : vector<8x128xf32>
    %541 = arith.mulf %525, %533 : vector<8x128xf32>
    %542 = arith.addf %540, %541 : vector<8x128xf32>
    %543 = math.tanh %542 : vector<8x128xf32>
    %544 = arith.mulf %539, %543 : vector<8x128xf32>
    %545 = vector.extract_strided_slice %519 {offsets = [0, 0], sizes = [8, 128], strides = [1, 1]} : vector<8x512xf32> to vector<8x128xf32>
    %546 = arith.negf %545 : vector<8x128xf32>
    %547 = math.exp %546 : vector<8x128xf32>
    %cst_169 = arith.constant 1.000000e+00 : f32
    %548 = vector.broadcast %cst_169 : f32 to vector<8x128xf32>
    %549 = arith.addf %548, %547 : vector<8x128xf32>
    %550 = arith.divf %548, %549 : vector<8x128xf32>
    %551 = vector.extract_strided_slice %519 {offsets = [0, 128], sizes = [8, 128], strides = [1, 1]} : vector<8x512xf32> to vector<8x128xf32>
    %552 = arith.negf %551 : vector<8x128xf32>
    %553 = math.exp %552 : vector<8x128xf32>
    %cst_170 = arith.constant 1.000000e+00 : f32
    %554 = vector.broadcast %cst_170 : f32 to vector<8x128xf32>
    %555 = arith.addf %554, %553 : vector<8x128xf32>
    %556 = arith.divf %554, %555 : vector<8x128xf32>
    %557 = vector.extract_strided_slice %519 {offsets = [0, 256], sizes = [8, 128], strides = [1, 1]} : vector<8x512xf32> to vector<8x128xf32>
    %558 = math.tanh %557 : vector<8x128xf32>
    %559 = vector.extract_strided_slice %519 {offsets = [0, 384], sizes = [8, 128], strides = [1, 1]} : vector<8x512xf32> to vector<8x128xf32>
    %560 = arith.negf %559 : vector<8x128xf32>
    %561 = math.exp %560 : vector<8x128xf32>
    %cst_171 = arith.constant 1.000000e+00 : f32
    %562 = vector.broadcast %cst_171 : f32 to vector<8x128xf32>
    %563 = arith.addf %562, %561 : vector<8x128xf32>
    %564 = arith.divf %562, %563 : vector<8x128xf32>
    %565 = arith.mulf %556, %496 : vector<8x128xf32>
    %566 = arith.mulf %550, %558 : vector<8x128xf32>
    %567 = arith.addf %565, %566 : vector<8x128xf32>
    %568 = math.tanh %567 : vector<8x128xf32>
    %569 = arith.mulf %564, %568 : vector<8x128xf32>
    %570 = arith.index_cast %c7_i32_154 : i32 to index
    %c0_172 = arith.constant 0 : index
    %c0_173 = arith.constant 0 : index
    %571 = vector.load %arg6[%570, %c0_172, %c0_173] : memref<8x8x256xf32, #tpu.memory_space<vmem>>, vector<1x8x128xf32>
    %572 = vector.shape_cast %571 : vector<1x8x128xf32> to vector<8x128xf32>
    %573 = vector.shape_cast %544 : vector<8x128xf32> to vector<1x8x128xf32>
    tpu.vector_store %arg6[%570, %c0_172, %c0_173], %573 {strides = array<i32>} : memref<8x8x256xf32, #tpu.memory_space<vmem>>, vector<1x8x128xf32>,
    %574 = arith.index_cast %507 : i32 to index
    %c0_174 = arith.constant 0 : index
    %c128_175 = arith.constant 128 : index
    %575 = vector.load %arg6[%574, %c0_174, %c128_175] : memref<8x8x256xf32, #tpu.memory_space<vmem>>, vector<1x8x128xf32>
    %576 = vector.shape_cast %575 : vector<1x8x128xf32> to vector<8x128xf32>
    %577 = vector.shape_cast %569 : vector<8x128xf32> to vector<1x8x128xf32>
    tpu.vector_store %arg6[%574, %c0_174, %c128_175], %577 {strides = array<i32>} : memref<8x8x256xf32, #tpu.memory_space<vmem>>, vector<1x8x128xf32>,
    %c8_i32 = arith.constant 8 : i32
    %c0_176 = arith.constant 0 : index
    %c0_177 = arith.constant 0 : index
    %578 = vector.load %arg7[%c0_176, %c0_177] : memref<8x256xf32, #tpu.memory_space<vmem>>, vector<8x128xf32>
    tpu.vector_store %arg7[%c0_176, %c0_177], %569 {strides = array<i32>} : memref<8x256xf32, #tpu.memory_space<vmem>>, vector<8x128xf32>,
    %c0_178 = arith.constant 0 : index
    %c128_179 = arith.constant 128 : index
    %579 = vector.load %arg7[%c0_178, %c128_179] : memref<8x256xf32, #tpu.memory_space<vmem>>, vector<8x128xf32>
    tpu.vector_store %arg7[%c0_178, %c128_179], %544 {strides = array<i32>} : memref<8x256xf32, #tpu.memory_space<vmem>>, vector<8x128xf32>,
    return
  }
  func.func @transform_0(%arg0: i32) -> (i32, i32, i32) {
    %c0_i32 = arith.constant 0 : i32
    %c0_i32_0 = arith.constant 0 : i32
    %c0_i32_1 = arith.constant 0 : i32
    %c0_i32_2 = arith.constant 0 : i32
    return %c0_i32, %c0_i32_0, %c0_i32_1 : i32, i32, i32
  }
  func.func @transform_1(%arg0: i32) -> (i32, i32) {
    %c0_i32 = arith.constant 0 : i32
    %c0_i32_0 = arith.constant 0 : i32
    %c0_i32_1 = arith.constant 0 : i32
    return %c0_i32, %c0_i32_0 : i32, i32
  }
  func.func @transform_2(%arg0: i32) -> (i32, i32) {
    %c0_i32 = arith.constant 0 : i32
    %c0_i32_0 = arith.constant 0 : i32
    %c0_i32_1 = arith.constant 0 : i32
    return %c0_i32, %c0_i32_0 : i32, i32
  }
  func.func @transform_3(%arg0: i32) -> (i32, i32) {
    %c0_i32 = arith.constant 0 : i32
    %c0_i32_0 = arith.constant 0 : i32
    %c0_i32_1 = arith.constant 0 : i32
    return %c0_i32, %c0_i32_0 : i32, i32
  }
  func.func @transform_4(%arg0: i32) -> (i32, i32) {
    %c0_i32 = arith.constant 0 : i32
    %c0_i32_0 = arith.constant 0 : i32
    %c0_i32_1 = arith.constant 0 : i32
    return %c0_i32, %c0_i32_0 : i32, i32
  }
  func.func @transform_5(%arg0: i32) -> (i32, i32, i32) {
    %c0_i32 = arith.constant 0 : i32
    %c0_i32_0 = arith.constant 0 : i32
    %c0_i32_1 = arith.constant 0 : i32
    %c0_i32_2 = arith.constant 0 : i32
    return %c0_i32, %c0_i32_0, %c0_i32_1 : i32, i32, i32
  }
  func.func @transform_6(%arg0: i32) -> (i32, i32) {
    %c0_i32 = arith.constant 0 : i32
    %c0_i32_0 = arith.constant 0 : i32
    %c0_i32_1 = arith.constant 0 : i32
    return %c0_i32, %c0_i32_0 : i32, i32
  }
}

</mosaic_0001>

<llo_original>
// kernel: tpu_custom_call.1
$region0: #{tpu_custom_call.1}
  #allocation0 [shape = 'u32[]', space=smem, size = 0x4, offset = 0x4, fixed_abs, tag = 'smem constant byte address 0x4 - core index']
  #allocation1 [shape = 'u32[144,128]{1,0:T(1,128)}', space=vmem, size = 0x12000, scoped, tag = 'internal scratch']
  #allocation2 [shape = 'f32[8,8,1024]{2,1,0:T(8,128)}', space=vmem, size = 0x40000, scoped, tag = 'scratch operand']
  %s0 = inlined_call_operand.hbm [shape: f32[8,8,128], index: 0, kind: input, shape index: {}]
  %s1 = inlined_call_operand.hbm [shape: f32[128,1024], index: 1, kind: input, shape index: {}]
  %s2 = inlined_call_operand.hbm [shape: f32[128,512], index: 2, kind: input, shape index: {}]
  %s3 = inlined_call_operand.hbm [shape: f32[128,512], index: 3, kind: input, shape index: {}]
  %s4 = inlined_call_operand.hbm [shape: f32[1,1024], index: 4, kind: input, shape index: {}]
  %s5 = inlined_call_operand.hbm [shape: f32[8,8,256], index: 5, kind: output, shape index: {0}]
  %s6 = inlined_call_operand.hbm [shape: f32[8,256], index: 6, kind: output, shape index: {1}]
  %7 = xla_tuple %s5, %s6
  %s8 = sld [smem:[#allocation0]]
  $region58: #{tpu_custom_call.1} parent=0
    _
  %s10 = ssub.s32 1, %s8
  %s11 = scalar_select 0, %s10, %s8
  $region1: #{tpu_custom_call.1} parent=0
    #allocation3 [shape = 'u8[32768]{0}', space=vmem, size = 0x8000, scoped, tag = 'input window, operand 0, single buffered']
    #allocation4 [shape = 's32[1]{0}', space=sflag, size = 0x4, scoped, tag = 'scoped memory for tpu_custom_call.1']
    #allocation5 [shape = 's32[1]{0}', space=sflag, size = 0x4, scoped, tag = 'scoped memory for tpu_custom_call.1']
    #allocation6 [shape = 'u8[524288]{0}', space=vmem, size = 0x80000, scoped, tag = 'input window, operand 1, single buffered']
    #allocation7 [shape = 's32[1]{0}', space=sflag, size = 0x4, scoped, tag = 'scoped memory for tpu_custom_call.1']
    #allocation8 [shape = 'u8[262144]{0}', space=vmem, size = 0x40000, scoped, tag = 'input window, operand 2, single buffered']
    #allocation9 [shape = 'u8[262144]{0}', space=vmem, size = 0x40000, scoped, tag = 'input window, operand 3, single buffered']
    #allocation10 [shape = 's32[1]{0}', space=sflag, size = 0x4, scoped, tag = 'scoped memory for tpu_custom_call.1']
    #allocation11 [shape = 'u8[4096]{0}', space=vmem, size = 0x1000, scoped, tag = 'input window, operand 4, single buffered']
    #allocation12 [shape = 'u8[65536]{0}', space=vmem, size = 0x10000, scoped, tag = 'output window, operand 0, single buffered']
    #allocation13 [shape = 'u8[8192]{0}', space=vmem, size = 0x2000, scoped, tag = 'output window, operand 1, single buffered']
    #allocation14 [shape = 's32[1]{0}', space=sflag, size = 0x4, scoped, tag = 'scoped memory for tpu_custom_call.1']
    %12 = vsyncpa [#allocation4], 0
    %13 = vsyncpa [#allocation7], 0
    %14 = vsyncpa [#allocation10], 0
    %15 = vsyncpa [#allocation5], 0
    %16 = vsyncpa [#allocation14], 0
    // Predicated region
    $region2: #{tpu_custom_call.1} parent=1 // pred_check
      _
    $region3: #{tpu_custom_call.1} parent=1 // pred_check_branch
      %18 = sbr.rel (0) target = $region5
    $region4: #{tpu_custom_call.1} parent=1 // pred_region
      %s20 = ssub.s32 1024, 1024
      %21 = vsyncadd [#allocation4], %s20
      %s22 = sshll.u32 [#allocation3], 4
      %s23 = int_to_ptr.vmem [resolvable:$true] %s22
      %28 = dma.hbm_to_vmem [thread:$0]  %s0, 1024, %s23, [#allocation4], 128, 128, 8
    $region5: #{tpu_custom_call.1} parent=1 // pred_fallthru
      _
    // Predicated region
    $region6: #{tpu_custom_call.1} parent=1 // pred_check
      _
    $region7: #{tpu_custom_call.1} parent=1 // pred_check_branch
      %30 = sbr.rel (0) target = $region9
    $region8: #{tpu_custom_call.1} parent=1 // pred_region
      %s32 = ssub.s32 16384, 16384
      %33 = vsyncadd [#allocation7], %s32
      %s34 = sshll.u32 [#allocation6], 4
      %s35 = int_to_ptr.vmem [resolvable:$true] %s34
      %40 = dma.hbm_to_vmem [thread:$0]  %s1, 16384, %s35, [#allocation7], 1024, 1024, 64
    $region9: #{tpu_custom_call.1} parent=1 // pred_fallthru
      _
    // Predicated region
    $region10: #{tpu_custom_call.1} parent=1 // pred_check
      _
    $region11: #{tpu_custom_call.1} parent=1 // pred_check_branch
      %42 = sbr.rel (0) target = $region13
    $region12: #{tpu_custom_call.1} parent=1 // pred_region
      %s44 = ssub.s32 8192, 8192
      %45 = vsyncadd [#allocation7], %s44
      %s46 = sshll.u32 [#allocation8], 4
      %s47 = int_to_ptr.vmem [resolvable:$true] %s46
      %52 = dma.hbm_to_vmem [thread:$0]  %s2, 8192, %s47, [#allocation7], 512, 512, 32
    $region13: #{tpu_custom_call.1} parent=1 // pred_fallthru
      _
    // Predicated region
    $region14: #{tpu_custom_call.1} parent=1 // pred_check
      _
    $region15: #{tpu_custom_call.1} parent=1 // pred_check_branch
      %54 = sbr.rel (0) target = $region17
    $region16: #{tpu_custom_call.1} parent=1 // pred_region
      %s56 = ssub.s32 8192, 8192
      %57 = vsyncadd [#allocation10], %s56
      %s58 = sshll.u32 [#allocation9], 4
      %s59 = int_to_ptr.vmem [resolvable:$true] %s58
      %64 = dma.hbm_to_vmem [thread:$0]  %s3, 8192, %s59, [#allocation10], 512, 512, 32
    $region17: #{tpu_custom_call.1} parent=1 // pred_fallthru
      _
    // Predicated region
    $region18: #{tpu_custom_call.1} parent=1 // pred_check
      _
    $region19: #{tpu_custom_call.1} parent=1 // pred_check_branch
      %66 = sbr.rel (0) target = $region21
    $region20: #{tpu_custom_call.1} parent=1 // pred_region
      %s68 = ssub.s32 128, 128
      %69 = vsyncadd [#allocation10], %s68
      %s71 = sshll.u32 [#allocation11], 4
      %s72 = int_to_ptr.vmem [resolvable:$true] %s71
      %74 = dma.hbm_to_vmem [thread:$0]  %s4, 128, %s72, [#allocation10]
    $region21: #{tpu_custom_call.1} parent=1 // pred_fallthru
      _
    // Predicated region
    $region22: #{tpu_custom_call.1} parent=1 // pred_check
      _
    $region23: #{tpu_custom_call.1} parent=1 // pred_check_branch
      %76 = sbr.rel (0) target = $region25
    $region24: #{tpu_custom_call.1} parent=1 // pred_region
      %77 = dma.done [#allocation4], 1024
    $region25: #{tpu_custom_call.1} parent=1 // pred_fallthru
      _
    // Predicated region
    $region26: #{tpu_custom_call.1} parent=1 // pred_check
      _
    $region27: #{tpu_custom_call.1} parent=1 // pred_check_branch
      %79 = sbr.rel (0) target = $region29
    $region28: #{tpu_custom_call.1} parent=1 // pred_region
      %80 = dma.done [#allocation7], 16384
    $region29: #{tpu_custom_call.1} parent=1 // pred_fallthru
      _
    // Predicated region
    $region30: #{tpu_custom_call.1} parent=1 // pred_check
      _
    $region31: #{tpu_custom_call.1} parent=1 // pred_check_branch
      %82 = sbr.rel (0) target = $region33
    $region32: #{tpu_custom_call.1} parent=1 // pred_region
      %83 = dma.done [#allocation7], 8192
    $region33: #{tpu_custom_call.1} parent=1 // pred_fallthru
      _
    // Predicated region
    $region34: #{tpu_custom_call.1} parent=1 // pred_check
      _
    $region35: #{tpu_custom_call.1} parent=1 // pred_check_branch
      %85 = sbr.rel (0) target = $region37
    $region36: #{tpu_custom_call.1} parent=1 // pred_region
      %86 = dma.done [#allocation10], 8192
    $region37: #{tpu_custom_call.1} parent=1 // pred_fallthru
      _
    // Predicated region
    $region38: #{tpu_custom_call.1} parent=1 // pred_check
      _
    $region39: #{tpu_custom_call.1} parent=1 // pred_check_branch
      %88 = sbr.rel (0) target = $region41
    $region40: #{tpu_custom_call.1} parent=1 // pred_region
      %89 = dma.done [#allocation10], 128
    $region41: #{tpu_custom_call.1} parent=1 // pred_fallthru
      _
    %v90 = vld [vmem:[#allocation3] sm:$0xff]
    %v91 = vld [vmem:[#allocation3 + $0x8] sm:$0xff]
    %v92 = vld [vmem:[#allocation3 + $0x10] sm:$0xff]
    %v93 = vld [vmem:[#allocation3 + $0x18] sm:$0xff]
    %v94 = vld [vmem:[#allocation3 + $0x20] sm:$0xff]
    %v95 = vld [vmem:[#allocation3 + $0x28] sm:$0xff]
    %v96 = vld [vmem:[#allocation3 + $0x30] sm:$0xff]
    %v97 = vld [vmem:[#allocation3 + $0x38] sm:$0xff]
    %v98 = vld [vmem:[#allocation6] sm:$0xff]
    %v99 = vld [vmem:[#allocation6 + $0x8] sm:$0xff]
    %v100 = vld [vmem:[#allocation6 + $0x10] sm:$0xff]
    %v101 = vld [vmem:[#allocation6 + $0x18] sm:$0xff]
    %v102 = vld [vmem:[#allocation6 + $0x20] sm:$0xff]
    %v103 = vld [vmem:[#allocation6 + $0x28] sm:$0xff]
    %v104 = vld [vmem:[#allocation6 + $0x30] sm:$0xff]
    %v105 = vld [vmem:[#allocation6 + $0x38] sm:$0xff]
    %v106 = vld [vmem:[#allocation6 + $0x40] sm:$0xff]
    %v107 = vld [vmem:[#allocation6 + $0x48] sm:$0xff]
    %v108 = vld [vmem:[#allocation6 + $0x50] sm:$0xff]
    %v109 = vld [vmem:[#allocation6 + $0x58] sm:$0xff]
    %v110 = vld [vmem:[#allocation6 + $0x60] sm:$0xff]
    %v111 = vld [vmem:[#allocation6 + $0x68] sm:$0xff]
    %v112 = vld [vmem:[#allocation6 + $0x70] sm:$0xff]
    %v113 = vld [vmem:[#allocation6 + $0x78] sm:$0xff]
    %v114 = vld [vmem:[#allocation6 + $0x80] sm:$0xff]
    %v115 = vld [vmem:[#allocation6 + $0x88] sm:$0xff]
    %v116 = vld [vmem:[#allocation6 + $0x90] sm:$0xff]
    %v117 = vld [vmem:[#allocation6 + $0x98] sm:$0xff]
    %v118 = vld [vmem:[#allocation6 + $0xa0] sm:$0xff]
    %v119 = vld [vmem:[#allocation6 + $0xa8] sm:$0xff]
    %v120 = vld [vmem:[#allocation6 + $0xb0] sm:$0xff]
    %v121 = vld [vmem:[#allocation6 + $0xb8] sm:$0xff]
    %v122 = vld [vmem:[#allocation6 + $0xc0] sm:$0xff]
    %v123 = vld [vmem:[#allocation6 + $0xc8] sm:$0xff]
    %v124 = vld [vmem:[#allocation6 + $0xd0] sm:$0xff]
    %v125 = vld [vmem:[#allocation6 + $0xd8] sm:$0xff]
    %v126 = vld [vmem:[#allocation6 + $0xe0] sm:$0xff]
    %v127 = vld [vmem:[#allocation6 + $0xe8] sm:$0xff]
    %v128 = vld [vmem:[#allocation6 + $0xf0] sm:$0xff]
    %v129 = vld [vmem:[#allocation6 + $0xf8] sm:$0xff]
    %v130 = vld [vmem:[#allocation6 + $0x100] sm:$0xff]
    %v131 = vld [vmem:[#allocation6 + $0x108] sm:$0xff]
    %v132 = vld [vmem:[#allocation6 + $0x110] sm:$0xff]
    %v133 = vld [vmem:[#allocation6 + $0x118] sm:$0xff]
    %v134 = vld [vmem:[#allocation6 + $0x120] sm:$0xff]
    %v135 = vld [vmem:[#allocation6 + $0x128] sm:$0xff]
    %v136 = vld [vmem:[#allocation6 + $0x130] sm:$0xff]
    %v137 = vld [vmem:[#allocation6 + $0x138] sm:$0xff]
    %v138 = vld [vmem:[#allocation6 + $0x140] sm:$0xff]
    %v139 = vld [vmem:[#allocation6 + $0x148] sm:$0xff]
    %v140 = vld [vmem:[#allocation6 + $0x150] sm:$0xff]
    %v141 = vld [vmem:[#allocation6 + $0x158] sm:$0xff]
    %v142 = vld [vmem:[#allocation6 + $0x160] sm:$0xff]
    %v143 = vld [vmem:[#allocation6 + $0x168] sm:$0xff]
    %v144 = vld [vmem:[#allocation6 + $0x170] sm:$0xff]
    %v145 = vld [vmem:[#allocation6 + $0x178] sm:$0xff]
    %v146 = vld [vmem:[#allocation6 + $0x180] sm:$0xff]
    %v147 = vld [vmem:[#allocation6 + $0x188] sm:$0xff]
    %v148 = vld [vmem:[#allocation6 + $0x190] sm:$0xff]
    %v149 = vld [vmem:[#allocation6 + $0x198] sm:$0xff]
    %v150 = vld [vmem:[#allocation6 + $0x1a0] sm:$0xff]
    %v151 = vld [vmem:[#allocation6 + $0x1a8] sm:$0xff]
    %v152 = vld [vmem:[#allocation6 + $0x1b0] sm:$0xff]
    %v153 = vld [vmem:[#allocation6 + $0x1b8] sm:$0xff]
    %v154 = vld [vmem:[#allocation6 + $0x1c0] sm:$0xff]
    %v155 = vld [vmem:[#allocation6 + $0x1c8] sm:$0xff]
    %v156 = vld [vmem:[#allocation6 + $0x1d0] sm:$0xff]
    %v157 = vld [vmem:[#allocation6 + $0x1d8] sm:$0xff]
    %v158 = vld [vmem:[#allocation6 + $0x1e0] sm:$0xff]
    %v159 = vld [vmem:[#allocation6 + $0x1e8] sm:$0xff]
    %v160 = vld [vmem:[#allocation6 + $0x1f0] sm:$0xff]
    %v161 = vld [vmem:[#allocation6 + $0x1f8] sm:$0xff]
    %v162 = vld [vmem:[#allocation6 + $0x200] sm:$0xff]
    %v163 = vld [vmem:[#allocation6 + $0x208] sm:$0xff]
    %v164 = vld [vmem:[#allocation6 + $0x210] sm:$0xff]
    %v165 = vld [vmem:[#allocation6 + $0x218] sm:$0xff]
    %v166 = vld [vmem:[#allocation6 + $0x220] sm:$0xff]
    %v167 = vld [vmem:[#allocation6 + $0x228] sm:$0xff]
    %v168 = vld [vmem:[#allocation6 + $0x230] sm:$0xff]
    %v169 = vld [vmem:[#allocation6 + $0x238] sm:$0xff]
    %v170 = vld [vmem:[#allocation6 + $0x240] sm:$0xff]
    %v171 = vld [vmem:[#allocation6 + $0x248] sm:$0xff]
    %v172 = vld [vmem:[#allocation6 + $0x250] sm:$0xff]
    %v173 = vld [vmem:[#allocation6 + $0x258] sm:$0xff]
    %v174 = vld [vmem:[#allocation6 + $0x260] sm:$0xff]
    %v175 = vld [vmem:[#allocation6 + $0x268] sm:$0xff]
    %v176 = vld [vmem:[#allocation6 + $0x270] sm:$0xff]
    %v177 = vld [vmem:[#allocation6 + $0x278] sm:$0xff]
    %v178 = vld [vmem:[#allocation6 + $0x280] sm:$0xff]
    %v179 = vld [vmem:[#allocation6 + $0x288] sm:$0xff]
    %v180 = vld [vmem:[#allocation6 + $0x290] sm:$0xff]
    %v181 = vld [vmem:[#allocation6 + $0x298] sm:$0xff]
    %v182 = vld [vmem:[#allocation6 + $0x2a0] sm:$0xff]
    %v183 = vld [vmem:[#allocation6 + $0x2a8] sm:$0xff]
    %v184 = vld [vmem:[#allocation6 + $0x2b0] sm:$0xff]
    %v185 = vld [vmem:[#allocation6 + $0x2b8] sm:$0xff]
    %v186 = vld [vmem:[#allocation6 + $0x2c0] sm:$0xff]
    %v187 = vld [vmem:[#allocation6 + $0x2c8] sm:$0xff]
    %v188 = vld [vmem:[#allocation6 + $0x2d0] sm:$0xff]
    %v189 = vld [vmem:[#allocation6 + $0x2d8] sm:$0xff]
    %v190 = vld [vmem:[#allocation6 + $0x2e0] sm:$0xff]
    %v191 = vld [vmem:[#allocation6 + $0x2e8] sm:$0xff]
    %v192 = vld [vmem:[#allocation6 + $0x2f0] sm:$0xff]
    %v193 = vld [vmem:[#allocation6 + $0x2f8] sm:$0xff]
    %v194 = vld [vmem:[#allocation6 + $0x300] sm:$0xff]
    %v195 = vld [vmem:[#allocation6 + $0x308] sm:$0xff]
    %v196 = vld [vmem:[#allocation6 + $0x310] sm:$0xff]
    %v197 = vld [vmem:[#allocation6 + $0x318] sm:$0xff]
    %v198 = vld [vmem:[#allocation6 + $0x320] sm:$0xff]
    %v199 = vld [vmem:[#allocation6 + $0x328] sm:$0xff]
    %v200 = vld [vmem:[#allocation6 + $0x330] sm:$0xff]
    %v201 = vld [vmem:[#allocation6 + $0x338] sm:$0xff]
    %v202 = vld [vmem:[#allocation6 + $0x340] sm:$0xff]
    %v203 = vld [vmem:[#allocation6 + $0x348] sm:$0xff]
    %v204 = vld [vmem:[#allocation6 + $0x350] sm:$0xff]
    %v205 = vld [vmem:[#allocation6 + $0x358] sm:$0xff]
    %v206 = vld [vmem:[#allocation6 + $0x360] sm:$0xff]
    %v207 = vld [vmem:[#allocation6 + $0x368] sm:$0xff]
    %v208 = vld [vmem:[#allocation6 + $0x370] sm:$0xff]
    %v209 = vld [vmem:[#allocation6 + $0x378] sm:$0xff]
    %v210 = vld [vmem:[#allocation6 + $0x380] sm:$0xff]
    %v211 = vld [vmem:[#allocation6 + $0x388] sm:$0xff]
    %v212 = vld [vmem:[#allocation6 + $0x390] sm:$0xff]
    %v213 = vld [vmem:[#allocation6 + $0x398] sm:$0xff]
    %v214 = vld [vmem:[#allocation6 + $0x3a0] sm:$0xff]
    %v215 = vld [vmem:[#allocation6 + $0x3a8] sm:$0xff]
    %v216 = vld [vmem:[#allocation6 + $0x3b0] sm:$0xff]
    %v217 = vld [vmem:[#allocation6 + $0x3b8] sm:$0xff]
    %v218 = vld [vmem:[#allocation6 + $0x3c0] sm:$0xff]
    %v219 = vld [vmem:[#allocation6 + $0x3c8] sm:$0xff]
    %v220 = vld [vmem:[#allocation6 + $0x3d0] sm:$0xff]
    %v221 = vld [vmem:[#allocation6 + $0x3d8] sm:$0xff]
    %v222 = vld [vmem:[#allocation6 + $0x3e0] sm:$0xff]
    %v223 = vld [vmem:[#allocation6 + $0x3e8] sm:$0xff]
    %v224 = vld [vmem:[#allocation6 + $0x3f0] sm:$0xff]
    %v225 = vld [vmem:[#allocation6 + $0x3f8] sm:$0xff]
    %v226 = vld [vmem:[#allocation11] sm:$0xff]
    %v228 = vlaneseq
    %v229 = vshrl.u32 %v228, 7
    %v230 = vsub.s32 0, %v229
    %v231 = vrot.slane %v226, %v230
    %v232 = vlaneseq
    %v233 = vshrl.u32 %v232, 7
    %v234 = vsub.s32 1, %v233
    %v235 = vrot.slane %v226, %v234
    %v236 = vlaneseq
    %v237 = vshrl.u32 %v236, 7
    %v238 = vsub.s32 2, %v237
    %v239 = vrot.slane %v226, %v238
    %v240 = vlaneseq
    %v241 = vshrl.u32 %v240, 7
    %v242 = vsub.s32 3, %v241
    %v243 = vrot.slane %v226, %v242
    %v244 = vlaneseq
    %v245 = vshrl.u32 %v244, 7
    %v246 = vsub.s32 4, %v245
    %v247 = vrot.slane %v226, %v246
    %v248 = vlaneseq
    %v249 = vshrl.u32 %v248, 7
    %v250 = vsub.s32 5, %v249
    %v251 = vrot.slane %v226, %v250
    %v252 = vlaneseq
    %v253 = vshrl.u32 %v252, 7
    %v254 = vsub.s32 6, %v253
    %v255 = vrot.slane %v226, %v254
    %v256 = vlaneseq
    %v257 = vshrl.u32 %v256, 7
    %v258 = vsub.s32 7, %v257
    %v259 = vrot.slane %v226, %v258
    %268 = vmatprep.subr.mxu0 %v219
    %269 = vmatpush1.msra.mxu0 %v218
    %270 = vmatprep.subr.mxu0 %v211
    %271 = vmatpush1.msra.mxu0 %v210
    %272 = vmatprep.subr.mxu0 %v203
    %273 = vmatpush1.msra.mxu0 %v202
    %274 = vmatprep.subr.mxu0 %v195
    %275 = vmatpush1.msra.mxu0 %v194
    %276 = vmatprep.subr.mxu0 %v187
    %277 = vmatpush1.msra.mxu0 %v186
    %278 = vmatprep.subr.mxu0 %v179
    %279 = vmatpush1.msra.mxu0 %v178
    %280 = vmatprep.subr.mxu0 %v171
    %281 = vmatpush1.msra.mxu0 %v170
    %282 = vmatprep.subr.mxu0 %v163
    %283 = vmatpush1.msra.mxu0 %v162
    %284 = vmatprep.subr.mxu0 %v155
    %285 = vmatpush1.msra.mxu0 %v154
    %286 = vmatprep.subr.mxu0 %v147
    %287 = vmatpush1.msra.mxu0 %v146
    %288 = vmatprep.subr.mxu0 %v139
    %289 = vmatpush1.msra.mxu0 %v138
    %290 = vmatprep.subr.mxu0 %v131
    %291 = vmatpush1.msra.mxu0 %v130
    %292 = vmatprep.subr.mxu0 %v123
    %293 = vmatpush1.msra.mxu0 %v122
    %294 = vmatprep.subr.mxu0 %v115
    %295 = vmatpush1.msra.mxu0 %v114
    %296 = vmatprep.subr.mxu0 %v107
    %297 = vmatpush1.msra.mxu0 %v106
    %298 = vmatprep.subr.mxu0 %v99
    %299 = vmatpush1.msra.mxu0 %v98
    %300 = vmatprep.subr.mxu0 0.0
    %301 = vmatpush2.msra.mxu0 0.0
    %302 = vmatprep.subr.mxu0 0.0
    %303 = vmatpush2.msra.mxu0 0.0
    %304 = vmatprep.subr.mxu0 0.0
    %305 = vmatpush2.msra.mxu0 0.0
    %306 = vmatprep.subr.mxu0 0.0
    %307 = vmatpush2.msra.mxu0 0.0
    %308 = vmatprep.subr.mxu0 0.0
    %309 = vmatpush2.msra.mxu0 0.0
    %310 = vmatprep.subr.mxu0 0.0
    %311 = vmatpush2.msra.mxu0 0.0
    %312 = vmatprep.subr.mxu0 0.0
    %313 = vmatpush2.msra.mxu0 0.0
    %314 = vmatprep.subr.mxu0 0.0
    %315 = vmatpush2.msra.mxu0 0.0
    %316 = vmatprep.subr.mxu0 0.0
    %317 = vmatpush2.msra.mxu0 0.0
    %318 = vmatprep.subr.mxu0 0.0
    %319 = vmatpush2.msra.mxu0 0.0
    %320 = vmatprep.subr.mxu0 0.0
    %321 = vmatpush2.msra.mxu0 0.0
    %322 = vmatprep.subr.mxu0 0.0
    %323 = vmatpush2.msra.mxu0 0.0
    %324 = vmatprep.subr.mxu0 0.0
    %325 = vmatpush2.msra.mxu0 0.0
    %326 = vmatprep.subr.mxu0 0.0
    %327 = vmatpush2.msra.mxu0 0.0
    %328 = vmatprep.subr.mxu0 0.0
    %329 = vmatpush2.msra.mxu0 0.0
    %330 = vmatprep.subr.mxu0 0.0
    %331 = vmatpush2.msra.mxu0 0.0
    %332 = vmatprep.mubr.f32.mxu0 0.0
    %333 = vmatmul.mubr.f32.gmra.mxu0 %v90
    %v334 = vpop.f32.mrf.mxu0
    %v335 = vadd.f32 %v231, %v334
    %v336 = vpop.f32.mrf.mxu0
    %v337 = vadd.f32 %v235, %v336
    %338 = vmatprep.mubr.f32.mxu0 0.0
    %339 = vmatmul.mubr.f32.gmra.mxu0 %v91
    %v340 = vpop.f32.mrf.mxu0
    %v341 = vadd.f32 %v231, %v340
    %v342 = vpop.f32.mrf.mxu0
    %v343 = vadd.f32 %v235, %v342
    %344 = vmatprep.mubr.f32.mxu0 0.0
    %345 = vmatmul.mubr.f32.gmra.mxu0 %v92
    %v346 = vpop.f32.mrf.mxu0
    %v347 = vadd.f32 %v231, %v346
    %v348 = vpop.f32.mrf.mxu0
    %v349 = vadd.f32 %v235, %v348
    %350 = vmatprep.mubr.f32.mxu0 0.0
    %351 = vmatmul.mubr.f32.gmra.mxu0 %v93
    %v352 = vpop.f32.mrf.mxu0
    %v353 = vadd.f32 %v231, %v352
    %v354 = vpop.f32.mrf.mxu0
    %v355 = vadd.f32 %v235, %v354
    %356 = vmatprep.mubr.f32.mxu0 0.0
    %357 = vmatmul.mubr.f32.gmra.mxu0 %v94
    %v358 = vpop.f32.mrf.mxu0
    %v359 = vadd.f32 %v231, %v358
    %v360 = vpop.f32.mrf.mxu0
    %v361 = vadd.f32 %v235, %v360
    %362 = vmatprep.mubr.f32.mxu0 0.0
    %363 = vmatmul.mubr.f32.gmra.mxu0 %v95
    %v364 = vpop.f32.mrf.mxu0
    %v365 = vadd.f32 %v231, %v364
    %v366 = vpop.f32.mrf.mxu0
    %v367 = vadd.f32 %v235, %v366
    %368 = vmatprep.mubr.f32.mxu0 0.0
    %369 = vmatmul.mubr.f32.gmra.mxu0 %v96
    %v370 = vpop.f32.mrf.mxu0
    %v371 = vadd.f32 %v231, %v370
    %v372 = vpop.f32.mrf.mxu0
    %v373 = vadd.f32 %v235, %v372
    %374 = vmatprep.mubr.f32.mxu0 0.0
    %375 = vmatmul.mubr.f32.gmra.mxu0 %v97
    %v376 = vpop.f32.mrf.mxu0
    %v377 = vadd.f32 %v231, %v376
    %v378 = vpop.f32.mrf.mxu0
    %v379 = vadd.f32 %v235, %v378
    %380 = vdwg.mxu0
    %381 = vmatprep.subr.mxu0 %v221
    %382 = vmatpush1.msra.mxu0 %v220
    %383 = vmatprep.subr.mxu0 %v213
    %384 = vmatpush1.msra.mxu0 %v212
    %385 = vmatprep.subr.mxu0 %v205
    %386 = vmatpush1.msra.mxu0 %v204
    %387 = vmatprep.subr.mxu0 %v197
    %388 = vmatpush1.msra.mxu0 %v196
    %389 = vmatprep.subr.mxu0 %v189
    %390 = vmatpush1.msra.mxu0 %v188
    %391 = vmatprep.subr.mxu0 %v181
    %392 = vmatpush1.msra.mxu0 %v180
    %393 = vmatprep.subr.mxu0 %v173
    %394 = vmatpush1.msra.mxu0 %v172
    %395 = vmatprep.subr.mxu0 %v165
    %396 = vmatpush1.msra.mxu0 %v164
    %397 = vmatprep.subr.mxu0 %v157
    %398 = vmatpush1.msra.mxu0 %v156
    %399 = vmatprep.subr.mxu0 %v149
    %400 = vmatpush1.msra.mxu0 %v148
    %401 = vmatprep.subr.mxu0 %v141
    %402 = vmatpush1.msra.mxu0 %v140
    %403 = vmatprep.subr.mxu0 %v133
    %404 = vmatpush1.msra.mxu0 %v132
    %405 = vmatprep.subr.mxu0 %v125
    %406 = vmatpush1.msra.mxu0 %v124
    %407 = vmatprep.subr.mxu0 %v117
    %408 = vmatpush1.msra.mxu0 %v116
    %409 = vmatprep.subr.mxu0 %v109
    %410 = vmatpush1.msra.mxu0 %v108
    %411 = vmatprep.subr.mxu0 %v101
    %412 = vmatpush1.msra.mxu0 %v100
    %413 = vmatprep.subr.mxu0 0.0
    %414 = vmatpush2.msra.mxu0 0.0
    %415 = vmatprep.subr.mxu0 0.0
    %416 = vmatpush2.msra.mxu0 0.0
    %417 = vmatprep.subr.mxu0 0.0
    %418 = vmatpush2.msra.mxu0 0.0
    %419 = vmatprep.subr.mxu0 0.0
    %420 = vmatpush2.msra.mxu0 0.0
    %421 = vmatprep.subr.mxu0 0.0
    %422 = vmatpush2.msra.mxu0 0.0
    %423 = vmatprep.subr.mxu0 0.0
    %424 = vmatpush2.msra.mxu0 0.0
    %425 = vmatprep.subr.mxu0 0.0
    %426 = vmatpush2.msra.mxu0 0.0
    %427 = vmatprep.subr.mxu0 0.0
    %428 = vmatpush2.msra.mxu0 0.0
    %429 = vmatprep.subr.mxu0 0.0
    %430 = vmatpush2.msra.mxu0 0.0
    %431 = vmatprep.subr.mxu0 0.0
    %432 = vmatpush2.msra.mxu0 0.0
    %433 = vmatprep.subr.mxu0 0.0
    %434 = vmatpush2.msra.mxu0 0.0
    %435 = vmatprep.subr.mxu0 0.0
    %436 = vmatpush2.msra.mxu0 0.0
    %437 = vmatprep.subr.mxu0 0.0
    %438 = vmatpush2.msra.mxu0 0.0
    %439 = vmatprep.subr.mxu0 0.0
    %440 = vmatpush2.msra.mxu0 0.0
    %441 = vmatprep.subr.mxu0 0.0
    %442 = vmatpush2.msra.mxu0 0.0
    %443 = vmatprep.subr.mxu0 0.0
    %444 = vmatpush2.msra.mxu0 0.0
    %445 = vmatprep.mubr.f32.mxu0 0.0
    %446 = vmatmul.mubr.f32.gmra.mxu0 %v90
    %v447 = vpop.f32.mrf.mxu0
    %v448 = vadd.f32 %v239, %v447
    %v449 = vpop.f32.mrf.mxu0
    %v450 = vadd.f32 %v243, %v449
    %451 = vmatprep.mubr.f32.mxu0 0.0
    %452 = vmatmul.mubr.f32.gmra.mxu0 %v91
    %v453 = vpop.f32.mrf.mxu0
    %v454 = vadd.f32 %v239, %v453
    %v455 = vpop.f32.mrf.mxu0
    %v456 = vadd.f32 %v243, %v455
    %457 = vmatprep.mubr.f32.mxu0 0.0
    %458 = vmatmul.mubr.f32.gmra.mxu0 %v92
    %v459 = vpop.f32.mrf.mxu0
    %v460 = vadd.f32 %v239, %v459
    %v461 = vpop.f32.mrf.mxu0
    %v462 = vadd.f32 %v243, %v461
    %463 = vmatprep.mubr.f32.mxu0 0.0
    %464 = vmatmul.mubr.f32.gmra.mxu0 %v93
    %v465 = vpop.f32.mrf.mxu0
    %v466 = vadd.f32 %v239, %v465
    %v467 = vpop.f32.mrf.mxu0
    %v468 = vadd.f32 %v243, %v467
    %469 = vmatprep.mubr.f32.mxu0 0.0
    %470 = vmatmul.mubr.f32.gmra.mxu0 %v94
    %v471 = vpop.f32.mrf.mxu0
    %v472 = vadd.f32 %v239, %v471
    %v473 = vpop.f32.mrf.mxu0
    %v474 = vadd.f32 %v243, %v473
    %475 = vmatprep.mubr.f32.mxu0 0.0
    %476 = vmatmul.mubr.f32.gmra.mxu0 %v95
    %v477 = vpop.f32.mrf.mxu0
    %v478 = vadd.f32 %v239, %v477
    %v479 = vpop.f32.mrf.mxu0
    %v480 = vadd.f32 %v243, %v479
    %481 = vmatprep.mubr.f32.mxu0 0.0
    %482 = vmatmul.mubr.f32.gmra.mxu0 %v96
    %v483 = vpop.f32.mrf.mxu0
    %v484 = vadd.f32 %v239, %v483
    %v485 = vpop.f32.mrf.mxu0
    %v486 = vadd.f32 %v243, %v485
    %487 = vmatprep.mubr.f32.mxu0 0.0
    %488 = vmatmul.mubr.f32.gmra.mxu0 %v97
    %v489 = vpop.f32.mrf.mxu0
    %v490 = vadd.f32 %v239, %v489
    %v491 = vpop.f32.mrf.mxu0
    %v492 = vadd.f32 %v243, %v491
    %493 = vdwg.mxu0
    %494 = vmatprep.subr.mxu0 %v223
    %495 = vmatpush1.msra.mxu0 %v222
    %496 = vmatprep.subr.mxu0 %v215
    %497 = vmatpush1.msra.mxu0 %v214
    %498 = vmatprep.subr.mxu0 %v207
    %499 = vmatpush1.msra.mxu0 %v206
    %500 = vmatprep.subr.mxu0 %v199
    %501 = vmatpush1.msra.mxu0 %v198
    %502 = vmatprep.subr.mxu0 %v191
    %503 = vmatpush1.msra.mxu0 %v190
    %504 = vmatprep.subr.mxu0 %v183
    %505 = vmatpush1.msra.mxu0 %v182
    %506 = vmatprep.subr.mxu0 %v175
    %507 = vmatpush1.msra.mxu0 %v174
    %508 = vmatprep.subr.mxu0 %v167
    %509 = vmatpush1.msra.mxu0 %v166
    %510 = vmatprep.subr.mxu0 %v159
    %511 = vmatpush1.msra.mxu0 %v158
    %512 = vmatprep.subr.mxu0 %v151
    %513 = vmatpush1.msra.mxu0 %v150
    %514 = vmatprep.subr.mxu0 %v143
    %515 = vmatpush1.msra.mxu0 %v142
    %516 = vmatprep.subr.mxu0 %v135
    %517 = vmatpush1.msra.mxu0 %v134
    %518 = vmatprep.subr.mxu0 %v127
    %519 = vmatpush1.msra.mxu0 %v126
    %520 = vmatprep.subr.mxu0 %v119
    %521 = vmatpush1.msra.mxu0 %v118
    %522 = vmatprep.subr.mxu0 %v111
    %523 = vmatpush1.msra.mxu0 %v110
    %524 = vmatprep.subr.mxu0 %v103
    %525 = vmatpush1.msra.mxu0 %v102
    %526 = vmatprep.subr.mxu0 0.0
    %527 = vmatpush2.msra.mxu0 0.0
    %528 = vmatprep.subr.mxu0 0.0
    %529 = vmatpush2.msra.mxu0 0.0
    %530 = vmatprep.subr.mxu0 0.0
    %531 = vmatpush2.msra.mxu0 0.0
    %532 = vmatprep.subr.mxu0 0.0
    %533 = vmatpush2.msra.mxu0 0.0
    %534 = vmatprep.subr.mxu0 0.0
    %535 = vmatpush2.msra.mxu0 0.0
    %536 = vmatprep.subr.mxu0 0.0
    %537 = vmatpush2.msra.mxu0 0.0
    %538 = vmatprep.subr.mxu0 0.0
    %539 = vmatpush2.msra.mxu0 0.0
    %540 = vmatprep.subr.mxu0 0.0
    %541 = vmatpush2.msra.mxu0 0.0
    %542 = vmatprep.subr.mxu0 0.0
    %543 = vmatpush2.msra.mxu0 0.0
    %544 = vmatprep.subr.mxu0 0.0
    %545 = vmatpush2.msra.mxu0 0.0
    %546 = vmatprep.subr.mxu0 0.0
    %547 = vmatpush2.msra.mxu0 0.0
    %548 = vmatprep.subr.mxu0 0.0
    %549 = vmatpush2.msra.mxu0 0.0
    %550 = vmatprep.subr.mxu0 0.0
    %551 = vmatpush2.msra.mxu0 0.0
    %552 = vmatprep.subr.mxu0 0.0
    %553 = vmatpush2.msra.mxu0 0.0
    %554 = vmatprep.subr.mxu0 0.0
    %555 = vmatpush2.msra.mxu0 0.0
    %556 = vmatprep.subr.mxu0 0.0
    %557 = vmatpush2.msra.mxu0 0.0
    %558 = vmatprep.mubr.f32.mxu0 0.0
    %559 = vmatmul.mubr.f32.gmra.mxu0 %v90
    %v560 = vpop.f32.mrf.mxu0
    %v561 = vadd.f32 %v247, %v560
    %v562 = vpop.f32.mrf.mxu0
    %v563 = vadd.f32 %v251, %v562
    %564 = vmatprep.mubr.f32.mxu0 0.0
    %565 = vmatmul.mubr.f32.gmra.mxu0 %v91
    %v566 = vpop.f32.mrf.mxu0
    %v567 = vadd.f32 %v247, %v566
    %v568 = vpop.f32.mrf.mxu0
    %v569 = vadd.f32 %v251, %v568
    %570 = vmatprep.mubr.f32.mxu0 0.0
    %571 = vmatmul.mubr.f32.gmra.mxu0 %v92
    %v572 = vpop.f32.mrf.mxu0
    %v573 = vadd.f32 %v247, %v572
    %v574 = vpop.f32.mrf.mxu0
    %v575 = vadd.f32 %v251, %v574
    %576 = vmatprep.mubr.f32.mxu0 0.0
    %577 = vmatmul.mubr.f32.gmra.mxu0 %v93
    %v578 = vpop.f32.mrf.mxu0
    %v579 = vadd.f32 %v247, %v578
    %v580 = vpop.f32.mrf.mxu0
    %v581 = vadd.f32 %v251, %v580
    %582 = vmatprep.mubr.f32.mxu0 0.0
    %583 = vmatmul.mubr.f32.gmra.mxu0 %v94
    %v584 = vpop.f32.mrf.mxu0
    %v585 = vadd.f32 %v247, %v584
    %v586 = vpop.f32.mrf.mxu0
    %v587 = vadd.f32 %v251, %v586
    %588 = vmatprep.mubr.f32.mxu0 0.0
    %589 = vmatmul.mubr.f32.gmra.mxu0 %v95
    %v590 = vpop.f32.mrf.mxu0
    %v591 = vadd.f32 %v247, %v590
    %v592 = vpop.f32.mrf.mxu0
    %v593 = vadd.f32 %v251, %v592
    %594 = vmatprep.mubr.f32.mxu0 0.0
    %595 = vmatmul.mubr.f32.gmra.mxu0 %v96
    %v596 = vpop.f32.mrf.mxu0
    %v597 = vadd.f32 %v247, %v596
    %v598 = vpop.f32.mrf.mxu0
    %v599 = vadd.f32 %v251, %v598
    %600 = vmatprep.mubr.f32.mxu0 0.0
    %601 = vmatmul.mubr.f32.gmra.mxu0 %v97
    %v602 = vpop.f32.mrf.mxu0
    %v603 = vadd.f32 %v247, %v602
    %v604 = vpop.f32.mrf.mxu0
    %v605 = vadd.f32 %v251, %v604
    %606 = vdwg.mxu0
    %607 = vmatprep.subr.mxu0 %v225
    %608 = vmatpush1.msra.mxu0 %v224
    %609 = vmatprep.subr.mxu0 %v217
    %610 = vmatpush1.msra.mxu0 %v216
    %611 = vmatprep.subr.mxu0 %v209
    %612 = vmatpush1.msra.mxu0 %v208
    %613 = vmatprep.subr.mxu0 %v201
    %614 = vmatpush1.msra.mxu0 %v200
    %615 = vmatprep.subr.mxu0 %v193
    %616 = vmatpush1.msra.mxu0 %v192
    %617 = vmatprep.subr.mxu0 %v185
    %618 = vmatpush1.msra.mxu0 %v184
    %619 = vmatprep.subr.mxu0 %v177
    %620 = vmatpush1.msra.mxu0 %v176
    %621 = vmatprep.subr.mxu0 %v169
    %622 = vmatpush1.msra.mxu0 %v168
    %623 = vmatprep.subr.mxu0 %v161
    %624 = vmatpush1.msra.mxu0 %v160
    %625 = vmatprep.subr.mxu0 %v153
    %626 = vmatpush1.msra.mxu0 %v152
    %627 = vmatprep.subr.mxu0 %v145
    %628 = vmatpush1.msra.mxu0 %v144
    %629 = vmatprep.subr.mxu0 %v137
    %630 = vmatpush1.msra.mxu0 %v136
    %631 = vmatprep.subr.mxu0 %v129
    %632 = vmatpush1.msra.mxu0 %v128
    %633 = vmatprep.subr.mxu0 %v121
    %634 = vmatpush1.msra.mxu0 %v120
    %635 = vmatprep.subr.mxu0 %v113
    %636 = vmatpush1.msra.mxu0 %v112
    %637 = vmatprep.subr.mxu0 %v105
    %638 = vmatpush1.msra.mxu0 %v104
    %639 = vmatprep.subr.mxu0 0.0
    %640 = vmatpush2.msra.mxu0 0.0
    %641 = vmatprep.subr.mxu0 0.0
    %642 = vmatpush2.msra.mxu0 0.0
    %643 = vmatprep.subr.mxu0 0.0
    %644 = vmatpush2.msra.mxu0 0.0
    %645 = vmatprep.subr.mxu0 0.0
    %646 = vmatpush2.msra.mxu0 0.0
    %647 = vmatprep.subr.mxu0 0.0
    %648 = vmatpush2.msra.mxu0 0.0
    %649 = vmatprep.subr.mxu0 0.0
    %650 = vmatpush2.msra.mxu0 0.0
    %651 = vmatprep.subr.mxu0 0.0
    %652 = vmatpush2.msra.mxu0 0.0
    %653 = vmatprep.subr.mxu0 0.0
    %654 = vmatpush2.msra.mxu0 0.0
    %655 = vmatprep.subr.mxu0 0.0
    %656 = vmatpush2.msra.mxu0 0.0
    %657 = vmatprep.subr.mxu0 0.0
    %658 = vmatpush2.msra.mxu0 0.0
    %659 = vmatprep.subr.mxu0 0.0
    %660 = vmatpush2.msra.mxu0 0.0
    %661 = vmatprep.subr.mxu0 0.0
    %662 = vmatpush2.msra.mxu0 0.0
    %663 = vmatprep.subr.mxu0 0.0
    %664 = vmatpush2.msra.mxu0 0.0
    %665 = vmatprep.subr.mxu0 0.0
    %666 = vmatpush2.msra.mxu0 0.0
    %667 = vmatprep.subr.mxu0 0.0
    %668 = vmatpush2.msra.mxu0 0.0
    %669 = vmatprep.subr.mxu0 0.0
    %670 = vmatpush2.msra.mxu0 0.0
    %671 = vmatprep.mubr.f32.mxu0 0.0
    %672 = vmatmul.mubr.f32.gmra.mxu0 %v90
    %v673 = vpop.f32.mrf.mxu0
    %v674 = vadd.f32 %v255, %v673
    %v675 = vpop.f32.mrf.mxu0
    %v676 = vadd.f32 %v259, %v675
    %677 = vmatprep.mubr.f32.mxu0 0.0
    %678 = vmatmul.mubr.f32.gmra.mxu0 %v91
    %v679 = vpop.f32.mrf.mxu0
    %v680 = vadd.f32 %v255, %v679
    %v681 = vpop.f32.mrf.mxu0
    %v682 = vadd.f32 %v259, %v681
    %683 = vmatprep.mubr.f32.mxu0 0.0
    %684 = vmatmul.mubr.f32.gmra.mxu0 %v92
    %v685 = vpop.f32.mrf.mxu0
    %v686 = vadd.f32 %v255, %v685
    %v687 = vpop.f32.mrf.mxu0
    %v688 = vadd.f32 %v259, %v687
    %689 = vmatprep.mubr.f32.mxu0 0.0
    %690 = vmatmul.mubr.f32.gmra.mxu0 %v93
    %v691 = vpop.f32.mrf.mxu0
    %v692 = vadd.f32 %v255, %v691
    %v693 = vpop.f32.mrf.mxu0
    %v694 = vadd.f32 %v259, %v693
    %695 = vmatprep.mubr.f32.mxu0 0.0
    %696 = vmatmul.mubr.f32.gmra.mxu0 %v94
    %v697 = vpop.f32.mrf.mxu0
    %v698 = vadd.f32 %v255, %v697
    %v699 = vpop.f32.mrf.mxu0
    %v700 = vadd.f32 %v259, %v699
    %701 = vmatprep.mubr.f32.mxu0 0.0
    %702 = vmatmul.mubr.f32.gmra.mxu0 %v95
    %v703 = vpop.f32.mrf.mxu0
    %v704 = vadd.f32 %v255, %v703
    %v705 = vpop.f32.mrf.mxu0
    %v706 = vadd.f32 %v259, %v705
    %707 = vmatprep.mubr.f32.mxu0 0.0
    %708 = vmatmul.mubr.f32.gmra.mxu0 %v96
    %v709 = vpop.f32.mrf.mxu0
    %v710 = vadd.f32 %v255, %v709
    %v711 = vpop.f32.mrf.mxu0
    %v712 = vadd.f32 %v259, %v711
    %713 = vmatprep.mubr.f32.mxu0 0.0
    %714 = vmatmul.mubr.f32.gmra.mxu0 %v97
    %v715 = vpop.f32.mrf.mxu0
    %v716 = vadd.f32 %v255, %v715
    %v717 = vpop.f32.mrf.mxu0
    %v718 = vadd.f32 %v259, %v717
    %719 = vdwg.mxu0
    %720 = vst [vmem:[#allocation2] sm:$0xff] %v335
    %721 = vst [vmem:[#allocation2 + $0x8] sm:$0xff] %v337
    %722 = vst [vmem:[#allocation2 + $0x10] sm:$0xff] %v448
    %723 = vst [vmem:[#allocation2 + $0x18] sm:$0xff] %v450
    %724 = vst [vmem:[#allocation2 + $0x20] sm:$0xff] %v561
    %725 = vst [vmem:[#allocation2 + $0x28] sm:$0xff] %v563
    %726 = vst [vmem:[#allocation2 + $0x30] sm:$0xff] %v674
    %727 = vst [vmem:[#allocation2 + $0x38] sm:$0xff] %v676
    %728 = vst [vmem:[#allocation2 + $0x40] sm:$0xff] %v341
    %729 = vst [vmem:[#allocation2 + $0x48] sm:$0xff] %v343
    %730 = vst [vmem:[#allocation2 + $0x50] sm:$0xff] %v454
    %731 = vst [vmem:[#allocation2 + $0x58] sm:$0xff] %v456
    %732 = vst [vmem:[#allocation2 + $0x60] sm:$0xff] %v567
    %733 = vst [vmem:[#allocation2 + $0x68] sm:$0xff] %v569
    %734 = vst [vmem:[#allocation2 + $0x70] sm:$0xff] %v680
    %735 = vst [vmem:[#allocation2 + $0x78] sm:$0xff] %v682
    %736 = vst [vmem:[#allocation2 + $0x80] sm:$0xff] %v347
    %737 = vst [vmem:[#allocation2 + $0x88] sm:$0xff] %v349
    %738 = vst [vmem:[#allocation2 + $0x90] sm:$0xff] %v460
    %739 = vst [vmem:[#allocation2 + $0x98] sm:$0xff] %v462
    %740 = vst [vmem:[#allocation2 + $0xa0] sm:$0xff] %v573
    %741 = vst [vmem:[#allocation2 + $0xa8] sm:$0xff] %v575
    %742 = vst [vmem:[#allocation2 + $0xb0] sm:$0xff] %v686
    %743 = vst [vmem:[#allocation2 + $0xb8] sm:$0xff] %v688
    %744 = vst [vmem:[#allocation2 + $0xc0] sm:$0xff] %v353
    %745 = vst [vmem:[#allocation2 + $0xc8] sm:$0xff] %v355
    %746 = vst [vmem:[#allocation2 + $0xd0] sm:$0xff] %v466
    %747 = vst [vmem:[#allocation2 + $0xd8] sm:$0xff] %v468
    %748 = vst [vmem:[#allocation2 + $0xe0] sm:$0xff] %v579
    %749 = vst [vmem:[#allocation2 + $0xe8] sm:$0xff] %v581
    %750 = vst [vmem:[#allocation2 + $0xf0] sm:$0xff] %v692
    %751 = vst [vmem:[#allocation2 + $0xf8] sm:$0xff] %v694
    %752 = vst [vmem:[#allocation2 + $0x100] sm:$0xff] %v359
    %753 = vst [vmem:[#allocation2 + $0x108] sm:$0xff] %v361
    %754 = vst [vmem:[#allocation2 + $0x110] sm:$0xff] %v472
    %755 = vst [vmem:[#allocation2 + $0x118] sm:$0xff] %v474
    %756 = vst [vmem:[#allocation2 + $0x120] sm:$0xff] %v585
    %757 = vst [vmem:[#allocation2 + $0x128] sm:$0xff] %v587
    %758 = vst [vmem:[#allocation2 + $0x130] sm:$0xff] %v698
    %759 = vst [vmem:[#allocation2 + $0x138] sm:$0xff] %v700
    %760 = vst [vmem:[#allocation2 + $0x140] sm:$0xff] %v365
    %761 = vst [vmem:[#allocation2 + $0x148] sm:$0xff] %v367
    %762 = vst [vmem:[#allocation2 + $0x150] sm:$0xff] %v478
    %763 = vst [vmem:[#allocation2 + $0x158] sm:$0xff] %v480
    %764 = vst [vmem:[#allocation2 + $0x160] sm:$0xff] %v591
    %765 = vst [vmem:[#allocation2 + $0x168] sm:$0xff] %v593
    %766 = vst [vmem:[#allocation2 + $0x170] sm:$0xff] %v704
    %767 = vst [vmem:[#allocation2 + $0x178] sm:$0xff] %v706
    %768 = vst [vmem:[#allocation2 + $0x180] sm:$0xff] %v371
    %769 = vst [vmem:[#allocation2 + $0x188] sm:$0xff] %v373
    %770 = vst [vmem:[#allocation2 + $0x190] sm:$0xff] %v484
    %771 = vst [vmem:[#allocation2 + $0x198] sm:$0xff] %v486
    %772 = vst [vmem:[#allocation2 + $0x1a0] sm:$0xff] %v597
    %773 = vst [vmem:[#allocation2 + $0x1a8] sm:$0xff] %v599
    %774 = vst [vmem:[#allocation2 + $0x1b0] sm:$0xff] %v710
    %775 = vst [vmem:[#allocation2 + $0x1b8] sm:$0xff] %v712
    %776 = vst [vmem:[#allocation2 + $0x1c0] sm:$0xff] %v377
    %777 = vst [vmem:[#allocation2 + $0x1c8] sm:$0xff] %v379
    %778 = vst [vmem:[#allocation2 + $0x1d0] sm:$0xff] %v490
    %779 = vst [vmem:[#allocation2 + $0x1d8] sm:$0xff] %v492
    %780 = vst [vmem:[#allocation2 + $0x1e0] sm:$0xff] %v603
    %781 = vst [vmem:[#allocation2 + $0x1e8] sm:$0xff] %v605
    %782 = vst [vmem:[#allocation2 + $0x1f0] sm:$0xff] %v716
    %783 = vst [vmem:[#allocation2 + $0x1f8] sm:$0xff] %v718
    %v784 = vld [vmem:[#allocation2] sm:$0xff]
    %v785 = vld [vmem:[#allocation2 + $0x8] sm:$0xff]
    %v786 = vld [vmem:[#allocation2 + $0x10] sm:$0xff]
    %v787 = vld [vmem:[#allocation2 + $0x18] sm:$0xff]
    %v788 = vld [vmem:[#allocation8] sm:$0xff]
    %v789 = vld [vmem:[#allocation8 + $0x8] sm:$0xff]
    %v790 = vld [vmem:[#allocation8 + $0x10] sm:$0xff]
    %v791 = vld [vmem:[#allocation8 + $0x18] sm:$0xff]
    %v792 = vld [vmem:[#allocation8 + $0x20] sm:$0xff]
    %v793 = vld [vmem:[#allocation8 + $0x28] sm:$0xff]
    %v794 = vld [vmem:[#allocation8 + $0x30] sm:$0xff]
    %v795 = vld [vmem:[#allocation8 + $0x38] sm:$0xff]
    %v796 = vld [vmem:[#allocation8 + $0x40] sm:$0xff]
    %v797 = vld [vmem:[#allocation8 + $0x48] sm:$0xff]
    %v798 = vld [vmem:[#allocation8 + $0x50] sm:$0xff]
    %v799 = vld [vmem:[#allocation8 + $0x58] sm:$0xff]
    %v800 = vld [vmem:[#allocation8 + $0x60] sm:$0xff]
    %v801 = vld [vmem:[#allocation8 + $0x68] sm:$0xff]
    %v802 = vld [vmem:[#allocation8 + $0x70] sm:$0xff]
    %v803 = vld [vmem:[#allocation8 + $0x78] sm:$0xff]
    %v804 = vld [vmem:[#allocation8 + $0x80] sm:$0xff]
    %v805 = vld [vmem:[#allocation8 + $0x88] sm:$0xff]
    %v806 = vld [vmem:[#allocation8 + $0x90] sm:$0xff]
    %v807 = vld [vmem:[#allocation8 + $0x98] sm:$0xff]
    %v808 = vld [vmem:[#allocation8 + $0xa0] sm:$0xff]
    %v809 = vld [vmem:[#allocation8 + $0xa8] sm:$0xff]
    %v810 = vld [vmem:[#allocation8 + $0xb0] sm:$0xff]
    %v811 = vld [vmem:[#allocation8 + $0xb8] sm:$0xff]
    %v812 = vld [vmem:[#allocation8 + $0xc0] sm:$0xff]
    %v813 = vld [vmem:[#allocation8 + $0xc8] sm:$0xff]
    %v814 = vld [vmem:[#allocation8 + $0xd0] sm:$0xff]
    %v815 = vld [vmem:[#allocation8 + $0xd8] sm:$0xff]
    %v816 = vld [vmem:[#allocation8 + $0xe0] sm:$0xff]
    %v817 = vld [vmem:[#allocation8 + $0xe8] sm:$0xff]
    %v818 = vld [vmem:[#allocation8 + $0xf0] sm:$0xff]
    %v819 = vld [vmem:[#allocation8 + $0xf8] sm:$0xff]
    %v820 = vld [vmem:[#allocation8 + $0x100] sm:$0xff]
    %v821 = vld [vmem:[#allocation8 + $0x108] sm:$0xff]
    %v822 = vld [vmem:[#allocation8 + $0x110] sm:$0xff]
    %v823 = vld [vmem:[#allocation8 + $0x118] sm:$0xff]
    %v824 = vld [vmem:[#allocation8 + $0x120] sm:$0xff]
    %v825 = vld [vmem:[#allocation8 + $0x128] sm:$0xff]
    %v826 = vld [vmem:[#allocation8 + $0x130] sm:$0xff]
    %v827 = vld [vmem:[#allocation8 + $0x138] sm:$0xff]
    %v828 = vld [vmem:[#allocation8 + $0x140] sm:$0xff]
    %v829 = vld [vmem:[#allocation8 + $0x148] sm:$0xff]
    %v830 = vld [vmem:[#allocation8 + $0x150] sm:$0xff]
    %v831 = vld [vmem:[#allocation8 + $0x158] sm:$0xff]
    %v832 = vld [vmem:[#allocation8 + $0x160] sm:$0xff]
    %v833 = vld [vmem:[#allocation8 + $0x168] sm:$0xff]
    %v834 = vld [vmem:[#allocation8 + $0x170] sm:$0xff]
    %v835 = vld [vmem:[#allocation8 + $0x178] sm:$0xff]
    %v836 = vld [vmem:[#allocation8 + $0x180] sm:$0xff]
    %v837 = vld [vmem:[#allocation8 + $0x188] sm:$0xff]
    %v838 = vld [vmem:[#allocation8 + $0x190] sm:$0xff]
    %v839 = vld [vmem:[#allocation8 + $0x198] sm:$0xff]
    %v840 = vld [vmem:[#allocation8 + $0x1a0] sm:$0xff]
    %v841 = vld [vmem:[#allocation8 + $0x1a8] sm:$0xff]
    %v842 = vld [vmem:[#allocation8 + $0x1b0] sm:$0xff]
    %v843 = vld [vmem:[#allocation8 + $0x1b8] sm:$0xff]
    %v844 = vld [vmem:[#allocation8 + $0x1c0] sm:$0xff]
    %v845 = vld [vmem:[#allocation8 + $0x1c8] sm:$0xff]
    %v846 = vld [vmem:[#allocation8 + $0x1d0] sm:$0xff]
    %v847 = vld [vmem:[#allocation8 + $0x1d8] sm:$0xff]
    %v848 = vld [vmem:[#allocation8 + $0x1e0] sm:$0xff]
    %v849 = vld [vmem:[#allocation8 + $0x1e8] sm:$0xff]
    %v850 = vld [vmem:[#allocation8 + $0x1f0] sm:$0xff]
    %v851 = vld [vmem:[#allocation8 + $0x1f8] sm:$0xff]
    %852 = vmatprep.subr.mxu0 %v849
    %853 = vmatpush1.msra.mxu0 %v848
    %854 = vmatprep.subr.mxu0 %v845
    %855 = vmatpush1.msra.mxu0 %v844
    %856 = vmatprep.subr.mxu0 %v841
    %857 = vmatpush1.msra.mxu0 %v840
    %858 = vmatprep.subr.mxu0 %v837
    %859 = vmatpush1.msra.mxu0 %v836
    %860 = vmatprep.subr.mxu0 %v833
    %861 = vmatpush1.msra.mxu0 %v832
    %862 = vmatprep.subr.mxu0 %v829
    %863 = vmatpush1.msra.mxu0 %v828
    %864 = vmatprep.subr.mxu0 %v825
    %865 = vmatpush1.msra.mxu0 %v824
    %866 = vmatprep.subr.mxu0 %v821
    %867 = vmatpush1.msra.mxu0 %v820
    %868 = vmatprep.subr.mxu0 %v817
    %869 = vmatpush1.msra.mxu0 %v816
    %870 = vmatprep.subr.mxu0 %v813
    %871 = vmatpush1.msra.mxu0 %v812
    %872 = vmatprep.subr.mxu0 %v809
    %873 = vmatpush1.msra.mxu0 %v808
    %874 = vmatprep.subr.mxu0 %v805
    %875 = vmatpush1.msra.mxu0 %v804
    %876 = vmatprep.subr.mxu0 %v801
    %877 = vmatpush1.msra.mxu0 %v800
    %878 = vmatprep.subr.mxu0 %v797
    %879 = vmatpush1.msra.mxu0 %v796
    %880 = vmatprep.subr.mxu0 %v793
    %881 = vmatpush1.msra.mxu0 %v792
    %882 = vmatprep.subr.mxu0 %v789
    %883 = vmatpush1.msra.mxu0 %v788
    %884 = vmatprep.subr.mxu0 0.0
    %885 = vmatpush2.msra.mxu0 0.0
    %886 = vmatprep.subr.mxu0 0.0
    %887 = vmatpush2.msra.mxu0 0.0
    %888 = vmatprep.subr.mxu0 0.0
    %889 = vmatpush2.msra.mxu0 0.0
    %890 = vmatprep.subr.mxu0 0.0
    %891 = vmatpush2.msra.mxu0 0.0
    %892 = vmatprep.subr.mxu0 0.0
    %893 = vmatpush2.msra.mxu0 0.0
    %894 = vmatprep.subr.mxu0 0.0
    %895 = vmatpush2.msra.mxu0 0.0
    %896 = vmatprep.subr.mxu0 0.0
    %897 = vmatpush2.msra.mxu0 0.0
    %898 = vmatprep.subr.mxu0 0.0
    %899 = vmatpush2.msra.mxu0 0.0
    %900 = vmatprep.subr.mxu0 0.0
    %901 = vmatpush2.msra.mxu0 0.0
    %902 = vmatprep.subr.mxu0 0.0
    %903 = vmatpush2.msra.mxu0 0.0
    %904 = vmatprep.subr.mxu0 0.0
    %905 = vmatpush2.msra.mxu0 0.0
    %906 = vmatprep.subr.mxu0 0.0
    %907 = vmatpush2.msra.mxu0 0.0
    %908 = vmatprep.subr.mxu0 0.0
    %909 = vmatpush2.msra.mxu0 0.0
    %910 = vmatprep.subr.mxu0 0.0
    %911 = vmatpush2.msra.mxu0 0.0
    %912 = vmatprep.subr.mxu0 0.0
    %913 = vmatpush2.msra.mxu0 0.0
    %914 = vmatprep.subr.mxu0 0.0
    %915 = vmatpush2.msra.mxu0 0.0
    %916 = vmatprep.mubr.f32.mxu0 0.0
    %917 = vmatmul.mubr.f32.gmra.mxu0 0.0
    %v918 = vpop.f32.mrf.mxu0
    %v919 = vadd.f32 0.0, %v918
    %v920 = vpop.f32.mrf.mxu0
    %v921 = vadd.f32 0.0, %v920
    %922 = vdwg.mxu0
    %923 = vmatprep.subr.mxu0 %v851
    %924 = vmatpush1.msra.mxu0 %v850
    %925 = vmatprep.subr.mxu0 %v847
    %926 = vmatpush1.msra.mxu0 %v846
    %927 = vmatprep.subr.mxu0 %v843
    %928 = vmatpush1.msra.mxu0 %v842
    %929 = vmatprep.subr.mxu0 %v839
    %930 = vmatpush1.msra.mxu0 %v838
    %931 = vmatprep.subr.mxu0 %v835
    %932 = vmatpush1.msra.mxu0 %v834
    %933 = vmatprep.subr.mxu0 %v831
    %934 = vmatpush1.msra.mxu0 %v830
    %935 = vmatprep.subr.mxu0 %v827
    %936 = vmatpush1.msra.mxu0 %v826
    %937 = vmatprep.subr.mxu0 %v823
    %938 = vmatpush1.msra.mxu0 %v822
    %939 = vmatprep.subr.mxu0 %v819
    %940 = vmatpush1.msra.mxu0 %v818
    %941 = vmatprep.subr.mxu0 %v815
    %942 = vmatpush1.msra.mxu0 %v814
    %943 = vmatprep.subr.mxu0 %v811
    %944 = vmatpush1.msra.mxu0 %v810
    %945 = vmatprep.subr.mxu0 %v807
    %946 = vmatpush1.msra.mxu0 %v806
    %947 = vmatprep.subr.mxu0 %v803
    %948 = vmatpush1.msra.mxu0 %v802
    %949 = vmatprep.subr.mxu0 %v799
    %950 = vmatpush1.msra.mxu0 %v798
    %951 = vmatprep.subr.mxu0 %v795
    %952 = vmatpush1.msra.mxu0 %v794
    %953 = vmatprep.subr.mxu0 %v791
    %954 = vmatpush1.msra.mxu0 %v790
    %955 = vmatprep.subr.mxu0 0.0
    %956 = vmatpush2.msra.mxu0 0.0
    %957 = vmatprep.subr.mxu0 0.0
    %958 = vmatpush2.msra.mxu0 0.0
    %959 = vmatprep.subr.mxu0 0.0
    %960 = vmatpush2.msra.mxu0 0.0
    %961 = vmatprep.subr.mxu0 0.0
    %962 = vmatpush2.msra.mxu0 0.0
    %963 = vmatprep.subr.mxu0 0.0
    %964 = vmatpush2.msra.mxu0 0.0
    %965 = vmatprep.subr.mxu0 0.0
    %966 = vmatpush2.msra.mxu0 0.0
    %967 = vmatprep.subr.mxu0 0.0
    %968 = vmatpush2.msra.mxu0 0.0
    %969 = vmatprep.subr.mxu0 0.0
    %970 = vmatpush2.msra.mxu0 0.0
    %971 = vmatprep.subr.mxu0 0.0
    %972 = vmatpush2.msra.mxu0 0.0
    %973 = vmatprep.subr.mxu0 0.0
    %974 = vmatpush2.msra.mxu0 0.0
    %975 = vmatprep.subr.mxu0 0.0
    %976 = vmatpush2.msra.mxu0 0.0
    %977 = vmatprep.subr.mxu0 0.0
    %978 = vmatpush2.msra.mxu0 0.0
    %979 = vmatprep.subr.mxu0 0.0
    %980 = vmatpush2.msra.mxu0 0.0
    %981 = vmatprep.subr.mxu0 0.0
    %982 = vmatpush2.msra.mxu0 0.0
    %983 = vmatprep.subr.mxu0 0.0
    %984 = vmatpush2.msra.mxu0 0.0
    %985 = vmatprep.subr.mxu0 0.0
    %986 = vmatpush2.msra.mxu0 0.0
    %987 = vmatprep.mubr.f32.mxu0 0.0
    %988 = vmatmul.mubr.f32.gmra.mxu0 0.0
    %v989 = vpop.f32.mrf.mxu0
    %v990 = vadd.f32 0.0, %v989
    %v991 = vpop.f32.mrf.mxu0
    %v992 = vadd.f32 0.0, %v991
    %993 = vdwg.mxu0
    %v994 = vadd.f32 %v784, %v919
    %v995 = vadd.f32 %v785, %v921
    %v996 = vadd.f32 %v786, %v990
    %v997 = vadd.f32 %v787, %v992
    %s998 = scalar_lea.vmem [#allocation2], 448
    %v999 = vld [vmem:[%s998 + $0x20] sm:$0xff]
    %v1000 = vld [vmem:[%s998 + $0x28] sm:$0xff]
    %v1001 = vld [vmem:[%s998 + $0x30] sm:$0xff]
    %v1002 = vld [vmem:[%s998 + $0x38] sm:$0xff]
    %v1003 = vld [vmem:[#allocation9] sm:$0xff]
    %v1004 = vld [vmem:[#allocation9 + $0x8] sm:$0xff]
    %v1005 = vld [vmem:[#allocation9 + $0x10] sm:$0xff]
    %v1006 = vld [vmem:[#allocation9 + $0x18] sm:$0xff]
    %v1007 = vld [vmem:[#allocation9 + $0x20] sm:$0xff]
    %v1008 = vld [vmem:[#allocation9 + $0x28] sm:$0xff]
    %v1009 = vld [vmem:[#allocation9 + $0x30] sm:$0xff]
    %v1010 = vld [vmem:[#allocation9 + $0x38] sm:$0xff]
    %v1011 = vld [vmem:[#allocation9 + $0x40] sm:$0xff]
    %v1012 = vld [vmem:[#allocation9 + $0x48] sm:$0xff]
    %v1013 = vld [vmem:[#allocation9 + $0x50] sm:$0xff]
    %v1014 = vld [vmem:[#allocation9 + $0x58] sm:$0xff]
    %v1015 = vld [vmem:[#allocation9 + $0x60] sm:$0xff]
    %v1016 = vld [vmem:[#allocation9 + $0x68] sm:$0xff]
    %v1017 = vld [vmem:[#allocation9 + $0x70] sm:$0xff]
    %v1018 = vld [vmem:[#allocation9 + $0x78] sm:$0xff]
    %v1019 = vld [vmem:[#allocation9 + $0x80] sm:$0xff]
    %v1020 = vld [vmem:[#allocation9 + $0x88] sm:$0xff]
    %v1021 = vld [vmem:[#allocation9 + $0x90] sm:$0xff]
    %v1022 = vld [vmem:[#allocation9 + $0x98] sm:$0xff]
    %v1023 = vld [vmem:[#allocation9 + $0xa0] sm:$0xff]
    %v1024 = vld [vmem:[#allocation9 + $0xa8] sm:$0xff]
    %v1025 = vld [vmem:[#allocation9 + $0xb0] sm:$0xff]
    %v1026 = vld [vmem:[#allocation9 + $0xb8] sm:$0xff]
    %v1027 = vld [vmem:[#allocation9 + $0xc0] sm:$0xff]
    %v1028 = vld [vmem:[#allocation9 + $0xc8] sm:$0xff]
    %v1029 = vld [vmem:[#allocation9 + $0xd0] sm:$0xff]
    %v1030 = vld [vmem:[#allocation9 + $0xd8] sm:$0xff]
    %v1031 = vld [vmem:[#allocation9 + $0xe0] sm:$0xff]
    %v1032 = vld [vmem:[#allocation9 + $0xe8] sm:$0xff]
    %v1033 = vld [vmem:[#allocation9 + $0xf0] sm:$0xff]
    %v1034 = vld [vmem:[#allocation9 + $0xf8] sm:$0xff]
    %v1035 = vld [vmem:[#allocation9 + $0x100] sm:$0xff]
    %v1036 = vld [vmem:[#allocation9 + $0x108] sm:$0xff]
    %v1037 = vld [vmem:[#allocation9 + $0x110] sm:$0xff]
    %v1038 = vld [vmem:[#allocation9 + $0x118] sm:$0xff]
    %v1039 = vld [vmem:[#allocation9 + $0x120] sm:$0xff]
    %v1040 = vld [vmem:[#allocation9 + $0x128] sm:$0xff]
    %v1041 = vld [vmem:[#allocation9 + $0x130] sm:$0xff]
    %v1042 = vld [vmem:[#allocation9 + $0x138] sm:$0xff]
    %v1043 = vld [vmem:[#allocation9 + $0x140] sm:$0xff]
    %v1044 = vld [vmem:[#allocation9 + $0x148] sm:$0xff]
    %v1045 = vld [vmem:[#allocation9 + $0x150] sm:$0xff]
    %v1046 = vld [vmem:[#allocation9 + $0x158] sm:$0xff]
    %v1047 = vld [vmem:[#allocation9 + $0x160] sm:$0xff]
    %v1048 = vld [vmem:[#allocation9 + $0x168] sm:$0xff]
    %v1049 = vld [vmem:[#allocation9 + $0x170] sm:$0xff]
    %v1050 = vld [vmem:[#allocation9 + $0x178] sm:$0xff]
    %v1051 = vld [vmem:[#allocation9 + $0x180] sm:$0xff]
    %v1052 = vld [vmem:[#allocation9 + $0x188] sm:$0xff]
    %v1053 = vld [vmem:[#allocation9 + $0x190] sm:$0xff]
    %v1054 = vld [vmem:[#allocation9 + $0x198] sm:$0xff]
    %v1055 = vld [vmem:[#allocation9 + $0x1a0] sm:$0xff]
    %v1056 = vld [vmem:[#allocation9 + $0x1a8] sm:$0xff]
    %v1057 = vld [vmem:[#allocation9 + $0x1b0] sm:$0xff]
    %v1058 = vld [vmem:[#allocation9 + $0x1b8] sm:$0xff]
    %v1059 = vld [vmem:[#allocation9 + $0x1c0] sm:$0xff]
    %v1060 = vld [vmem:[#allocation9 + $0x1c8] sm:$0xff]
    %v1061 = vld [vmem:[#allocation9 + $0x1d0] sm:$0xff]
    %v1062 = vld [vmem:[#allocation9 + $0x1d8] sm:$0xff]
    %v1063 = vld [vmem:[#allocation9 + $0x1e0] sm:$0xff]
    %v1064 = vld [vmem:[#allocation9 + $0x1e8] sm:$0xff]
    %v1065 = vld [vmem:[#allocation9 + $0x1f0] sm:$0xff]
    %v1066 = vld [vmem:[#allocation9 + $0x1f8] sm:$0xff]
    %1067 = vmatprep.subr.mxu0 %v1064
    %1068 = vmatpush1.msra.mxu0 %v1063
    %1069 = vmatprep.subr.mxu0 %v1060
    %1070 = vmatpush1.msra.mxu0 %v1059
    %1071 = vmatprep.subr.mxu0 %v1056
    %1072 = vmatpush1.msra.mxu0 %v1055
    %1073 = vmatprep.subr.mxu0 %v1052
    %1074 = vmatpush1.msra.mxu0 %v1051
    %1075 = vmatprep.subr.mxu0 %v1048
    %1076 = vmatpush1.msra.mxu0 %v1047
    %1077 = vmatprep.subr.mxu0 %v1044
    %1078 = vmatpush1.msra.mxu0 %v1043
    %1079 = vmatprep.subr.mxu0 %v1040
    %1080 = vmatpush1.msra.mxu0 %v1039
    %1081 = vmatprep.subr.mxu0 %v1036
    %1082 = vmatpush1.msra.mxu0 %v1035
    %1083 = vmatprep.subr.mxu0 %v1032
    %1084 = vmatpush1.msra.mxu0 %v1031
    %1085 = vmatprep.subr.mxu0 %v1028
    %1086 = vmatpush1.msra.mxu0 %v1027
    %1087 = vmatprep.subr.mxu0 %v1024
    %1088 = vmatpush1.msra.mxu0 %v1023
    %1089 = vmatprep.subr.mxu0 %v1020
    %1090 = vmatpush1.msra.mxu0 %v1019
    %1091 = vmatprep.subr.mxu0 %v1016
    %1092 = vmatpush1.msra.mxu0 %v1015
    %1093 = vmatprep.subr.mxu0 %v1012
    %1094 = vmatpush1.msra.mxu0 %v1011
    %1095 = vmatprep.subr.mxu0 %v1008
    %1096 = vmatpush1.msra.mxu0 %v1007
    %1097 = vmatprep.subr.mxu0 %v1004
    %1098 = vmatpush1.msra.mxu0 %v1003
    %1099 = vmatprep.subr.mxu0 0.0
    %1100 = vmatpush2.msra.mxu0 0.0
    %1101 = vmatprep.subr.mxu0 0.0
    %1102 = vmatpush2.msra.mxu0 0.0
    %1103 = vmatprep.subr.mxu0 0.0
    %1104 = vmatpush2.msra.mxu0 0.0
    %1105 = vmatprep.subr.mxu0 0.0
    %1106 = vmatpush2.msra.mxu0 0.0
    %1107 = vmatprep.subr.mxu0 0.0
    %1108 = vmatpush2.msra.mxu0 0.0
    %1109 = vmatprep.subr.mxu0 0.0
    %1110 = vmatpush2.msra.mxu0 0.0
    %1111 = vmatprep.subr.mxu0 0.0
    %1112 = vmatpush2.msra.mxu0 0.0
    %1113 = vmatprep.subr.mxu0 0.0
    %1114 = vmatpush2.msra.mxu0 0.0
    %1115 = vmatprep.subr.mxu0 0.0
    %1116 = vmatpush2.msra.mxu0 0.0
    %1117 = vmatprep.subr.mxu0 0.0
    %1118 = vmatpush2.msra.mxu0 0.0
    %1119 = vmatprep.subr.mxu0 0.0
    %1120 = vmatpush2.msra.mxu0 0.0
    %1121 = vmatprep.subr.mxu0 0.0
    %1122 = vmatpush2.msra.mxu0 0.0
    %1123 = vmatprep.subr.mxu0 0.0
    %1124 = vmatpush2.msra.mxu0 0.0
    %1125 = vmatprep.subr.mxu0 0.0
    %1126 = vmatpush2.msra.mxu0 0.0
    %1127 = vmatprep.subr.mxu0 0.0
    %1128 = vmatpush2.msra.mxu0 0.0
    %1129 = vmatprep.subr.mxu0 0.0
    %1130 = vmatpush2.msra.mxu0 0.0
    %1131 = vmatprep.mubr.f32.mxu0 0.0
    %1132 = vmatmul.mubr.f32.gmra.mxu0 0.0
    %v1133 = vpop.f32.mrf.mxu0
    %v1134 = vadd.f32 0.0, %v1133
    %v1135 = vpop.f32.mrf.mxu0
    %v1136 = vadd.f32 0.0, %v1135
    %1137 = vdwg.mxu0
    %1138 = vmatprep.subr.mxu0 %v1066
    %1139 = vmatpush1.msra.mxu0 %v1065
    %1140 = vmatprep.subr.mxu0 %v1062
    %1141 = vmatpush1.msra.mxu0 %v1061
    %1142 = vmatprep.subr.mxu0 %v1058
    %1143 = vmatpush1.msra.mxu0 %v1057
    %1144 = vmatprep.subr.mxu0 %v1054
    %1145 = vmatpush1.msra.mxu0 %v1053
    %1146 = vmatprep.subr.mxu0 %v1050
    %1147 = vmatpush1.msra.mxu0 %v1049
    %1148 = vmatprep.subr.mxu0 %v1046
    %1149 = vmatpush1.msra.mxu0 %v1045
    %1150 = vmatprep.subr.mxu0 %v1042
    %1151 = vmatpush1.msra.mxu0 %v1041
    %1152 = vmatprep.subr.mxu0 %v1038
    %1153 = vmatpush1.msra.mxu0 %v1037
    %1154 = vmatprep.subr.mxu0 %v1034
    %1155 = vmatpush1.msra.mxu0 %v1033
    %1156 = vmatprep.subr.mxu0 %v1030
    %1157 = vmatpush1.msra.mxu0 %v1029
    %1158 = vmatprep.subr.mxu0 %v1026
    %1159 = vmatpush1.msra.mxu0 %v1025
    %1160 = vmatprep.subr.mxu0 %v1022
    %1161 = vmatpush1.msra.mxu0 %v1021
    %1162 = vmatprep.subr.mxu0 %v1018
    %1163 = vmatpush1.msra.mxu0 %v1017
    %1164 = vmatprep.subr.mxu0 %v1014
    %1165 = vmatpush1.msra.mxu0 %v1013
    %1166 = vmatprep.subr.mxu0 %v1010
    %1167 = vmatpush1.msra.mxu0 %v1009
    %1168 = vmatprep.subr.mxu0 %v1006
    %1169 = vmatpush1.msra.mxu0 %v1005
    %1170 = vmatprep.subr.mxu0 0.0
    %1171 = vmatpush2.msra.mxu0 0.0
    %1172 = vmatprep.subr.mxu0 0.0
    %1173 = vmatpush2.msra.mxu0 0.0
    %1174 = vmatprep.subr.mxu0 0.0
    %1175 = vmatpush2.msra.mxu0 0.0
    %1176 = vmatprep.subr.mxu0 0.0
    %1177 = vmatpush2.msra.mxu0 0.0
    %1178 = vmatprep.subr.mxu0 0.0
    %1179 = vmatpush2.msra.mxu0 0.0
    %1180 = vmatprep.subr.mxu0 0.0
    %1181 = vmatpush2.msra.mxu0 0.0
    %1182 = vmatprep.subr.mxu0 0.0
    %1183 = vmatpush2.msra.mxu0 0.0
    %1184 = vmatprep.subr.mxu0 0.0
    %1185 = vmatpush2.msra.mxu0 0.0
    %1186 = vmatprep.subr.mxu0 0.0
    %1187 = vmatpush2.msra.mxu0 0.0
    %1188 = vmatprep.subr.mxu0 0.0
    %1189 = vmatpush2.msra.mxu0 0.0
    %1190 = vmatprep.subr.mxu0 0.0
    %1191 = vmatpush2.msra.mxu0 0.0
    %1192 = vmatprep.subr.mxu0 0.0
    %1193 = vmatpush2.msra.mxu0 0.0
    %1194 = vmatprep.subr.mxu0 0.0
    %1195 = vmatpush2.msra.mxu0 0.0
    %1196 = vmatprep.subr.mxu0 0.0
    %1197 = vmatpush2.msra.mxu0 0.0
    %1198 = vmatprep.subr.mxu0 0.0
    %1199 = vmatpush2.msra.mxu0 0.0
    %1200 = vmatprep.subr.mxu0 0.0
    %1201 = vmatpush2.msra.mxu0 0.0
    %1202 = vmatprep.mubr.f32.mxu0 0.0
    %1203 = vmatmul.mubr.f32.gmra.mxu0 0.0
    %v1204 = vpop.f32.mrf.mxu0
    %v1205 = vadd.f32 0.0, %v1204
    %v1206 = vpop.f32.mrf.mxu0
    %v1207 = vadd.f32 0.0, %v1206
    %1208 = vdwg.mxu0
    %v1209 = vadd.f32 %v999, %v1134
    %v1210 = vadd.f32 %v1000, %v1136
    %v1211 = vadd.f32 %v1001, %v1205
    %v1212 = vadd.f32 %v1002, %v1207
    %v1213 = vxor.u32 %v994, 2147483648
    %v1214 = vmul.f32 %v1213, 1.442695
    %v1215 = vpow.pop %v1214
    %v1216 = vadd.f32 %v1215, 1.0
    %v1217 = vrcp.pop %v1216
    %v1218 = vmul.f32 1.0, %v1217
    %v1219 = vxor.u32 %v995, 2147483648
    %v1220 = vmul.f32 %v1219, 1.442695
    %v1221 = vpow.pop %v1220
    %v1222 = vadd.f32 %v1221, 1.0
    %v1223 = vrcp.pop %v1222
    %v1224 = vmul.f32 1.0, %v1223
    %v1225 = vtanh.pop %v996
    %v1226 = vxor.u32 %v997, 2147483648
    %v1227 = vmul.f32 %v1226, 1.442695
    %v1228 = vpow.pop %v1227
    %v1229 = vadd.f32 %v1228, 1.0
    %v1230 = vrcp.pop %v1229
    %v1231 = vmul.f32 1.0, %v1230
    %v1232 = vmul.f32 %v1224, 0.0
    %v1233 = vmul.f32 %v1218, %v1225
    %v1234 = vadd.f32 %v1232, %v1233
    %v1235 = vtanh.pop %v1234
    %v1236 = vmul.f32 %v1231, %v1235
    %v1237 = vxor.u32 %v1209, 2147483648
    %v1238 = vmul.f32 %v1237, 1.442695
    %v1239 = vpow.pop %v1238
    %v1240 = vadd.f32 %v1239, 1.0
    %v1241 = vrcp.pop %v1240
    %v1242 = vmul.f32 1.0, %v1241
    %v1243 = vxor.u32 %v1210, 2147483648
    %v1244 = vmul.f32 %v1243, 1.442695
    %v1245 = vpow.pop %v1244
    %v1246 = vadd.f32 %v1245, 1.0
    %v1247 = vrcp.pop %v1246
    %v1248 = vmul.f32 1.0, %v1247
    %v1249 = vtanh.pop %v1211
    %v1250 = vxor.u32 %v1212, 2147483648
    %v1251 = vmul.f32 %v1250, 1.442695
    %v1252 = vpow.pop %v1251
    %v1253 = vadd.f32 %v1252, 1.0
    %v1254 = vrcp.pop %v1253
    %v1255 = vmul.f32 1.0, %v1254
    %v1256 = vmul.f32 %v1248, 0.0
    %v1257 = vmul.f32 %v1242, %v1249
    %v1258 = vadd.f32 %v1256, %v1257
    %v1259 = vtanh.pop %v1258
    %v1260 = vmul.f32 %v1255, %v1259
    %1261 = vst [vmem:[#allocation12] sm:$0xff] %v1236
    %s1262 = scalar_lea.vmem [#allocation12], 112
    %1263 = vst [vmem:[%s1262 + $0x8] sm:$0xff] %v1260
    %s1264 = scalar_lea.vmem [#allocation2], 64
    %v1265 = vld [vmem:[%s1264] sm:$0xff]
    %v1266 = vld [vmem:[%s1264 + $0x8] sm:$0xff]
    %v1267 = vld [vmem:[%s1264 + $0x10] sm:$0xff]
    %v1268 = vld [vmem:[%s1264 + $0x18] sm:$0xff]
    %v1269 = vld [vmem:[#allocation8] sm:$0xff]
    %v1270 = vld [vmem:[#allocation8 + $0x8] sm:$0xff]
    %v1271 = vld [vmem:[#allocation8 + $0x10] sm:$0xff]
    %v1272 = vld [vmem:[#allocation8 + $0x18] sm:$0xff]
    %v1273 = vld [vmem:[#allocation8 + $0x20] sm:$0xff]
    %v1274 = vld [vmem:[#allocation8 + $0x28] sm:$0xff]
    %v1275 = vld [vmem:[#allocation8 + $0x30] sm:$0xff]
    %v1276 = vld [vmem:[#allocation8 + $0x38] sm:$0xff]
    %v1277 = vld [vmem:[#allocation8 + $0x40] sm:$0xff]
    %v1278 = vld [vmem:[#allocation8 + $0x48] sm:$0xff]
    %v1279 = vld [vmem:[#allocation8 + $0x50] sm:$0xff]
    %v1280 = vld [vmem:[#allocation8 + $0x58] sm:$0xff]
    %v1281 = vld [vmem:[#allocation8 + $0x60] sm:$0xff]
    %v1282 = vld [vmem:[#allocation8 + $0x68] sm:$0xff]
    %v1283 = vld [vmem:[#allocation8 + $0x70] sm:$0xff]
    %v1284 = vld [vmem:[#allocation8 + $0x78] sm:$0xff]
    %v1285 = vld [vmem:[#allocation8 + $0x80] sm:$0xff]
    %v1286 = vld [vmem:[#allocation8 + $0x88] sm:$0xff]
    %v1287 = vld [vmem:[#allocation8 + $0x90] sm:$0xff]
    %v1288 = vld [vmem:[#allocation8 + $0x98] sm:$0xff]
    %v1289 = vld [vmem:[#allocation8 + $0xa0] sm:$0xff]
    %v1290 = vld [vmem:[#allocation8 + $0xa8] sm:$0xff]
    %v1291 = vld [vmem:[#allocation8 + $0xb0] sm:$0xff]
    %v1292 = vld [vmem:[#allocation8 + $0xb8] sm:$0xff]
    %v1293 = vld [vmem:[#allocation8 + $0xc0] sm:$0xff]
    %v1294 = vld [vmem:[#allocation8 + $0xc8] sm:$0xff]
    %v1295 = vld [vmem:[#allocation8 + $0xd0] sm:$0xff]
    %v1296 = vld [vmem:[#allocation8 + $0xd8] sm:$0xff]
    %v1297 = vld [vmem:[#allocation8 + $0xe0] sm:$0xff]
    %v1298 = vld [vmem:[#allocation8 + $0xe8] sm:$0xff]
    %v1299 = vld [vmem:[#allocation8 + $0xf0] sm:$0xff]
    %v1300 = vld [vmem:[#allocation8 + $0xf8] sm:$0xff]
    %v1301 = vld [vmem:[#allocation8 + $0x100] sm:$0xff]
    %v1302 = vld [vmem:[#allocation8 + $0x108] sm:$0xff]
    %v1303 = vld [vmem:[#allocation8 + $0x110] sm:$0xff]
    %v1304 = vld [vmem:[#allocation8 + $0x118] sm:$0xff]
    %v1305 = vld [vmem:[#allocation8 + $0x120] sm:$0xff]
    %v1306 = vld [vmem:[#allocation8 + $0x128] sm:$0xff]
    %v1307 = vld [vmem:[#allocation8 + $0x130] sm:$0xff]
    %v1308 = vld [vmem:[#allocation8 + $0x138] sm:$0xff]
    %v1309 = vld [vmem:[#allocation8 + $0x140] sm:$0xff]
    %v1310 = vld [vmem:[#allocation8 + $0x148] sm:$0xff]
    %v1311 = vld [vmem:[#allocation8 + $0x150] sm:$0xff]
    %v1312 = vld [vmem:[#allocation8 + $0x158] sm:$0xff]
    %v1313 = vld [vmem:[#allocation8 + $0x160] sm:$0xff]
    %v1314 = vld [vmem:[#allocation8 + $0x168] sm:$0xff]
    %v1315 = vld [vmem:[#allocation8 + $0x170] sm:$0xff]
    %v1316 = vld [vmem:[#allocation8 + $0x178] sm:$0xff]
    %v1317 = vld [vmem:[#allocation8 + $0x180] sm:$0xff]
    %v1318 = vld [vmem:[#allocation8 + $0x188] sm:$0xff]
    %v1319 = vld [vmem:[#allocation8 + $0x190] sm:$0xff]
    %v1320 = vld [vmem:[#allocation8 + $0x198] sm:$0xff]
    %v1321 = vld [vmem:[#allocation8 + $0x1a0] sm:$0xff]
    %v1322 = vld [vmem:[#allocation8 + $0x1a8] sm:$0xff]
    %v1323 = vld [vmem:[#allocation8 + $0x1b0] sm:$0xff]
    %v1324 = vld [vmem:[#allocation8 + $0x1b8] sm:$0xff]
    %v1325 = vld [vmem:[#allocation8 + $0x1c0] sm:$0xff]
    %v1326 = vld [vmem:[#allocation8 + $0x1c8] sm:$0xff]
    %v1327 = vld [vmem:[#allocation8 + $0x1d0] sm:$0xff]
    %v1328 = vld [vmem:[#allocation8 + $0x1d8] sm:$0xff]
    %v1329 = vld [vmem:[#allocation8 + $0x1e0] sm:$0xff]
    %v1330 = vld [vmem:[#allocation8 + $0x1e8] sm:$0xff]
    %v1331 = vld [vmem:[#allocation8 + $0x1f0] sm:$0xff]
    %v1332 = vld [vmem:[#allocation8 + $0x1f8] sm:$0xff]
    %1333 = vmatprep.subr.mxu0 %v1330
    %1334 = vmatpush1.msra.mxu0 %v1329
    %1335 = vmatprep.subr.mxu0 %v1326
    %1336 = vmatpush1.msra.mxu0 %v1325
    %1337 = vmatprep.subr.mxu0 %v1322
    %1338 = vmatpush1.msra.mxu0 %v1321
    %1339 = vmatprep.subr.mxu0 %v1318
    %1340 = vmatpush1.msra.mxu0 %v1317
    %1341 = vmatprep.subr.mxu0 %v1314
    %1342 = vmatpush1.msra.mxu0 %v1313
    %1343 = vmatprep.subr.mxu0 %v1310
    %1344 = vmatpush1.msra.mxu0 %v1309
    %1345 = vmatprep.subr.mxu0 %v1306
    %1346 = vmatpush1.msra.mxu0 %v1305
    %1347 = vmatprep.subr.mxu0 %v1302
    %1348 = vmatpush1.msra.mxu0 %v1301
    %1349 = vmatprep.subr.mxu0 %v1298
    %1350 = vmatpush1.msra.mxu0 %v1297
    %1351 = vmatprep.subr.mxu0 %v1294
    %1352 = vmatpush1.msra.mxu0 %v1293
    %1353 = vmatprep.subr.mxu0 %v1290
    %1354 = vmatpush1.msra.mxu0 %v1289
    %1355 = vmatprep.subr.mxu0 %v1286
    %1356 = vmatpush1.msra.mxu0 %v1285
    %1357 = vmatprep.subr.mxu0 %v1282
    %1358 = vmatpush1.msra.mxu0 %v1281
    %1359 = vmatprep.subr.mxu0 %v1278
    %1360 = vmatpush1.msra.mxu0 %v1277
    %1361 = vmatprep.subr.mxu0 %v1274
    %1362 = vmatpush1.msra.mxu0 %v1273
    %1363 = vmatprep.subr.mxu0 %v1270
    %1364 = vmatpush1.msra.mxu0 %v1269
    %1365 = vmatprep.subr.mxu0 0.0
    %1366 = vmatpush2.msra.mxu0 0.0
    %1367 = vmatprep.subr.mxu0 0.0
    %1368 = vmatpush2.msra.mxu0 0.0
    %1369 = vmatprep.subr.mxu0 0.0
    %1370 = vmatpush2.msra.mxu0 0.0
    %1371 = vmatprep.subr.mxu0 0.0
    %1372 = vmatpush2.msra.mxu0 0.0
    %1373 = vmatprep.subr.mxu0 0.0
    %1374 = vmatpush2.msra.mxu0 0.0
    %1375 = vmatprep.subr.mxu0 0.0
    %1376 = vmatpush2.msra.mxu0 0.0
    %1377 = vmatprep.subr.mxu0 0.0
    %1378 = vmatpush2.msra.mxu0 0.0
    %1379 = vmatprep.subr.mxu0 0.0
    %1380 = vmatpush2.msra.mxu0 0.0
    %1381 = vmatprep.subr.mxu0 0.0
    %1382 = vmatpush2.msra.mxu0 0.0
    %1383 = vmatprep.subr.mxu0 0.0
    %1384 = vmatpush2.msra.mxu0 0.0
    %1385 = vmatprep.subr.mxu0 0.0
    %1386 = vmatpush2.msra.mxu0 0.0
    %1387 = vmatprep.subr.mxu0 0.0
    %1388 = vmatpush2.msra.mxu0 0.0
    %1389 = vmatprep.subr.mxu0 0.0
    %1390 = vmatpush2.msra.mxu0 0.0
    %1391 = vmatprep.subr.mxu0 0.0
    %1392 = vmatpush2.msra.mxu0 0.0
    %1393 = vmatprep.subr.mxu0 0.0
    %1394 = vmatpush2.msra.mxu0 0.0
    %1395 = vmatprep.subr.mxu0 0.0
    %1396 = vmatpush2.msra.mxu0 0.0
    %1397 = vmatprep.mubr.f32.mxu0 0.0
    %1398 = vmatmul.mubr.f32.gmra.mxu0 %v1236
    %v1399 = vpop.f32.mrf.mxu0
    %v1400 = vadd.f32 0.0, %v1399
    %v1401 = vpop.f32.mrf.mxu0
    %v1402 = vadd.f32 0.0, %v1401
    %1403 = vdwg.mxu0
    %1404 = vmatprep.subr.mxu0 %v1332
    %1405 = vmatpush1.msra.mxu0 %v1331
    %1406 = vmatprep.subr.mxu0 %v1328
    %1407 = vmatpush1.msra.mxu0 %v1327
    %1408 = vmatprep.subr.mxu0 %v1324
    %1409 = vmatpush1.msra.mxu0 %v1323
    %1410 = vmatprep.subr.mxu0 %v1320
    %1411 = vmatpush1.msra.mxu0 %v1319
    %1412 = vmatprep.subr.mxu0 %v1316
    %1413 = vmatpush1.msra.mxu0 %v1315
    %1414 = vmatprep.subr.mxu0 %v1312
    %1415 = vmatpush1.msra.mxu0 %v1311
    %1416 = vmatprep.subr.mxu0 %v1308
    %1417 = vmatpush1.msra.mxu0 %v1307
    %1418 = vmatprep.subr.mxu0 %v1304
    %1419 = vmatpush1.msra.mxu0 %v1303
    %1420 = vmatprep.subr.mxu0 %v1300
    %1421 = vmatpush1.msra.mxu0 %v1299
    %1422 = vmatprep.subr.mxu0 %v1296
    %1423 = vmatpush1.msra.mxu0 %v1295
    %1424 = vmatprep.subr.mxu0 %v1292
    %1425 = vmatpush1.msra.mxu0 %v1291
    %1426 = vmatprep.subr.mxu0 %v1288
    %1427 = vmatpush1.msra.mxu0 %v1287
    %1428 = vmatprep.subr.mxu0 %v1284
    %1429 = vmatpush1.msra.mxu0 %v1283
    %1430 = vmatprep.subr.mxu0 %v1280
    %1431 = vmatpush1.msra.mxu0 %v1279
    %1432 = vmatprep.subr.mxu0 %v1276
    %1433 = vmatpush1.msra.mxu0 %v1275
    %1434 = vmatprep.subr.mxu0 %v1272
    %1435 = vmatpush1.msra.mxu0 %v1271
    %1436 = vmatprep.subr.mxu0 0.0
    %1437 = vmatpush2.msra.mxu0 0.0
    %1438 = vmatprep.subr.mxu0 0.0
    %1439 = vmatpush2.msra.mxu0 0.0
    %1440 = vmatprep.subr.mxu0 0.0
    %1441 = vmatpush2.msra.mxu0 0.0
    %1442 = vmatprep.subr.mxu0 0.0
    %1443 = vmatpush2.msra.mxu0 0.0
    %1444 = vmatprep.subr.mxu0 0.0
    %1445 = vmatpush2.msra.mxu0 0.0
    %1446 = vmatprep.subr.mxu0 0.0
    %1447 = vmatpush2.msra.mxu0 0.0
    %1448 = vmatprep.subr.mxu0 0.0
    %1449 = vmatpush2.msra.mxu0 0.0
    %1450 = vmatprep.subr.mxu0 0.0
    %1451 = vmatpush2.msra.mxu0 0.0
    %1452 = vmatprep.subr.mxu0 0.0
    %1453 = vmatpush2.msra.mxu0 0.0
    %1454 = vmatprep.subr.mxu0 0.0
    %1455 = vmatpush2.msra.mxu0 0.0
    %1456 = vmatprep.subr.mxu0 0.0
    %1457 = vmatpush2.msra.mxu0 0.0
    %1458 = vmatprep.subr.mxu0 0.0
    %1459 = vmatpush2.msra.mxu0 0.0
    %1460 = vmatprep.subr.mxu0 0.0
    %1461 = vmatpush2.msra.mxu0 0.0
    %1462 = vmatprep.subr.mxu0 0.0
    %1463 = vmatpush2.msra.mxu0 0.0
    %1464 = vmatprep.subr.mxu0 0.0
    %1465 = vmatpush2.msra.mxu0 0.0
    %1466 = vmatprep.subr.mxu0 0.0
    %1467 = vmatpush2.msra.mxu0 0.0
    %1468 = vmatprep.mubr.f32.mxu0 0.0
    %1469 = vmatmul.mubr.f32.gmra.mxu0 %v1236
    %v1470 = vpop.f32.mrf.mxu0
    %v1471 = vadd.f32 0.0, %v1470
    %v1472 = vpop.f32.mrf.mxu0
    %v1473 = vadd.f32 0.0, %v1472
    %1474 = vdwg.mxu0
    %v1475 = vadd.f32 %v1265, %v1400
    %v1476 = vadd.f32 %v1266, %v1402
    %v1477 = vadd.f32 %v1267, %v1471
    %v1478 = vadd.f32 %v1268, %v1473
    %s1479 = scalar_lea.vmem [#allocation2], 384
    %v1480 = vld [vmem:[%s1479 + $0x20] sm:$0xff]
    %v1481 = vld [vmem:[%s1479 + $0x28] sm:$0xff]
    %v1482 = vld [vmem:[%s1479 + $0x30] sm:$0xff]
    %v1483 = vld [vmem:[%s1479 + $0x38] sm:$0xff]
    %v1484 = vld [vmem:[#allocation9] sm:$0xff]
    %v1485 = vld [vmem:[#allocation9 + $0x8] sm:$0xff]
    %v1486 = vld [vmem:[#allocation9 + $0x10] sm:$0xff]
    %v1487 = vld [vmem:[#allocation9 + $0x18] sm:$0xff]
    %v1488 = vld [vmem:[#allocation9 + $0x20] sm:$0xff]
    %v1489 = vld [vmem:[#allocation9 + $0x28] sm:$0xff]
    %v1490 = vld [vmem:[#allocation9 + $0x30] sm:$0xff]
    %v1491 = vld [vmem:[#allocation9 + $0x38] sm:$0xff]
    %v1492 = vld [vmem:[#allocation9 + $0x40] sm:$0xff]
    %v1493 = vld [vmem:[#allocation9 + $0x48] sm:$0xff]
    %v1494 = vld [vmem:[#allocation9 + $0x50] sm:$0xff]
    %v1495 = vld [vmem:[#allocation9 + $0x58] sm:$0xff]
    %v1496 = vld [vmem:[#allocation9 + $0x60] sm:$0xff]
    %v1497 = vld [vmem:[#allocation9 + $0x68] sm:$0xff]
    %v1498 = vld [vmem:[#allocation9 + $0x70] sm:$0xff]
    %v1499 = vld [vmem:[#allocation9 + $0x78] sm:$0xff]
    %v1500 = vld [vmem:[#allocation9 + $0x80] sm:$0xff]
    %v1501 = vld [vmem:[#allocation9 + $0x88] sm:$0xff]
    %v1502 = vld [vmem:[#allocation9 + $0x90] sm:$0xff]
    %v1503 = vld [vmem:[#allocation9 + $0x98] sm:$0xff]
    %v1504 = vld [vmem:[#allocation9 + $0xa0] sm:$0xff]
    %v1505 = vld [vmem:[#allocation9 + $0xa8] sm:$0xff]
    %v1506 = vld [vmem:[#allocation9 + $0xb0] sm:$0xff]
    %v1507 = vld [vmem:[#allocation9 + $0xb8] sm:$0xff]
    %v1508 = vld [vmem:[#allocation9 + $0xc0] sm:$0xff]
    %v1509 = vld [vmem:[#allocation9 + $0xc8] sm:$0xff]
    %v1510 = vld [vmem:[#allocation9 + $0xd0] sm:$0xff]
    %v1511 = vld [vmem:[#allocation9 + $0xd8] sm:$0xff]
    %v1512 = vld [vmem:[#allocation9 + $0xe0] sm:$0xff]
    %v1513 = vld [vmem:[#allocation9 + $0xe8] sm:$0xff]
    %v1514 = vld [vmem:[#allocation9 + $0xf0] sm:$0xff]
    %v1515 = vld [vmem:[#allocation9 + $0xf8] sm:$0xff]
    %v1516 = vld [vmem:[#allocation9 + $0x100] sm:$0xff]
    %v1517 = vld [vmem:[#allocation9 + $0x108] sm:$0xff]
    %v1518 = vld [vmem:[#allocation9 + $0x110] sm:$0xff]
    %v1519 = vld [vmem:[#allocation9 + $0x118] sm:$0xff]
    %v1520 = vld [vmem:[#allocation9 + $0x120] sm:$0xff]
    %v1521 = vld [vmem:[#allocation9 + $0x128] sm:$0xff]
    %v1522 = vld [vmem:[#allocation9 + $0x130] sm:$0xff]
    %v1523 = vld [vmem:[#allocation9 + $0x138] sm:$0xff]
    %v1524 = vld [vmem:[#allocation9 + $0x140] sm:$0xff]
    %v1525 = vld [vmem:[#allocation9 + $0x148] sm:$0xff]
    %v1526 = vld [vmem:[#allocation9 + $0x150] sm:$0xff]
    %v1527 = vld [vmem:[#allocation9 + $0x158] sm:$0xff]
    %v1528 = vld [vmem:[#allocation9 + $0x160] sm:$0xff]
    %v1529 = vld [vmem:[#allocation9 + $0x168] sm:$0xff]
    %v1530 = vld [vmem:[#allocation9 + $0x170] sm:$0xff]
    %v1531 = vld [vmem:[#allocation9 + $0x178] sm:$0xff]
    %v1532 = vld [vmem:[#allocation9 + $0x180] sm:$0xff]
    %v1533 = vld [vmem:[#allocation9 + $0x188] sm:$0xff]
    %v1534 = vld [vmem:[#allocation9 + $0x190] sm:$0xff]
    %v1535 = vld [vmem:[#allocation9 + $0x198] sm:$0xff]
    %v1536 = vld [vmem:[#allocation9 + $0x1a0] sm:$0xff]
    %v1537 = vld [vmem:[#allocation9 + $0x1a8] sm:$0xff]
    %v1538 = vld [vmem:[#allocation9 + $0x1b0] sm:$0xff]
    %v1539 = vld [vmem:[#allocation9 + $0x1b8] sm:$0xff]
    %v1540 = vld [vmem:[#allocation9 + $0x1c0] sm:$0xff]
    %v1541 = vld [vmem:[#allocation9 + $0x1c8] sm:$0xff]
    %v1542 = vld [vmem:[#allocation9 + $0x1d0] sm:$0xff]
    %v1543 = vld [vmem:[#allocation9 + $0x1d8] sm:$0xff]
    %v1544 = vld [vmem:[#allocation9 + $0x1e0] sm:$0xff]
    %v1545 = vld [vmem:[#allocation9 + $0x1e8] sm:$0xff]
    %v1546 = vld [vmem:[#allocation9 + $0x1f0] sm:$0xff]
    %v1547 = vld [vmem:[#allocation9 + $0x1f8] sm:$0xff]
    %1548 = vmatprep.subr.mxu0 %v1545
    %1549 = vmatpush1.msra.mxu0 %v1544
    %1550 = vmatprep.subr.mxu0 %v1541
    %1551 = vmatpush1.msra.mxu0 %v1540
    %1552 = vmatprep.subr.mxu0 %v1537
    %1553 = vmatpush1.msra.mxu0 %v1536
    %1554 = vmatprep.subr.mxu0 %v1533
    %1555 = vmatpush1.msra.mxu0 %v1532
    %1556 = vmatprep.subr.mxu0 %v1529
    %1557 = vmatpush1.msra.mxu0 %v1528
    %1558 = vmatprep.subr.mxu0 %v1525
    %1559 = vmatpush1.msra.mxu0 %v1524
    %1560 = vmatprep.subr.mxu0 %v1521
    %1561 = vmatpush1.msra.mxu0 %v1520
    %1562 = vmatprep.subr.mxu0 %v1517
    %1563 = vmatpush1.msra.mxu0 %v1516
    %1564 = vmatprep.subr.mxu0 %v1513
    %1565 = vmatpush1.msra.mxu0 %v1512
    %1566 = vmatprep.subr.mxu0 %v1509
    %1567 = vmatpush1.msra.mxu0 %v1508
    %1568 = vmatprep.subr.mxu0 %v1505
    %1569 = vmatpush1.msra.mxu0 %v1504
    %1570 = vmatprep.subr.mxu0 %v1501
    %1571 = vmatpush1.msra.mxu0 %v1500
    %1572 = vmatprep.subr.mxu0 %v1497
    %1573 = vmatpush1.msra.mxu0 %v1496
    %1574 = vmatprep.subr.mxu0 %v1493
    %1575 = vmatpush1.msra.mxu0 %v1492
    %1576 = vmatprep.subr.mxu0 %v1489
    %1577 = vmatpush1.msra.mxu0 %v1488
    %1578 = vmatprep.subr.mxu0 %v1485
    %1579 = vmatpush1.msra.mxu0 %v1484
    %1580 = vmatprep.subr.mxu0 0.0
    %1581 = vmatpush2.msra.mxu0 0.0
    %1582 = vmatprep.subr.mxu0 0.0
    %1583 = vmatpush2.msra.mxu0 0.0
    %1584 = vmatprep.subr.mxu0 0.0
    %1585 = vmatpush2.msra.mxu0 0.0
    %1586 = vmatprep.subr.mxu0 0.0
    %1587 = vmatpush2.msra.mxu0 0.0
    %1588 = vmatprep.subr.mxu0 0.0
    %1589 = vmatpush2.msra.mxu0 0.0
    %1590 = vmatprep.subr.mxu0 0.0
    %1591 = vmatpush2.msra.mxu0 0.0
    %1592 = vmatprep.subr.mxu0 0.0
    %1593 = vmatpush2.msra.mxu0 0.0
    %1594 = vmatprep.subr.mxu0 0.0
    %1595 = vmatpush2.msra.mxu0 0.0
    %1596 = vmatprep.subr.mxu0 0.0
    %1597 = vmatpush2.msra.mxu0 0.0
    %1598 = vmatprep.subr.mxu0 0.0
    %1599 = vmatpush2.msra.mxu0 0.0
    %1600 = vmatprep.subr.mxu0 0.0
    %1601 = vmatpush2.msra.mxu0 0.0
    %1602 = vmatprep.subr.mxu0 0.0
    %1603 = vmatpush2.msra.mxu0 0.0
    %1604 = vmatprep.subr.mxu0 0.0
    %1605 = vmatpush2.msra.mxu0 0.0
    %1606 = vmatprep.subr.mxu0 0.0
    %1607 = vmatpush2.msra.mxu0 0.0
    %1608 = vmatprep.subr.mxu0 0.0
    %1609 = vmatpush2.msra.mxu0 0.0
    %1610 = vmatprep.subr.mxu0 0.0
    %1611 = vmatpush2.msra.mxu0 0.0
    %1612 = vmatprep.mubr.f32.mxu0 0.0
    %1613 = vmatmul.mubr.f32.gmra.mxu0 %v1260
    %v1614 = vpop.f32.mrf.mxu0
    %v1615 = vadd.f32 0.0, %v1614
    %v1616 = vpop.f32.mrf.mxu0
    %v1617 = vadd.f32 0.0, %v1616
    %1618 = vdwg.mxu0
    %1619 = vmatprep.subr.mxu0 %v1547
    %1620 = vmatpush1.msra.mxu0 %v1546
    %1621 = vmatprep.subr.mxu0 %v1543
    %1622 = vmatpush1.msra.mxu0 %v1542
    %1623 = vmatprep.subr.mxu0 %v1539
    %1624 = vmatpush1.msra.mxu0 %v1538
    %1625 = vmatprep.subr.mxu0 %v1535
    %1626 = vmatpush1.msra.mxu0 %v1534
    %1627 = vmatprep.subr.mxu0 %v1531
    %1628 = vmatpush1.msra.mxu0 %v1530
    %1629 = vmatprep.subr.mxu0 %v1527
    %1630 = vmatpush1.msra.mxu0 %v1526
    %1631 = vmatprep.subr.mxu0 %v1523
    %1632 = vmatpush1.msra.mxu0 %v1522
    %1633 = vmatprep.subr.mxu0 %v1519
    %1634 = vmatpush1.msra.mxu0 %v1518
    %1635 = vmatprep.subr.mxu0 %v1515
    %1636 = vmatpush1.msra.mxu0 %v1514
    %1637 = vmatprep.subr.mxu0 %v1511
    %1638 = vmatpush1.msra.mxu0 %v1510
    %1639 = vmatprep.subr.mxu0 %v1507
    %1640 = vmatpush1.msra.mxu0 %v1506
    %1641 = vmatprep.subr.mxu0 %v1503
    %1642 = vmatpush1.msra.mxu0 %v1502
    %1643 = vmatprep.subr.mxu0 %v1499
    %1644 = vmatpush1.msra.mxu0 %v1498
    %1645 = vmatprep.subr.mxu0 %v1495
    %1646 = vmatpush1.msra.mxu0 %v1494
    %1647 = vmatprep.subr.mxu0 %v1491
    %1648 = vmatpush1.msra.mxu0 %v1490
    %1649 = vmatprep.subr.mxu0 %v1487
    %1650 = vmatpush1.msra.mxu0 %v1486
    %1651 = vmatprep.subr.mxu0 0.0
    %1652 = vmatpush2.msra.mxu0 0.0
    %1653 = vmatprep.subr.mxu0 0.0
    %1654 = vmatpush2.msra.mxu0 0.0
    %1655 = vmatprep.subr.mxu0 0.0
    %1656 = vmatpush2.msra.mxu0 0.0
    %1657 = vmatprep.subr.mxu0 0.0
    %1658 = vmatpush2.msra.mxu0 0.0
    %1659 = vmatprep.subr.mxu0 0.0
    %1660 = vmatpush2.msra.mxu0 0.0
    %1661 = vmatprep.subr.mxu0 0.0
    %1662 = vmatpush2.msra.mxu0 0.0
    %1663 = vmatprep.subr.mxu0 0.0
    %1664 = vmatpush2.msra.mxu0 0.0
    %1665 = vmatprep.subr.mxu0 0.0
    %1666 = vmatpush2.msra.mxu0 0.0
    %1667 = vmatprep.subr.mxu0 0.0
    %1668 = vmatpush2.msra.mxu0 0.0
    %1669 = vmatprep.subr.mxu0 0.0
    %1670 = vmatpush2.msra.mxu0 0.0
    %1671 = vmatprep.subr.mxu0 0.0
    %1672 = vmatpush2.msra.mxu0 0.0
    %1673 = vmatprep.subr.mxu0 0.0
    %1674 = vmatpush2.msra.mxu0 0.0
    %1675 = vmatprep.subr.mxu0 0.0
    %1676 = vmatpush2.msra.mxu0 0.0
    %1677 = vmatprep.subr.mxu0 0.0
    %1678 = vmatpush2.msra.mxu0 0.0
    %1679 = vmatprep.subr.mxu0 0.0
    %1680 = vmatpush2.msra.mxu0 0.0
    %1681 = vmatprep.subr.mxu0 0.0
    %1682 = vmatpush2.msra.mxu0 0.0
    %1683 = vmatprep.mubr.f32.mxu0 0.0
    %1684 = vmatmul.mubr.f32.gmra.mxu0 %v1260
    %v1685 = vpop.f32.mrf.mxu0
    %v1686 = vadd.f32 0.0, %v1685
    %v1687 = vpop.f32.mrf.mxu0
    %v1688 = vadd.f32 0.0, %v1687
    %1689 = vdwg.mxu0
    %v1690 = vadd.f32 %v1480, %v1615
    %v1691 = vadd.f32 %v1481, %v1617
    %v1692 = vadd.f32 %v1482, %v1686
    %v1693 = vadd.f32 %v1483, %v1688
    %v1694 = vxor.u32 %v1475, 2147483648
    %v1695 = vmul.f32 %v1694, 1.442695
    %v1696 = vpow.pop %v1695
    %v1697 = vadd.f32 %v1696, 1.0
    %v1698 = vrcp.pop %v1697
    %v1699 = vmul.f32 1.0, %v1698
    %v1700 = vxor.u32 %v1476, 2147483648
    %v1701 = vmul.f32 %v1700, 1.442695
    %v1702 = vpow.pop %v1701
    %v1703 = vadd.f32 %v1702, 1.0
    %v1704 = vrcp.pop %v1703
    %v1705 = vmul.f32 1.0, %v1704
    %v1706 = vtanh.pop %v1477
    %v1707 = vxor.u32 %v1478, 2147483648
    %v1708 = vmul.f32 %v1707, 1.442695
    %v1709 = vpow.pop %v1708
    %v1710 = vadd.f32 %v1709, 1.0
    %v1711 = vrcp.pop %v1710
    %v1712 = vmul.f32 1.0, %v1711
    %v1713 = vmul.f32 %v1705, %v1234
    %v1714 = vmul.f32 %v1699, %v1706
    %v1715 = vadd.f32 %v1713, %v1714
    %v1716 = vtanh.pop %v1715
    %v1717 = vmul.f32 %v1712, %v1716
    %v1718 = vxor.u32 %v1690, 2147483648
    %v1719 = vmul.f32 %v1718, 1.442695
    %v1720 = vpow.pop %v1719
    %v1721 = vadd.f32 %v1720, 1.0
    %v1722 = vrcp.pop %v1721
    %v1723 = vmul.f32 1.0, %v1722
    %v1724 = vxor.u32 %v1691, 2147483648
    %v1725 = vmul.f32 %v1724, 1.442695
    %v1726 = vpow.pop %v1725
    %v1727 = vadd.f32 %v1726, 1.0
    %v1728 = vrcp.pop %v1727
    %v1729 = vmul.f32 1.0, %v1728
    %v1730 = vtanh.pop %v1692
    %v1731 = vxor.u32 %v1693, 2147483648
    %v1732 = vmul.f32 %v1731, 1.442695
    %v1733 = vpow.pop %v1732
    %v1734 = vadd.f32 %v1733, 1.0
    %v1735 = vrcp.pop %v1734
    %v1736 = vmul.f32 1.0, %v1735
    %v1737 = vmul.f32 %v1729, %v1258
    %v1738 = vmul.f32 %v1723, %v1730
    %v1739 = vadd.f32 %v1737, %v1738
    %v1740 = vtanh.pop %v1739
    %v1741 = vmul.f32 %v1736, %v1740
    %s1742 = scalar_lea.vmem [#allocation12], 16
    %1743 = vst [vmem:[%s1742] sm:$0xff] %v1717
    %s1744 = scalar_lea.vmem [#allocation12], 96
    %1745 = vst [vmem:[%s1744 + $0x8] sm:$0xff] %v1741
    %s1746 = scalar_lea.vmem [#allocation2], 128
    %v1747 = vld [vmem:[%s1746] sm:$0xff]
    %v1748 = vld [vmem:[%s1746 + $0x8] sm:$0xff]
    %v1749 = vld [vmem:[%s1746 + $0x10] sm:$0xff]
    %v1750 = vld [vmem:[%s1746 + $0x18] sm:$0xff]
    %v1751 = vld [vmem:[#allocation8] sm:$0xff]
    %v1752 = vld [vmem:[#allocation8 + $0x8] sm:$0xff]
    %v1753 = vld [vmem:[#allocation8 + $0x10] sm:$0xff]
    %v1754 = vld [vmem:[#allocation8 + $0x18] sm:$0xff]
    %v1755 = vld [vmem:[#allocation8 + $0x20] sm:$0xff]
    %v1756 = vld [vmem:[#allocation8 + $0x28] sm:$0xff]
    %v1757 = vld [vmem:[#allocation8 + $0x30] sm:$0xff]
    %v1758 = vld [vmem:[#allocation8 + $0x38] sm:$0xff]
    %v1759 = vld [vmem:[#allocation8 + $0x40] sm:$0xff]
    %v1760 = vld [vmem:[#allocation8 + $0x48] sm:$0xff]
    %v1761 = vld [vmem:[#allocation8 + $0x50] sm:$0xff]
    %v1762 = vld [vmem:[#allocation8 + $0x58] sm:$0xff]
    %v1763 = vld [vmem:[#allocation8 + $0x60] sm:$0xff]
    %v1764 = vld [vmem:[#allocation8 + $0x68] sm:$0xff]
    %v1765 = vld [vmem:[#allocation8 + $0x70] sm:$0xff]
    %v1766 = vld [vmem:[#allocation8 + $0x78] sm:$0xff]
    %v1767 = vld [vmem:[#allocation8 + $0x80] sm:$0xff]
    %v1768 = vld [vmem:[#allocation8 + $0x88] sm:$0xff]
    %v1769 = vld [vmem:[#allocation8 + $0x90] sm:$0xff]
    %v1770 = vld [vmem:[#allocation8 + $0x98] sm:$0xff]
    %v1771 = vld [vmem:[#allocation8 + $0xa0] sm:$0xff]
    %v1772 = vld [vmem:[#allocation8 + $0xa8] sm:$0xff]
    %v1773 = vld [vmem:[#allocation8 + $0xb0] sm:$0xff]
    %v1774 = vld [vmem:[#allocation8 + $0xb8] sm:$0xff]
    %v1775 = vld [vmem:[#allocation8 + $0xc0] sm:$0xff]
    %v1776 = vld [vmem:[#allocation8 + $0xc8] sm:$0xff]
    %v1777 = vld [vmem:[#allocation8 + $0xd0] sm:$0xff]
    %v1778 = vld [vmem:[#allocation8 + $0xd8] sm:$0xff]
    %v1779 = vld [vmem:[#allocation8 + $0xe0] sm:$0xff]
    %v1780 = vld [vmem:[#allocation8 + $0xe8] sm:$0xff]
    %v1781 = vld [vmem:[#allocation8 + $0xf0] sm:$0xff]
    %v1782 = vld [vmem:[#allocation8 + $0xf8] sm:$0xff]
    %v1783 = vld [vmem:[#allocation8 + $0x100] sm:$0xff]
    %v1784 = vld [vmem:[#allocation8 + $0x108] sm:$0xff]
    %v1785 = vld [vmem:[#allocation8 + $0x110] sm:$0xff]
    %v1786 = vld [vmem:[#allocation8 + $0x118] sm:$0xff]
    %v1787 = vld [vmem:[#allocation8 + $0x120] sm:$0xff]
    %v1788 = vld [vmem:[#allocation8 + $0x128] sm:$0xff]
    %v1789 = vld [vmem:[#allocation8 + $0x130] sm:$0xff]
    %v1790 = vld [vmem:[#allocation8 + $0x138] sm:$0xff]
    %v1791 = vld [vmem:[#allocation8 + $0x140] sm:$0xff]
    %v1792 = vld [vmem:[#allocation8 + $0x148] sm:$0xff]
    %v1793 = vld [vmem:[#allocation8 + $0x150] sm:$0xff]
    %v1794 = vld [vmem:[#allocation8 + $0x158] sm:$0xff]
    %v1795 = vld [vmem:[#allocation8 + $0x160] sm:$0xff]
    %v1796 = vld [vmem:[#allocation8 + $0x168] sm:$0xff]
    %v1797 = vld [vmem:[#allocation8 + $0x170] sm:$0xff]
    %v1798 = vld [vmem:[#allocation8 + $0x178] sm:$0xff]
    %v1799 = vld [vmem:[#allocation8 + $0x180] sm:$0xff]
    %v1800 = vld [vmem:[#allocation8 + $0x188] sm:$0xff]
    %v1801 = vld [vmem:[#allocation8 + $0x190] sm:$0xff]
    %v1802 = vld [vmem:[#allocation8 + $0x198] sm:$0xff]
    %v1803 = vld [vmem:[#allocation8 + $0x1a0] sm:$0xff]
    %v1804 = vld [vmem:[#allocation8 + $0x1a8] sm:$0xff]
    %v1805 = vld [vmem:[#allocation8 + $0x1b0] sm:$0xff]
    %v1806 = vld [vmem:[#allocation8 + $0x1b8] sm:$0xff]
    %v1807 = vld [vmem:[#allocation8 + $0x1c0] sm:$0xff]
    %v1808 = vld [vmem:[#allocation8 + $0x1c8] sm:$0xff]
    %v1809 = vld [vmem:[#allocation8 + $0x1d0] sm:$0xff]
    %v1810 = vld [vmem:[#allocation8 + $0x1d8] sm:$0xff]
    %v1811 = vld [vmem:[#allocation8 + $0x1e0] sm:$0xff]
    %v1812 = vld [vmem:[#allocation8 + $0x1e8] sm:$0xff]
    %v1813 = vld [vmem:[#allocation8 + $0x1f0] sm:$0xff]
    %v1814 = vld [vmem:[#allocation8 + $0x1f8] sm:$0xff]
    %1815 = vmatprep.subr.mxu0 %v1812
    %1816 = vmatpush1.msra.mxu0 %v1811
    %1817 = vmatprep.subr.mxu0 %v1808
    %1818 = vmatpush1.msra.mxu0 %v1807
    %1819 = vmatprep.subr.mxu0 %v1804
    %1820 = vmatpush1.msra.mxu0 %v1803
    %1821 = vmatprep.subr.mxu0 %v1800
    %1822 = vmatpush1.msra.mxu0 %v1799
    %1823 = vmatprep.subr.mxu0 %v1796
    %1824 = vmatpush1.msra.mxu0 %v1795
    %1825 = vmatprep.subr.mxu0 %v1792
    %1826 = vmatpush1.msra.mxu0 %v1791
    %1827 = vmatprep.subr.mxu0 %v1788
    %1828 = vmatpush1.msra.mxu0 %v1787
    %1829 = vmatprep.subr.mxu0 %v1784
    %1830 = vmatpush1.msra.mxu0 %v1783
    %1831 = vmatprep.subr.mxu0 %v1780
    %1832 = vmatpush1.msra.mxu0 %v1779
    %1833 = vmatprep.subr.mxu0 %v1776
    %1834 = vmatpush1.msra.mxu0 %v1775
    %1835 = vmatprep.subr.mxu0 %v1772
    %1836 = vmatpush1.msra.mxu0 %v1771
    %1837 = vmatprep.subr.mxu0 %v1768
    %1838 = vmatpush1.msra.mxu0 %v1767
    %1839 = vmatprep.subr.mxu0 %v1764
    %1840 = vmatpush1.msra.mxu0 %v1763
    %1841 = vmatprep.subr.mxu0 %v1760
    %1842 = vmatpush1.msra.mxu0 %v1759
    %1843 = vmatprep.subr.mxu0 %v1756
    %1844 = vmatpush1.msra.mxu0 %v1755
    %1845 = vmatprep.subr.mxu0 %v1752
    %1846 = vmatpush1.msra.mxu0 %v1751
    %1847 = vmatprep.subr.mxu0 0.0
    %1848 = vmatpush2.msra.mxu0 0.0
    %1849 = vmatprep.subr.mxu0 0.0
    %1850 = vmatpush2.msra.mxu0 0.0
    %1851 = vmatprep.subr.mxu0 0.0
    %1852 = vmatpush2.msra.mxu0 0.0
    %1853 = vmatprep.subr.mxu0 0.0
    %1854 = vmatpush2.msra.mxu0 0.0
    %1855 = vmatprep.subr.mxu0 0.0
    %1856 = vmatpush2.msra.mxu0 0.0
    %1857 = vmatprep.subr.mxu0 0.0
    %1858 = vmatpush2.msra.mxu0 0.0
    %1859 = vmatprep.subr.mxu0 0.0
    %1860 = vmatpush2.msra.mxu0 0.0
    %1861 = vmatprep.subr.mxu0 0.0
    %1862 = vmatpush2.msra.mxu0 0.0
    %1863 = vmatprep.subr.mxu0 0.0
    %1864 = vmatpush2.msra.mxu0 0.0
    %1865 = vmatprep.subr.mxu0 0.0
    %1866 = vmatpush2.msra.mxu0 0.0
    %1867 = vmatprep.subr.mxu0 0.0
    %1868 = vmatpush2.msra.mxu0 0.0
    %1869 = vmatprep.subr.mxu0 0.0
    %1870 = vmatpush2.msra.mxu0 0.0
    %1871 = vmatprep.subr.mxu0 0.0
    %1872 = vmatpush2.msra.mxu0 0.0
    %1873 = vmatprep.subr.mxu0 0.0
    %1874 = vmatpush2.msra.mxu0 0.0
    %1875 = vmatprep.subr.mxu0 0.0
    %1876 = vmatpush2.msra.mxu0 0.0
    %1877 = vmatprep.subr.mxu0 0.0
    %1878 = vmatpush2.msra.mxu0 0.0
    %1879 = vmatprep.mubr.f32.mxu0 0.0
    %1880 = vmatmul.mubr.f32.gmra.mxu0 %v1717
    %v1881 = vpop.f32.mrf.mxu0
    %v1882 = vadd.f32 0.0, %v1881
    %v1883 = vpop.f32.mrf.mxu0
    %v1884 = vadd.f32 0.0, %v1883
    %1885 = vdwg.mxu0
    %1886 = vmatprep.subr.mxu0 %v1814
    %1887 = vmatpush1.msra.mxu0 %v1813
    %1888 = vmatprep.subr.mxu0 %v1810
    %1889 = vmatpush1.msra.mxu0 %v1809
    %1890 = vmatprep.subr.mxu0 %v1806
    %1891 = vmatpush1.msra.mxu0 %v1805
    %1892 = vmatprep.subr.mxu0 %v1802
    %1893 = vmatpush1.msra.mxu0 %v1801
    %1894 = vmatprep.subr.mxu0 %v1798
    %1895 = vmatpush1.msra.mxu0 %v1797
    %1896 = vmatprep.subr.mxu0 %v1794
    %1897 = vmatpush1.msra.mxu0 %v1793
    %1898 = vmatprep.subr.mxu0 %v1790
    %1899 = vmatpush1.msra.mxu0 %v1789
    %1900 = vmatprep.subr.mxu0 %v1786
    %1901 = vmatpush1.msra.mxu0 %v1785
    %1902 = vmatprep.subr.mxu0 %v1782
    %1903 = vmatpush1.msra.mxu0 %v1781
    %1904 = vmatprep.subr.mxu0 %v1778
    %1905 = vmatpush1.msra.mxu0 %v1777
    %1906 = vmatprep.subr.mxu0 %v1774
    %1907 = vmatpush1.msra.mxu0 %v1773
    %1908 = vmatprep.subr.mxu0 %v1770
    %1909 = vmatpush1.msra.mxu0 %v1769
    %1910 = vmatprep.subr.mxu0 %v1766
    %1911 = vmatpush1.msra.mxu0 %v1765
    %1912 = vmatprep.subr.mxu0 %v1762
    %1913 = vmatpush1.msra.mxu0 %v1761
    %1914 = vmatprep.subr.mxu0 %v1758
    %1915 = vmatpush1.msra.mxu0 %v1757
    %1916 = vmatprep.subr.mxu0 %v1754
    %1917 = vmatpush1.msra.mxu0 %v1753
    %1918 = vmatprep.subr.mxu0 0.0
    %1919 = vmatpush2.msra.mxu0 0.0
    %1920 = vmatprep.subr.mxu0 0.0
    %1921 = vmatpush2.msra.mxu0 0.0
    %1922 = vmatprep.subr.mxu0 0.0
    %1923 = vmatpush2.msra.mxu0 0.0
    %1924 = vmatprep.subr.mxu0 0.0
    %1925 = vmatpush2.msra.mxu0 0.0
    %1926 = vmatprep.subr.mxu0 0.0
    %1927 = vmatpush2.msra.mxu0 0.0
    %1928 = vmatprep.subr.mxu0 0.0
    %1929 = vmatpush2.msra.mxu0 0.0
    %1930 = vmatprep.subr.mxu0 0.0
    %1931 = vmatpush2.msra.mxu0 0.0
    %1932 = vmatprep.subr.mxu0 0.0
    %1933 = vmatpush2.msra.mxu0 0.0
    %1934 = vmatprep.subr.mxu0 0.0
    %1935 = vmatpush2.msra.mxu0 0.0
    %1936 = vmatprep.subr.mxu0 0.0
    %1937 = vmatpush2.msra.mxu0 0.0
    %1938 = vmatprep.subr.mxu0 0.0
    %1939 = vmatpush2.msra.mxu0 0.0
    %1940 = vmatprep.subr.mxu0 0.0
    %1941 = vmatpush2.msra.mxu0 0.0
    %1942 = vmatprep.subr.mxu0 0.0
    %1943 = vmatpush2.msra.mxu0 0.0
    %1944 = vmatprep.subr.mxu0 0.0
    %1945 = vmatpush2.msra.mxu0 0.0
    %1946 = vmatprep.subr.mxu0 0.0
    %1947 = vmatpush2.msra.mxu0 0.0
    %1948 = vmatprep.subr.mxu0 0.0
    %1949 = vmatpush2.msra.mxu0 0.0
    %1950 = vmatprep.mubr.f32.mxu0 0.0
    %1951 = vmatmul.mubr.f32.gmra.mxu0 %v1717
    %v1952 = vpop.f32.mrf.mxu0
    %v1953 = vadd.f32 0.0, %v1952
    %v1954 = vpop.f32.mrf.mxu0
    %v1955 = vadd.f32 0.0, %v1954
    %1956 = vdwg.mxu0
    %v1957 = vadd.f32 %v1747, %v1882
    %v1958 = vadd.f32 %v1748, %v1884
    %v1959 = vadd.f32 %v1749, %v1953
    %v1960 = vadd.f32 %v1750, %v1955
    %s1961 = scalar_lea.vmem [#allocation2], 320
    %v1962 = vld [vmem:[%s1961 + $0x20] sm:$0xff]
    %v1963 = vld [vmem:[%s1961 + $0x28] sm:$0xff]
    %v1964 = vld [vmem:[%s1961 + $0x30] sm:$0xff]
    %v1965 = vld [vmem:[%s1961 + $0x38] sm:$0xff]
    %v1966 = vld [vmem:[#allocation9] sm:$0xff]
    %v1967 = vld [vmem:[#allocation9 + $0x8] sm:$0xff]
    %v1968 = vld [vmem:[#allocation9 + $0x10] sm:$0xff]
    %v1969 = vld [vmem:[#allocation9 + $0x18] sm:$0xff]
    %v1970 = vld [vmem:[#allocation9 + $0x20] sm:$0xff]
    %v1971 = vld [vmem:[#allocation9 + $0x28] sm:$0xff]
    %v1972 = vld [vmem:[#allocation9 + $0x30] sm:$0xff]
    %v1973 = vld [vmem:[#allocation9 + $0x38] sm:$0xff]
    %v1974 = vld [vmem:[#allocation9 + $0x40] sm:$0xff]
    %v1975 = vld [vmem:[#allocation9 + $0x48] sm:$0xff]
    %v1976 = vld [vmem:[#allocation9 + $0x50] sm:$0xff]
    %v1977 = vld [vmem:[#allocation9 + $0x58] sm:$0xff]
    %v1978 = vld [vmem:[#allocation9 + $0x60] sm:$0xff]
    %v1979 = vld [vmem:[#allocation9 + $0x68] sm:$0xff]
    %v1980 = vld [vmem:[#allocation9 + $0x70] sm:$0xff]
    %v1981 = vld [vmem:[#allocation9 + $0x78] sm:$0xff]
    %v1982 = vld [vmem:[#allocation9 + $0x80] sm:$0xff]
    %v1983 = vld [vmem:[#allocation9 + $0x88] sm:$0xff]
    %v1984 = vld [vmem:[#allocation9 + $0x90] sm:$0xff]
    %v1985 = vld [vmem:[#allocation9 + $0x98] sm:$0xff]
    %v1986 = vld [vmem:[#allocation9 + $0xa0] sm:$0xff]
    %v1987 = vld [vmem:[#allocation9 + $0xa8] sm:$0xff]
    %v1988 = vld [vmem:[#allocation9 + $0xb0] sm:$0xff]
    %v1989 = vld [vmem:[#allocation9 + $0xb8] sm:$0xff]
    %v1990 = vld [vmem:[#allocation9 + $0xc0] sm:$0xff]
    %v1991 = vld [vmem:[#allocation9 + $0xc8] sm:$0xff]
    %v1992 = vld [vmem:[#allocation9 + $0xd0] sm:$0xff]
    %v1993 = vld [vmem:[#allocation9 + $0xd8] sm:$0xff]
    %v1994 = vld [vmem:[#allocation9 + $0xe0] sm:$0xff]
    %v1995 = vld [vmem:[#allocation9 + $0xe8] sm:$0xff]
    %v1996 = vld [vmem:[#allocation9 + $0xf0] sm:$0xff]
    %v1997 = vld [vmem:[#allocation9 + $0xf8] sm:$0xff]
    %v1998 = vld [vmem:[#allocation9 + $0x100] sm:$0xff]
    %v1999 = vld [vmem:[#allocation9 + $0x108] sm:$0xff]
    %v2000 = vld [vmem:[#allocation9 + $0x110] sm:$0xff]
    %v2001 = vld [vmem:[#allocation9 + $0x118] sm:$0xff]
    %v2002 = vld [vmem:[#allocation9 + $0x120] sm:$0xff]
    %v2003 = vld [vmem:[#allocation9 + $0x128] sm:$0xff]
    %v2004 = vld [vmem:[#allocation9 + $0x130] sm:$0xff]
    %v2005 = vld [vmem:[#allocation9 + $0x138] sm:$0xff]
    %v2006 = vld [vmem:[#allocation9 + $0x140] sm:$0xff]
    %v2007 = vld [vmem:[#allocation9 + $0x148] sm:$0xff]
    %v2008 = vld [vmem:[#allocation9 + $0x150] sm:$0xff]
    %v2009 = vld [vmem:[#allocation9 + $0x158] sm:$0xff]
    %v2010 = vld [vmem:[#allocation9 + $0x160] sm:$0xff]
    %v2011 = vld [vmem:[#allocation9 + $0x168] sm:$0xff]
    %v2012 = vld [vmem:[#allocation9 + $0x170] sm:$0xff]
    %v2013 = vld [vmem:[#allocation9 + $0x178] sm:$0xff]
    %v2014 = vld [vmem:[#allocation9 + $0x180] sm:$0xff]
    %v2015 = vld [vmem:[#allocation9 + $0x188] sm:$0xff]
    %v2016 = vld [vmem:[#allocation9 + $0x190] sm:$0xff]
    %v2017 = vld [vmem:[#allocation9 + $0x198] sm:$0xff]
    %v2018 = vld [vmem:[#allocation9 + $0x1a0] sm:$0xff]
    %v2019 = vld [vmem:[#allocation9 + $0x1a8] sm:$0xff]
    %v2020 = vld [vmem:[#allocation9 + $0x1b0] sm:$0xff]
    %v2021 = vld [vmem:[#allocation9 + $0x1b8] sm:$0xff]
    %v2022 = vld [vmem:[#allocation9 + $0x1c0] sm:$0xff]
    %v2023 = vld [vmem:[#allocation9 + $0x1c8] sm:$0xff]
    %v2024 = vld [vmem:[#allocation9 + $0x1d0] sm:$0xff]
    %v2025 = vld [vmem:[#allocation9 + $0x1d8] sm:$0xff]
    %v2026 = vld [vmem:[#allocation9 + $0x1e0] sm:$0xff]
    %v2027 = vld [vmem:[#allocation9 + $0x1e8] sm:$0xff]
    %v2028 = vld [vmem:[#allocation9 + $0x1f0] sm:$0xff]
    %v2029 = vld [vmem:[#allocation9 + $0x1f8] sm:$0xff]
    %2030 = vmatprep.subr.mxu0 %v2027
    %2031 = vmatpush1.msra.mxu0 %v2026
    %2032 = vmatprep.subr.mxu0 %v2023
    %2033 = vmatpush1.msra.mxu0 %v2022
    %2034 = vmatprep.subr.mxu0 %v2019
    %2035 = vmatpush1.msra.mxu0 %v2018
    %2036 = vmatprep.subr.mxu0 %v2015
    %2037 = vmatpush1.msra.mxu0 %v2014
    %2038 = vmatprep.subr.mxu0 %v2011
    %2039 = vmatpush1.msra.mxu0 %v2010
    %2040 = vmatprep.subr.mxu0 %v2007
    %2041 = vmatpush1.msra.mxu0 %v2006
    %2042 = vmatprep.subr.mxu0 %v2003
    %2043 = vmatpush1.msra.mxu0 %v2002
    %2044 = vmatprep.subr.mxu0 %v1999
    %2045 = vmatpush1.msra.mxu0 %v1998
    %2046 = vmatprep.subr.mxu0 %v1995
    %2047 = vmatpush1.msra.mxu0 %v1994
    %2048 = vmatprep.subr.mxu0 %v1991
    %2049 = vmatpush1.msra.mxu0 %v1990
    %2050 = vmatprep.subr.mxu0 %v1987
    %2051 = vmatpush1.msra.mxu0 %v1986
    %2052 = vmatprep.subr.mxu0 %v1983
    %2053 = vmatpush1.msra.mxu0 %v1982
    %2054 = vmatprep.subr.mxu0 %v1979
    %2055 = vmatpush1.msra.mxu0 %v1978
    %2056 = vmatprep.subr.mxu0 %v1975
    %2057 = vmatpush1.msra.mxu0 %v1974
    %2058 = vmatprep.subr.mxu0 %v1971
    %2059 = vmatpush1.msra.mxu0 %v1970
    %2060 = vmatprep.subr.mxu0 %v1967
    %2061 = vmatpush1.msra.mxu0 %v1966
    %2062 = vmatprep.subr.mxu0 0.0
    %2063 = vmatpush2.msra.mxu0 0.0
    %2064 = vmatprep.subr.mxu0 0.0
    %2065 = vmatpush2.msra.mxu0 0.0
    %2066 = vmatprep.subr.mxu0 0.0
    %2067 = vmatpush2.msra.mxu0 0.0
    %2068 = vmatprep.subr.mxu0 0.0
    %2069 = vmatpush2.msra.mxu0 0.0
    %2070 = vmatprep.subr.mxu0 0.0
    %2071 = vmatpush2.msra.mxu0 0.0
    %2072 = vmatprep.subr.mxu0 0.0
    %2073 = vmatpush2.msra.mxu0 0.0
    %2074 = vmatprep.subr.mxu0 0.0
    %2075 = vmatpush2.msra.mxu0 0.0
    %2076 = vmatprep.subr.mxu0 0.0
    %2077 = vmatpush2.msra.mxu0 0.0
    %2078 = vmatprep.subr.mxu0 0.0
    %2079 = vmatpush2.msra.mxu0 0.0
    %2080 = vmatprep.subr.mxu0 0.0
    %2081 = vmatpush2.msra.mxu0 0.0
    %2082 = vmatprep.subr.mxu0 0.0
    %2083 = vmatpush2.msra.mxu0 0.0
    %2084 = vmatprep.subr.mxu0 0.0
    %2085 = vmatpush2.msra.mxu0 0.0
    %2086 = vmatprep.subr.mxu0 0.0
    %2087 = vmatpush2.msra.mxu0 0.0
    %2088 = vmatprep.subr.mxu0 0.0
    %2089 = vmatpush2.msra.mxu0 0.0
    %2090 = vmatprep.subr.mxu0 0.0
    %2091 = vmatpush2.msra.mxu0 0.0
    %2092 = vmatprep.subr.mxu0 0.0
    %2093 = vmatpush2.msra.mxu0 0.0
    %2094 = vmatprep.mubr.f32.mxu0 0.0
    %2095 = vmatmul.mubr.f32.gmra.mxu0 %v1741
    %v2096 = vpop.f32.mrf.mxu0
    %v2097 = vadd.f32 0.0, %v2096
    %v2098 = vpop.f32.mrf.mxu0
    %v2099 = vadd.f32 0.0, %v2098
    %2100 = vdwg.mxu0
    %2101 = vmatprep.subr.mxu0 %v2029
    %2102 = vmatpush1.msra.mxu0 %v2028
    %2103 = vmatprep.subr.mxu0 %v2025
    %2104 = vmatpush1.msra.mxu0 %v2024
    %2105 = vmatprep.subr.mxu0 %v2021
    %2106 = vmatpush1.msra.mxu0 %v2020
    %2107 = vmatprep.subr.mxu0 %v2017
    %2108 = vmatpush1.msra.mxu0 %v2016
    %2109 = vmatprep.subr.mxu0 %v2013
    %2110 = vmatpush1.msra.mxu0 %v2012
    %2111 = vmatprep.subr.mxu0 %v2009
    %2112 = vmatpush1.msra.mxu0 %v2008
    %2113 = vmatprep.subr.mxu0 %v2005
    %2114 = vmatpush1.msra.mxu0 %v2004
    %2115 = vmatprep.subr.mxu0 %v2001
    %2116 = vmatpush1.msra.mxu0 %v2000
    %2117 = vmatprep.subr.mxu0 %v1997
    %2118 = vmatpush1.msra.mxu0 %v1996
    %2119 = vmatprep.subr.mxu0 %v1993
    %2120 = vmatpush1.msra.mxu0 %v1992
    %2121 = vmatprep.subr.mxu0 %v1989
    %2122 = vmatpush1.msra.mxu0 %v1988
    %2123 = vmatprep.subr.mxu0 %v1985
    %2124 = vmatpush1.msra.mxu0 %v1984
    %2125 = vmatprep.subr.mxu0 %v1981
    %2126 = vmatpush1.msra.mxu0 %v1980
    %2127 = vmatprep.subr.mxu0 %v1977
    %2128 = vmatpush1.msra.mxu0 %v1976
    %2129 = vmatprep.subr.mxu0 %v1973
    %2130 = vmatpush1.msra.mxu0 %v1972
    %2131 = vmatprep.subr.mxu0 %v1969
    %2132 = vmatpush1.msra.mxu0 %v1968
    %2133 = vmatprep.subr.mxu0 0.0
    %2134 = vmatpush2.msra.mxu0 0.0
    %2135 = vmatprep.subr.mxu0 0.0
    %2136 = vmatpush2.msra.mxu0 0.0
    %2137 = vmatprep.subr.mxu0 0.0
    %2138 = vmatpush2.msra.mxu0 0.0
    %2139 = vmatprep.subr.mxu0 0.0
    %2140 = vmatpush2.msra.mxu0 0.0
    %2141 = vmatprep.subr.mxu0 0.0
    %2142 = vmatpush2.msra.mxu0 0.0
    %2143 = vmatprep.subr.mxu0 0.0
    %2144 = vmatpush2.msra.mxu0 0.0
    %2145 = vmatprep.subr.mxu0 0.0
    %2146 = vmatpush2.msra.mxu0 0.0
    %2147 = vmatprep.subr.mxu0 0.0
    %2148 = vmatpush2.msra.mxu0 0.0
    %2149 = vmatprep.subr.mxu0 0.0
    %2150 = vmatpush2.msra.mxu0 0.0
    %2151 = vmatprep.subr.mxu0 0.0
    %2152 = vmatpush2.msra.mxu0 0.0
    %2153 = vmatprep.subr.mxu0 0.0
    %2154 = vmatpush2.msra.mxu0 0.0
    %2155 = vmatprep.subr.mxu0 0.0
    %2156 = vmatpush2.msra.mxu0 0.0
    %2157 = vmatprep.subr.mxu0 0.0
    %2158 = vmatpush2.msra.mxu0 0.0
    %2159 = vmatprep.subr.mxu0 0.0
    %2160 = vmatpush2.msra.mxu0 0.0
    %2161 = vmatprep.subr.mxu0 0.0
    %2162 = vmatpush2.msra.mxu0 0.0
    %2163 = vmatprep.subr.mxu0 0.0
    %2164 = vmatpush2.msra.mxu0 0.0
    %2165 = vmatprep.mubr.f32.mxu0 0.0
    %2166 = vmatmul.mubr.f32.gmra.mxu0 %v1741
    %v2167 = vpop.f32.mrf.mxu0
    %v2168 = vadd.f32 0.0, %v2167
    %v2169 = vpop.f32.mrf.mxu0
    %v2170 = vadd.f32 0.0, %v2169
    %2171 = vdwg.mxu0
    %v2172 = vadd.f32 %v1962, %v2097
    %v2173 = vadd.f32 %v1963, %v2099
    %v2174 = vadd.f32 %v1964, %v2168
    %v2175 = vadd.f32 %v1965, %v2170
    %v2176 = vxor.u32 %v1957, 2147483648
    %v2177 = vmul.f32 %v2176, 1.442695
    %v2178 = vpow.pop %v2177
    %v2179 = vadd.f32 %v2178, 1.0
    %v2180 = vrcp.pop %v2179
    %v2181 = vmul.f32 1.0, %v2180
    %v2182 = vxor.u32 %v1958, 2147483648
    %v2183 = vmul.f32 %v2182, 1.442695
    %v2184 = vpow.pop %v2183
    %v2185 = vadd.f32 %v2184, 1.0
    %v2186 = vrcp.pop %v2185
    %v2187 = vmul.f32 1.0, %v2186
    %v2188 = vtanh.pop %v1959
    %v2189 = vxor.u32 %v1960, 2147483648
    %v2190 = vmul.f32 %v2189, 1.442695
    %v2191 = vpow.pop %v2190
    %v2192 = vadd.f32 %v2191, 1.0
    %v2193 = vrcp.pop %v2192
    %v2194 = vmul.f32 1.0, %v2193
    %v2195 = vmul.f32 %v2187, %v1715
    %v2196 = vmul.f32 %v2181, %v2188
    %v2197 = vadd.f32 %v2195, %v2196
    %v2198 = vtanh.pop %v2197
    %v2199 = vmul.f32 %v2194, %v2198
    %v2200 = vxor.u32 %v2172, 2147483648
    %v2201 = vmul.f32 %v2200, 1.442695
    %v2202 = vpow.pop %v2201
    %v2203 = vadd.f32 %v2202, 1.0
    %v2204 = vrcp.pop %v2203
    %v2205 = vmul.f32 1.0, %v2204
    %v2206 = vxor.u32 %v2173, 2147483648
    %v2207 = vmul.f32 %v2206, 1.442695
    %v2208 = vpow.pop %v2207
    %v2209 = vadd.f32 %v2208, 1.0
    %v2210 = vrcp.pop %v2209
    %v2211 = vmul.f32 1.0, %v2210
    %v2212 = vtanh.pop %v2174
    %v2213 = vxor.u32 %v2175, 2147483648
    %v2214 = vmul.f32 %v2213, 1.442695
    %v2215 = vpow.pop %v2214
    %v2216 = vadd.f32 %v2215, 1.0
    %v2217 = vrcp.pop %v2216
    %v2218 = vmul.f32 1.0, %v2217
    %v2219 = vmul.f32 %v2211, %v1739
    %v2220 = vmul.f32 %v2205, %v2212
    %v2221 = vadd.f32 %v2219, %v2220
    %v2222 = vtanh.pop %v2221
    %v2223 = vmul.f32 %v2218, %v2222
    %s2224 = scalar_lea.vmem [#allocation12], 32
    %2225 = vst [vmem:[%s2224] sm:$0xff] %v2199
    %s2226 = scalar_lea.vmem [#allocation12], 80
    %2227 = vst [vmem:[%s2226 + $0x8] sm:$0xff] %v2223
    %s2228 = scalar_lea.vmem [#allocation2], 192
    %v2229 = vld [vmem:[%s2228] sm:$0xff]
    %v2230 = vld [vmem:[%s2228 + $0x8] sm:$0xff]
    %v2231 = vld [vmem:[%s2228 + $0x10] sm:$0xff]
    %v2232 = vld [vmem:[%s2228 + $0x18] sm:$0xff]
    %v2233 = vld [vmem:[#allocation8] sm:$0xff]
    %v2234 = vld [vmem:[#allocation8 + $0x8] sm:$0xff]
    %v2235 = vld [vmem:[#allocation8 + $0x10] sm:$0xff]
    %v2236 = vld [vmem:[#allocation8 + $0x18] sm:$0xff]
    %v2237 = vld [vmem:[#allocation8 + $0x20] sm:$0xff]
    %v2238 = vld [vmem:[#allocation8 + $0x28] sm:$0xff]
    %v2239 = vld [vmem:[#allocation8 + $0x30] sm:$0xff]
    %v2240 = vld [vmem:[#allocation8 + $0x38] sm:$0xff]
    %v2241 = vld [vmem:[#allocation8 + $0x40] sm:$0xff]
    %v2242 = vld [vmem:[#allocation8 + $0x48] sm:$0xff]
    %v2243 = vld [vmem:[#allocation8 + $0x50] sm:$0xff]
    %v2244 = vld [vmem:[#allocation8 + $0x58] sm:$0xff]
    %v2245 = vld [vmem:[#allocation8 + $0x60] sm:$0xff]
    %v2246 = vld [vmem:[#allocation8 + $0x68] sm:$0xff]
    %v2247 = vld [vmem:[#allocation8 + $0x70] sm:$0xff]
    %v2248 = vld [vmem:[#allocation8 + $0x78] sm:$0xff]
    %v2249 = vld [vmem:[#allocation8 + $0x80] sm:$0xff]
    %v2250 = vld [vmem:[#allocation8 + $0x88] sm:$0xff]
    %v2251 = vld [vmem:[#allocation8 + $0x90] sm:$0xff]
    %v2252 = vld [vmem:[#allocation8 + $0x98] sm:$0xff]
    %v2253 = vld [vmem:[#allocation8 + $0xa0] sm:$0xff]
    %v2254 = vld [vmem:[#allocation8 + $0xa8] sm:$0xff]
    %v2255 = vld [vmem:[#allocation8 + $0xb0] sm:$0xff]
    %v2256 = vld [vmem:[#allocation8 + $0xb8] sm:$0xff]
    %v2257 = vld [vmem:[#allocation8 + $0xc0] sm:$0xff]
    %v2258 = vld [vmem:[#allocation8 + $0xc8] sm:$0xff]
    %v2259 = vld [vmem:[#allocation8 + $0xd0] sm:$0xff]
    %v2260 = vld [vmem:[#allocation8 + $0xd8] sm:$0xff]
    %v2261 = vld [vmem:[#allocation8 + $0xe0] sm:$0xff]
    %v2262 = vld [vmem:[#allocation8 + $0xe8] sm:$0xff]
    %v2263 = vld [vmem:[#allocation8 + $0xf0] sm:$0xff]
    %v2264 = vld [vmem:[#allocation8 + $0xf8] sm:$0xff]
    %v2265 = vld [vmem:[#allocation8 + $0x100] sm:$0xff]
    %v2266 = vld [vmem:[#allocation8 + $0x108] sm:$0xff]
    %v2267 = vld [vmem:[#allocation8 + $0x110] sm:$0xff]
    %v2268 = vld [vmem:[#allocation8 + $0x118] sm:$0xff]
    %v2269 = vld [vmem:[#allocation8 + $0x120] sm:$0xff]
    %v2270 = vld [vmem:[#allocation8 + $0x128] sm:$0xff]
    %v2271 = vld [vmem:[#allocation8 + $0x130] sm:$0xff]
    %v2272 = vld [vmem:[#allocation8 + $0x138] sm:$0xff]
    %v2273 = vld [vmem:[#allocation8 + $0x140] sm:$0xff]
    %v2274 = vld [vmem:[#allocation8 + $0x148] sm:$0xff]
    %v2275 = vld [vmem:[#allocation8 + $0x150] sm:$0xff]
    %v2276 = vld [vmem:[#allocation8 + $0x158] sm:$0xff]
    %v2277 = vld [vmem:[#allocation8 + $0x160] sm:$0xff]
    %v2278 = vld [vmem:[#allocation8 + $0x168] sm:$0xff]
    %v2279 = vld [vmem:[#allocation8 + $0x170] sm:$0xff]
    %v2280 = vld [vmem:[#allocation8 + $0x178] sm:$0xff]
    %v2281 = vld [vmem:[#allocation8 + $0x180] sm:$0xff]
    %v2282 = vld [vmem:[#allocation8 + $0x188] sm:$0xff]
    %v2283 = vld [vmem:[#allocation8 + $0x190] sm:$0xff]
    %v2284 = vld [vmem:[#allocation8 + $0x198] sm:$0xff]
    %v2285 = vld [vmem:[#allocation8 + $0x1a0] sm:$0xff]
    %v2286 = vld [vmem:[#allocation8 + $0x1a8] sm:$0xff]
    %v2287 = vld [vmem:[#allocation8 + $0x1b0] sm:$0xff]
    %v2288 = vld [vmem:[#allocation8 + $0x1b8] sm:$0xff]
    %v2289 = vld [vmem:[#allocation8 + $0x1c0] sm:$0xff]
    %v2290 = vld [vmem:[#allocation8 + $0x1c8] sm:$0xff]
    %v2291 = vld [vmem:[#allocation8 + $0x1d0] sm:$0xff]
    %v2292 = vld [vmem:[#allocation8 + $0x1d8] sm:$0xff]
    %v2293 = vld [vmem:[#allocation8 + $0x1e0] sm:$0xff]
    %v2294 = vld [vmem:[#allocation8 + $0x1e8] sm:$0xff]
    %v2295 = vld [vmem:[#allocation8 + $0x1f0] sm:$0xff]
    %v2296 = vld [vmem:[#allocation8 + $0x1f8] sm:$0xff]
    %2297 = vmatprep.subr.mxu0 %v2294
    %2298 = vmatpush1.msra.mxu0 %v2293
    %2299 = vmatprep.subr.mxu0 %v2290
    %2300 = vmatpush1.msra.mxu0 %v2289
    %2301 = vmatprep.subr.mxu0 %v2286
    %2302 = vmatpush1.msra.mxu0 %v2285
    %2303 = vmatprep.subr.mxu0 %v2282
    %2304 = vmatpush1.msra.mxu0 %v2281
    %2305 = vmatprep.subr.mxu0 %v2278
    %2306 = vmatpush1.msra.mxu0 %v2277
    %2307 = vmatprep.subr.mxu0 %v2274
    %2308 = vmatpush1.msra.mxu0 %v2273
    %2309 = vmatprep.subr.mxu0 %v2270
    %2310 = vmatpush1.msra.mxu0 %v2269
    %2311 = vmatprep.subr.mxu0 %v2266
    %2312 = vmatpush1.msra.mxu0 %v2265
    %2313 = vmatprep.subr.mxu0 %v2262
    %2314 = vmatpush1.msra.mxu0 %v2261
    %2315 = vmatprep.subr.mxu0 %v2258
    %2316 = vmatpush1.msra.mxu0 %v2257
    %2317 = vmatprep.subr.mxu0 %v2254
    %2318 = vmatpush1.msra.mxu0 %v2253
    %2319 = vmatprep.subr.mxu0 %v2250
    %2320 = vmatpush1.msra.mxu0 %v2249
    %2321 = vmatprep.subr.mxu0 %v2246
    %2322 = vmatpush1.msra.mxu0 %v2245
    %2323 = vmatprep.subr.mxu0 %v2242
    %2324 = vmatpush1.msra.mxu0 %v2241
    %2325 = vmatprep.subr.mxu0 %v2238
    %2326 = vmatpush1.msra.mxu0 %v2237
    %2327 = vmatprep.subr.mxu0 %v2234
    %2328 = vmatpush1.msra.mxu0 %v2233
    %2329 = vmatprep.subr.mxu0 0.0
    %2330 = vmatpush2.msra.mxu0 0.0
    %2331 = vmatprep.subr.mxu0 0.0
    %2332 = vmatpush2.msra.mxu0 0.0
    %2333 = vmatprep.subr.mxu0 0.0
    %2334 = vmatpush2.msra.mxu0 0.0
    %2335 = vmatprep.subr.mxu0 0.0
    %2336 = vmatpush2.msra.mxu0 0.0
    %2337 = vmatprep.subr.mxu0 0.0
    %2338 = vmatpush2.msra.mxu0 0.0
    %2339 = vmatprep.subr.mxu0 0.0
    %2340 = vmatpush2.msra.mxu0 0.0
    %2341 = vmatprep.subr.mxu0 0.0
    %2342 = vmatpush2.msra.mxu0 0.0
    %2343 = vmatprep.subr.mxu0 0.0
    %2344 = vmatpush2.msra.mxu0 0.0
    %2345 = vmatprep.subr.mxu0 0.0
    %2346 = vmatpush2.msra.mxu0 0.0
    %2347 = vmatprep.subr.mxu0 0.0
    %2348 = vmatpush2.msra.mxu0 0.0
    %2349 = vmatprep.subr.mxu0 0.0
    %2350 = vmatpush2.msra.mxu0 0.0
    %2351 = vmatprep.subr.mxu0 0.0
    %2352 = vmatpush2.msra.mxu0 0.0
    %2353 = vmatprep.subr.mxu0 0.0
    %2354 = vmatpush2.msra.mxu0 0.0
    %2355 = vmatprep.subr.mxu0 0.0
    %2356 = vmatpush2.msra.mxu0 0.0
    %2357 = vmatprep.subr.mxu0 0.0
    %2358 = vmatpush2.msra.mxu0 0.0
    %2359 = vmatprep.subr.mxu0 0.0
    %2360 = vmatpush2.msra.mxu0 0.0
    %2361 = vmatprep.mubr.f32.mxu0 0.0
    %2362 = vmatmul.mubr.f32.gmra.mxu0 %v2199
    %v2363 = vpop.f32.mrf.mxu0
    %v2364 = vadd.f32 0.0, %v2363
    %v2365 = vpop.f32.mrf.mxu0
    %v2366 = vadd.f32 0.0, %v2365
    %2367 = vdwg.mxu0
    %2368 = vmatprep.subr.mxu0 %v2296
    %2369 = vmatpush1.msra.mxu0 %v2295
    %2370 = vmatprep.subr.mxu0 %v2292
    %2371 = vmatpush1.msra.mxu0 %v2291
    %2372 = vmatprep.subr.mxu0 %v2288
    %2373 = vmatpush1.msra.mxu0 %v2287
    %2374 = vmatprep.subr.mxu0 %v2284
    %2375 = vmatpush1.msra.mxu0 %v2283
    %2376 = vmatprep.subr.mxu0 %v2280
    %2377 = vmatpush1.msra.mxu0 %v2279
    %2378 = vmatprep.subr.mxu0 %v2276
    %2379 = vmatpush1.msra.mxu0 %v2275
    %2380 = vmatprep.subr.mxu0 %v2272
    %2381 = vmatpush1.msra.mxu0 %v2271
    %2382 = vmatprep.subr.mxu0 %v2268
    %2383 = vmatpush1.msra.mxu0 %v2267
    %2384 = vmatprep.subr.mxu0 %v2264
    %2385 = vmatpush1.msra.mxu0 %v2263
    %2386 = vmatprep.subr.mxu0 %v2260
    %2387 = vmatpush1.msra.mxu0 %v2259
    %2388 = vmatprep.subr.mxu0 %v2256
    %2389 = vmatpush1.msra.mxu0 %v2255
    %2390 = vmatprep.subr.mxu0 %v2252
    %2391 = vmatpush1.msra.mxu0 %v2251
    %2392 = vmatprep.subr.mxu0 %v2248
    %2393 = vmatpush1.msra.mxu0 %v2247
    %2394 = vmatprep.subr.mxu0 %v2244
    %2395 = vmatpush1.msra.mxu0 %v2243
    %2396 = vmatprep.subr.mxu0 %v2240
    %2397 = vmatpush1.msra.mxu0 %v2239
    %2398 = vmatprep.subr.mxu0 %v2236
    %2399 = vmatpush1.msra.mxu0 %v2235
    %2400 = vmatprep.subr.mxu0 0.0
    %2401 = vmatpush2.msra.mxu0 0.0
    %2402 = vmatprep.subr.mxu0 0.0
    %2403 = vmatpush2.msra.mxu0 0.0
    %2404 = vmatprep.subr.mxu0 0.0
    %2405 = vmatpush2.msra.mxu0 0.0
    %2406 = vmatprep.subr.mxu0 0.0
    %2407 = vmatpush2.msra.mxu0 0.0
    %2408 = vmatprep.subr.mxu0 0.0
    %2409 = vmatpush2.msra.mxu0 0.0
    %2410 = vmatprep.subr.mxu0 0.0
    %2411 = vmatpush2.msra.mxu0 0.0
    %2412 = vmatprep.subr.mxu0 0.0
    %2413 = vmatpush2.msra.mxu0 0.0
    %2414 = vmatprep.subr.mxu0 0.0
    %2415 = vmatpush2.msra.mxu0 0.0
    %2416 = vmatprep.subr.mxu0 0.0
    %2417 = vmatpush2.msra.mxu0 0.0
    %2418 = vmatprep.subr.mxu0 0.0
    %2419 = vmatpush2.msra.mxu0 0.0
    %2420 = vmatprep.subr.mxu0 0.0
    %2421 = vmatpush2.msra.mxu0 0.0
    %2422 = vmatprep.subr.mxu0 0.0
    %2423 = vmatpush2.msra.mxu0 0.0
    %2424 = vmatprep.subr.mxu0 0.0
    %2425 = vmatpush2.msra.mxu0 0.0
    %2426 = vmatprep.subr.mxu0 0.0
    %2427 = vmatpush2.msra.mxu0 0.0
    %2428 = vmatprep.subr.mxu0 0.0
    %2429 = vmatpush2.msra.mxu0 0.0
    %2430 = vmatprep.subr.mxu0 0.0
    %2431 = vmatpush2.msra.mxu0 0.0
    %2432 = vmatprep.mubr.f32.mxu0 0.0
    %2433 = vmatmul.mubr.f32.gmra.mxu0 %v2199
    %v2434 = vpop.f32.mrf.mxu0
    %v2435 = vadd.f32 0.0, %v2434
    %v2436 = vpop.f32.mrf.mxu0
    %v2437 = vadd.f32 0.0, %v2436
    %2438 = vdwg.mxu0
    %v2439 = vadd.f32 %v2229, %v2364
    %v2440 = vadd.f32 %v2230, %v2366
    %v2441 = vadd.f32 %v2231, %v2435
    %v2442 = vadd.f32 %v2232, %v2437
    %s2443 = scalar_lea.vmem [#allocation2], 256
    %v2444 = vld [vmem:[%s2443 + $0x20] sm:$0xff]
    %v2445 = vld [vmem:[%s2443 + $0x28] sm:$0xff]
    %v2446 = vld [vmem:[%s2443 + $0x30] sm:$0xff]
    %v2447 = vld [vmem:[%s2443 + $0x38] sm:$0xff]
    %v2448 = vld [vmem:[#allocation9] sm:$0xff]
    %v2449 = vld [vmem:[#allocation9 + $0x8] sm:$0xff]
    %v2450 = vld [vmem:[#allocation9 + $0x10] sm:$0xff]
    %v2451 = vld [vmem:[#allocation9 + $0x18] sm:$0xff]
    %v2452 = vld [vmem:[#allocation9 + $0x20] sm:$0xff]
    %v2453 = vld [vmem:[#allocation9 + $0x28] sm:$0xff]
    %v2454 = vld [vmem:[#allocation9 + $0x30] sm:$0xff]
    %v2455 = vld [vmem:[#allocation9 + $0x38] sm:$0xff]
    %v2456 = vld [vmem:[#allocation9 + $0x40] sm:$0xff]
    %v2457 = vld [vmem:[#allocation9 + $0x48] sm:$0xff]
    %v2458 = vld [vmem:[#allocation9 + $0x50] sm:$0xff]
    %v2459 = vld [vmem:[#allocation9 + $0x58] sm:$0xff]
    %v2460 = vld [vmem:[#allocation9 + $0x60] sm:$0xff]
    %v2461 = vld [vmem:[#allocation9 + $0x68] sm:$0xff]
    %v2462 = vld [vmem:[#allocation9 + $0x70] sm:$0xff]
    %v2463 = vld [vmem:[#allocation9 + $0x78] sm:$0xff]
    %v2464 = vld [vmem:[#allocation9 + $0x80] sm:$0xff]
    %v2465 = vld [vmem:[#allocation9 + $0x88] sm:$0xff]
    %v2466 = vld [vmem:[#allocation9 + $0x90] sm:$0xff]
    %v2467 = vld [vmem:[#allocation9 + $0x98] sm:$0xff]
    %v2468 = vld [vmem:[#allocation9 + $0xa0] sm:$0xff]
    %v2469 = vld [vmem:[#allocation9 + $0xa8] sm:$0xff]
    %v2470 = vld [vmem:[#allocation9 + $0xb0] sm:$0xff]
    %v2471 = vld [vmem:[#allocation9 + $0xb8] sm:$0xff]
    %v2472 = vld [vmem:[#allocation9 + $0xc0] sm:$0xff]
    %v2473 = vld [vmem:[#allocation9 + $0xc8] sm:$0xff]
    %v2474 = vld [vmem:[#allocation9 + $0xd0] sm:$0xff]
    %v2475 = vld [vmem:[#allocation9 + $0xd8] sm:$0xff]
    %v2476 = vld [vmem:[#allocation9 + $0xe0] sm:$0xff]
    %v2477 = vld [vmem:[#allocation9 + $0xe8] sm:$0xff]
    %v2478 = vld [vmem:[#allocation9 + $0xf0] sm:$0xff]
    %v2479 = vld [vmem:[#allocation9 + $0xf8] sm:$0xff]
    %v2480 = vld [vmem:[#allocation9 + $0x100] sm:$0xff]
    %v2481 = vld [vmem:[#allocation9 + $0x108] sm:$0xff]
    %v2482 = vld [vmem:[#allocation9 + $0x110] sm:$0xff]
    %v2483 = vld [vmem:[#allocation9 + $0x118] sm:$0xff]
    %v2484 = vld [vmem:[#allocation9 + $0x120] sm:$0xff]
    %v2485 = vld [vmem:[#allocation9 + $0x128] sm:$0xff]
    %v2486 = vld [vmem:[#allocation9 + $0x130] sm:$0xff]
    %v2487 = vld [vmem:[#allocation9 + $0x138] sm:$0xff]
    %v2488 = vld [vmem:[#allocation9 + $0x140] sm:$0xff]
    %v2489 = vld [vmem:[#allocation9 + $0x148] sm:$0xff]
    %v2490 = vld [vmem:[#allocation9 + $0x150] sm:$0xff]
    %v2491 = vld [vmem:[#allocation9 + $0x158] sm:$0xff]
    %v2492 = vld [vmem:[#allocation9 + $0x160] sm:$0xff]
    %v2493 = vld [vmem:[#allocation9 + $0x168] sm:$0xff]
    %v2494 = vld [vmem:[#allocation9 + $0x170] sm:$0xff]
    %v2495 = vld [vmem:[#allocation9 + $0x178] sm:$0xff]
    %v2496 = vld [vmem:[#allocation9 + $0x180] sm:$0xff]
    %v2497 = vld [vmem:[#allocation9 + $0x188] sm:$0xff]
    %v2498 = vld [vmem:[#allocation9 + $0x190] sm:$0xff]
    %v2499 = vld [vmem:[#allocation9 + $0x198] sm:$0xff]
    %v2500 = vld [vmem:[#allocation9 + $0x1a0] sm:$0xff]
    %v2501 = vld [vmem:[#allocation9 + $0x1a8] sm:$0xff]
    %v2502 = vld [vmem:[#allocation9 + $0x1b0] sm:$0xff]
    %v2503 = vld [vmem:[#allocation9 + $0x1b8] sm:$0xff]
    %v2504 = vld [vmem:[#allocation9 + $0x1c0] sm:$0xff]
    %v2505 = vld [vmem:[#allocation9 + $0x1c8] sm:$0xff]
    %v2506 = vld [vmem:[#allocation9 + $0x1d0] sm:$0xff]
    %v2507 = vld [vmem:[#allocation9 + $0x1d8] sm:$0xff]
    %v2508 = vld [vmem:[#allocation9 + $0x1e0] sm:$0xff]
    %v2509 = vld [vmem:[#allocation9 + $0x1e8] sm:$0xff]
    %v2510 = vld [vmem:[#allocation9 + $0x1f0] sm:$0xff]
    %v2511 = vld [vmem:[#allocation9 + $0x1f8] sm:$0xff]
    %2512 = vmatprep.subr.mxu0 %v2509
    %2513 = vmatpush1.msra.mxu0 %v2508
    %2514 = vmatprep.subr.mxu0 %v2505
    %2515 = vmatpush1.msra.mxu0 %v2504
    %2516 = vmatprep.subr.mxu0 %v2501
    %2517 = vmatpush1.msra.mxu0 %v2500
    %2518 = vmatprep.subr.mxu0 %v2497
    %2519 = vmatpush1.msra.mxu0 %v2496
    %2520 = vmatprep.subr.mxu0 %v2493
    %2521 = vmatpush1.msra.mxu0 %v2492
    %2522 = vmatprep.subr.mxu0 %v2489
    %2523 = vmatpush1.msra.mxu0 %v2488
    %2524 = vmatprep.subr.mxu0 %v2485
    %2525 = vmatpush1.msra.mxu0 %v2484
    %2526 = vmatprep.subr.mxu0 %v2481
    %2527 = vmatpush1.msra.mxu0 %v2480
    %2528 = vmatprep.subr.mxu0 %v2477
    %2529 = vmatpush1.msra.mxu0 %v2476
    %2530 = vmatprep.subr.mxu0 %v2473
    %2531 = vmatpush1.msra.mxu0 %v2472
    %2532 = vmatprep.subr.mxu0 %v2469
    %2533 = vmatpush1.msra.mxu0 %v2468
    %2534 = vmatprep.subr.mxu0 %v2465
    %2535 = vmatpush1.msra.mxu0 %v2464
    %2536 = vmatprep.subr.mxu0 %v2461
    %2537 = vmatpush1.msra.mxu0 %v2460
    %2538 = vmatprep.subr.mxu0 %v2457
    %2539 = vmatpush1.msra.mxu0 %v2456
    %2540 = vmatprep.subr.mxu0 %v2453
    %2541 = vmatpush1.msra.mxu0 %v2452
    %2542 = vmatprep.subr.mxu0 %v2449
    %2543 = vmatpush1.msra.mxu0 %v2448
    %2544 = vmatprep.subr.mxu0 0.0
    %2545 = vmatpush2.msra.mxu0 0.0
    %2546 = vmatprep.subr.mxu0 0.0
    %2547 = vmatpush2.msra.mxu0 0.0
    %2548 = vmatprep.subr.mxu0 0.0
    %2549 = vmatpush2.msra.mxu0 0.0
    %2550 = vmatprep.subr.mxu0 0.0
    %2551 = vmatpush2.msra.mxu0 0.0
    %2552 = vmatprep.subr.mxu0 0.0
    %2553 = vmatpush2.msra.mxu0 0.0
    %2554 = vmatprep.subr.mxu0 0.0
    %2555 = vmatpush2.msra.mxu0 0.0
    %2556 = vmatprep.subr.mxu0 0.0
    %2557 = vmatpush2.msra.mxu0 0.0
    %2558 = vmatprep.subr.mxu0 0.0
    %2559 = vmatpush2.msra.mxu0 0.0
    %2560 = vmatprep.subr.mxu0 0.0
    %2561 = vmatpush2.msra.mxu0 0.0
    %2562 = vmatprep.subr.mxu0 0.0
    %2563 = vmatpush2.msra.mxu0 0.0
    %2564 = vmatprep.subr.mxu0 0.0
    %2565 = vmatpush2.msra.mxu0 0.0
    %2566 = vmatprep.subr.mxu0 0.0
    %2567 = vmatpush2.msra.mxu0 0.0
    %2568 = vmatprep.subr.mxu0 0.0
    %2569 = vmatpush2.msra.mxu0 0.0
    %2570 = vmatprep.subr.mxu0 0.0
    %2571 = vmatpush2.msra.mxu0 0.0
    %2572 = vmatprep.subr.mxu0 0.0
    %2573 = vmatpush2.msra.mxu0 0.0
    %2574 = vmatprep.subr.mxu0 0.0
    %2575 = vmatpush2.msra.mxu0 0.0
    %2576 = vmatprep.mubr.f32.mxu0 0.0
    %2577 = vmatmul.mubr.f32.gmra.mxu0 %v2223
    %v2578 = vpop.f32.mrf.mxu0
    %v2579 = vadd.f32 0.0, %v2578
    %v2580 = vpop.f32.mrf.mxu0
    %v2581 = vadd.f32 0.0, %v2580
    %2582 = vdwg.mxu0
    %2583 = vmatprep.subr.mxu0 %v2511
    %2584 = vmatpush1.msra.mxu0 %v2510
    %2585 = vmatprep.subr.mxu0 %v2507
    %2586 = vmatpush1.msra.mxu0 %v2506
    %2587 = vmatprep.subr.mxu0 %v2503
    %2588 = vmatpush1.msra.mxu0 %v2502
    %2589 = vmatprep.subr.mxu0 %v2499
    %2590 = vmatpush1.msra.mxu0 %v2498
    %2591 = vmatprep.subr.mxu0 %v2495
    %2592 = vmatpush1.msra.mxu0 %v2494
    %2593 = vmatprep.subr.mxu0 %v2491
    %2594 = vmatpush1.msra.mxu0 %v2490
    %2595 = vmatprep.subr.mxu0 %v2487
    %2596 = vmatpush1.msra.mxu0 %v2486
    %2597 = vmatprep.subr.mxu0 %v2483
    %2598 = vmatpush1.msra.mxu0 %v2482
    %2599 = vmatprep.subr.mxu0 %v2479
    %2600 = vmatpush1.msra.mxu0 %v2478
    %2601 = vmatprep.subr.mxu0 %v2475
    %2602 = vmatpush1.msra.mxu0 %v2474
    %2603 = vmatprep.subr.mxu0 %v2471
    %2604 = vmatpush1.msra.mxu0 %v2470
    %2605 = vmatprep.subr.mxu0 %v2467
    %2606 = vmatpush1.msra.mxu0 %v2466
    %2607 = vmatprep.subr.mxu0 %v2463
    %2608 = vmatpush1.msra.mxu0 %v2462
    %2609 = vmatprep.subr.mxu0 %v2459
    %2610 = vmatpush1.msra.mxu0 %v2458
    %2611 = vmatprep.subr.mxu0 %v2455
    %2612 = vmatpush1.msra.mxu0 %v2454
    %2613 = vmatprep.subr.mxu0 %v2451
    %2614 = vmatpush1.msra.mxu0 %v2450
    %2615 = vmatprep.subr.mxu0 0.0
    %2616 = vmatpush2.msra.mxu0 0.0
    %2617 = vmatprep.subr.mxu0 0.0
    %2618 = vmatpush2.msra.mxu0 0.0
    %2619 = vmatprep.subr.mxu0 0.0
    %2620 = vmatpush2.msra.mxu0 0.0
    %2621 = vmatprep.subr.mxu0 0.0
    %2622 = vmatpush2.msra.mxu0 0.0
    %2623 = vmatprep.subr.mxu0 0.0
    %2624 = vmatpush2.msra.mxu0 0.0
    %2625 = vmatprep.subr.mxu0 0.0
    %2626 = vmatpush2.msra.mxu0 0.0
    %2627 = vmatprep.subr.mxu0 0.0
    %2628 = vmatpush2.msra.mxu0 0.0
    %2629 = vmatprep.subr.mxu0 0.0
    %2630 = vmatpush2.msra.mxu0 0.0
    %2631 = vmatprep.subr.mxu0 0.0
    %2632 = vmatpush2.msra.mxu0 0.0
    %2633 = vmatprep.subr.mxu0 0.0
    %2634 = vmatpush2.msra.mxu0 0.0
    %2635 = vmatprep.subr.mxu0 0.0
    %2636 = vmatpush2.msra.mxu0 0.0
    %2637 = vmatprep.subr.mxu0 0.0
    %2638 = vmatpush2.msra.mxu0 0.0
    %2639 = vmatprep.subr.mxu0 0.0
    %2640 = vmatpush2.msra.mxu0 0.0
    %2641 = vmatprep.subr.mxu0 0.0
    %2642 = vmatpush2.msra.mxu0 0.0
    %2643 = vmatprep.subr.mxu0 0.0
    %2644 = vmatpush2.msra.mxu0 0.0
    %2645 = vmatprep.subr.mxu0 0.0
    %2646 = vmatpush2.msra.mxu0 0.0
    %2647 = vmatprep.mubr.f32.mxu0 0.0
    %2648 = vmatmul.mubr.f32.gmra.mxu0 %v2223
    %v2649 = vpop.f32.mrf.mxu0
    %v2650 = vadd.f32 0.0, %v2649
    %v2651 = vpop.f32.mrf.mxu0
    %v2652 = vadd.f32 0.0, %v2651
    %2653 = vdwg.mxu0
    %v2654 = vadd.f32 %v2444, %v2579
    %v2655 = vadd.f32 %v2445, %v2581
    %v2656 = vadd.f32 %v2446, %v2650
    %v2657 = vadd.f32 %v2447, %v2652
    %v2658 = vxor.u32 %v2439, 2147483648
    %v2659 = vmul.f32 %v2658, 1.442695
    %v2660 = vpow.pop %v2659
    %v2661 = vadd.f32 %v2660, 1.0
    %v2662 = vrcp.pop %v2661
    %v2663 = vmul.f32 1.0, %v2662
    %v2664 = vxor.u32 %v2440, 2147483648
    %v2665 = vmul.f32 %v2664, 1.442695
    %v2666 = vpow.pop %v2665
    %v2667 = vadd.f32 %v2666, 1.0
    %v2668 = vrcp.pop %v2667
    %v2669 = vmul.f32 1.0, %v2668
    %v2670 = vtanh.pop %v2441
    %v2671 = vxor.u32 %v2442, 2147483648
    %v2672 = vmul.f32 %v2671, 1.442695
    %v2673 = vpow.pop %v2672
    %v2674 = vadd.f32 %v2673, 1.0
    %v2675 = vrcp.pop %v2674
    %v2676 = vmul.f32 1.0, %v2675
    %v2677 = vmul.f32 %v2669, %v2197
    %v2678 = vmul.f32 %v2663, %v2670
    %v2679 = vadd.f32 %v2677, %v2678
    %v2680 = vtanh.pop %v2679
    %v2681 = vmul.f32 %v2676, %v2680
    %v2682 = vxor.u32 %v2654, 2147483648
    %v2683 = vmul.f32 %v2682, 1.442695
    %v2684 = vpow.pop %v2683
    %v2685 = vadd.f32 %v2684, 1.0
    %v2686 = vrcp.pop %v2685
    %v2687 = vmul.f32 1.0, %v2686
    %v2688 = vxor.u32 %v2655, 2147483648
    %v2689 = vmul.f32 %v2688, 1.442695
    %v2690 = vpow.pop %v2689
    %v2691 = vadd.f32 %v2690, 1.0
    %v2692 = vrcp.pop %v2691
    %v2693 = vmul.f32 1.0, %v2692
    %v2694 = vtanh.pop %v2656
    %v2695 = vxor.u32 %v2657, 2147483648
    %v2696 = vmul.f32 %v2695, 1.442695
    %v2697 = vpow.pop %v2696
    %v2698 = vadd.f32 %v2697, 1.0
    %v2699 = vrcp.pop %v2698
    %v2700 = vmul.f32 1.0, %v2699
    %v2701 = vmul.f32 %v2693, %v2221
    %v2702 = vmul.f32 %v2687, %v2694
    %v2703 = vadd.f32 %v2701, %v2702
    %v2704 = vtanh.pop %v2703
    %v2705 = vmul.f32 %v2700, %v2704
    %s2706 = scalar_lea.vmem [#allocation12], 48
    %2707 = vst [vmem:[%s2706] sm:$0xff] %v2681
    %s2708 = scalar_lea.vmem [#allocation12], 64
    %2709 = vst [vmem:[%s2708 + $0x8] sm:$0xff] %v2705
    %v2710 = vld [vmem:[%s2443] sm:$0xff]
    %v2711 = vld [vmem:[%s2443 + $0x8] sm:$0xff]
    %v2712 = vld [vmem:[%s2443 + $0x10] sm:$0xff]
    %v2713 = vld [vmem:[%s2443 + $0x18] sm:$0xff]
    %v2714 = vld [vmem:[#allocation8] sm:$0xff]
    %v2715 = vld [vmem:[#allocation8 + $0x8] sm:$0xff]
    %v2716 = vld [vmem:[#allocation8 + $0x10] sm:$0xff]
    %v2717 = vld [vmem:[#allocation8 + $0x18] sm:$0xff]
    %v2718 = vld [vmem:[#allocation8 + $0x20] sm:$0xff]
    %v2719 = vld [vmem:[#allocation8 + $0x28] sm:$0xff]
    %v2720 = vld [vmem:[#allocation8 + $0x30] sm:$0xff]
    %v2721 = vld [vmem:[#allocation8 + $0x38] sm:$0xff]
    %v2722 = vld [vmem:[#allocation8 + $0x40] sm:$0xff]
    %v2723 = vld [vmem:[#allocation8 + $0x48] sm:$0xff]
    %v2724 = vld [vmem:[#allocation8 + $0x50] sm:$0xff]
    %v2725 = vld [vmem:[#allocation8 + $0x58] sm:$0xff]
    %v2726 = vld [vmem:[#allocation8 + $0x60] sm:$0xff]
    %v2727 = vld [vmem:[#allocation8 + $0x68] sm:$0xff]
    %v2728 = vld [vmem:[#allocation8 + $0x70] sm:$0xff]
    %v2729 = vld [vmem:[#allocation8 + $0x78] sm:$0xff]
    %v2730 = vld [vmem:[#allocation8 + $0x80] sm:$0xff]
    %v2731 = vld [vmem:[#allocation8 + $0x88] sm:$0xff]
    %v2732 = vld [vmem:[#allocation8 + $0x90] sm:$0xff]
    %v2733 = vld [vmem:[#allocation8 + $0x98] sm:$0xff]
    %v2734 = vld [vmem:[#allocation8 + $0xa0] sm:$0xff]
    %v2735 = vld [vmem:[#allocation8 + $0xa8] sm:$0xff]
    %v2736 = vld [vmem:[#allocation8 + $0xb0] sm:$0xff]
    %v2737 = vld [vmem:[#allocation8 + $0xb8] sm:$0xff]
    %v2738 = vld [vmem:[#allocation8 + $0xc0] sm:$0xff]
    %v2739 = vld [vmem:[#allocation8 + $0xc8] sm:$0xff]
    %v2740 = vld [vmem:[#allocation8 + $0xd0] sm:$0xff]
    %v2741 = vld [vmem:[#allocation8 + $0xd8] sm:$0xff]
    %v2742 = vld [vmem:[#allocation8 + $0xe0] sm:$0xff]
    %v2743 = vld [vmem:[#allocation8 + $0xe8] sm:$0xff]
    %v2744 = vld [vmem:[#allocation8 + $0xf0] sm:$0xff]
    %v2745 = vld [vmem:[#allocation8 + $0xf8] sm:$0xff]
    %v2746 = vld [vmem:[#allocation8 + $0x100] sm:$0xff]
    %v2747 = vld [vmem:[#allocation8 + $0x108] sm:$0xff]
    %v2748 = vld [vmem:[#allocation8 + $0x110] sm:$0xff]
    %v2749 = vld [vmem:[#allocation8 + $0x118] sm:$0xff]
    %v2750 = vld [vmem:[#allocation8 + $0x120] sm:$0xff]
    %v2751 = vld [vmem:[#allocation8 + $0x128] sm:$0xff]
    %v2752 = vld [vmem:[#allocation8 + $0x130] sm:$0xff]
    %v2753 = vld [vmem:[#allocation8 + $0x138] sm:$0xff]
    %v2754 = vld [vmem:[#allocation8 + $0x140] sm:$0xff]
    %v2755 = vld [vmem:[#allocation8 + $0x148] sm:$0xff]
    %v2756 = vld [vmem:[#allocation8 + $0x150] sm:$0xff]
    %v2757 = vld [vmem:[#allocation8 + $0x158] sm:$0xff]
    %v2758 = vld [vmem:[#allocation8 + $0x160] sm:$0xff]
    %v2759 = vld [vmem:[#allocation8 + $0x168] sm:$0xff]
    %v2760 = vld [vmem:[#allocation8 + $0x170] sm:$0xff]
    %v2761 = vld [vmem:[#allocation8 + $0x178] sm:$0xff]
    %v2762 = vld [vmem:[#allocation8 + $0x180] sm:$0xff]
    %v2763 = vld [vmem:[#allocation8 + $0x188] sm:$0xff]
    %v2764 = vld [vmem:[#allocation8 + $0x190] sm:$0xff]
    %v2765 = vld [vmem:[#allocation8 + $0x198] sm:$0xff]
    %v2766 = vld [vmem:[#allocation8 + $0x1a0] sm:$0xff]
    %v2767 = vld [vmem:[#allocation8 + $0x1a8] sm:$0xff]
    %v2768 = vld [vmem:[#allocation8 + $0x1b0] sm:$0xff]
    %v2769 = vld [vmem:[#allocation8 + $0x1b8] sm:$0xff]
    %v2770 = vld [vmem:[#allocation8 + $0x1c0] sm:$0xff]
    %v2771 = vld [vmem:[#allocation8 + $0x1c8] sm:$0xff]
    %v2772 = vld [vmem:[#allocation8 + $0x1d0] sm:$0xff]
    %v2773 = vld [vmem:[#allocation8 + $0x1d8] sm:$0xff]
    %v2774 = vld [vmem:[#allocation8 + $0x1e0] sm:$0xff]
    %v2775 = vld [vmem:[#allocation8 + $0x1e8] sm:$0xff]
    %v2776 = vld [vmem:[#allocation8 + $0x1f0] sm:$0xff]
    %v2777 = vld [vmem:[#allocation8 + $0x1f8] sm:$0xff]
    %2778 = vmatprep.subr.mxu0 %v2775
    %2779 = vmatpush1.msra.mxu0 %v2774
    %2780 = vmatprep.subr.mxu0 %v2771
    %2781 = vmatpush1.msra.mxu0 %v2770
    %2782 = vmatprep.subr.mxu0 %v2767
    %2783 = vmatpush1.msra.mxu0 %v2766
    %2784 = vmatprep.subr.mxu0 %v2763
    %2785 = vmatpush1.msra.mxu0 %v2762
    %2786 = vmatprep.subr.mxu0 %v2759
    %2787 = vmatpush1.msra.mxu0 %v2758
    %2788 = vmatprep.subr.mxu0 %v2755
    %2789 = vmatpush1.msra.mxu0 %v2754
    %2790 = vmatprep.subr.mxu0 %v2751
    %2791 = vmatpush1.msra.mxu0 %v2750
    %2792 = vmatprep.subr.mxu0 %v2747
    %2793 = vmatpush1.msra.mxu0 %v2746
    %2794 = vmatprep.subr.mxu0 %v2743
    %2795 = vmatpush1.msra.mxu0 %v2742
    %2796 = vmatprep.subr.mxu0 %v2739
    %2797 = vmatpush1.msra.mxu0 %v2738
    %2798 = vmatprep.subr.mxu0 %v2735
    %2799 = vmatpush1.msra.mxu0 %v2734
    %2800 = vmatprep.subr.mxu0 %v2731
    %2801 = vmatpush1.msra.mxu0 %v2730
    %2802 = vmatprep.subr.mxu0 %v2727
    %2803 = vmatpush1.msra.mxu0 %v2726
    %2804 = vmatprep.subr.mxu0 %v2723
    %2805 = vmatpush1.msra.mxu0 %v2722
    %2806 = vmatprep.subr.mxu0 %v2719
    %2807 = vmatpush1.msra.mxu0 %v2718
    %2808 = vmatprep.subr.mxu0 %v2715
    %2809 = vmatpush1.msra.mxu0 %v2714
    %2810 = vmatprep.subr.mxu0 0.0
    %2811 = vmatpush2.msra.mxu0 0.0
    %2812 = vmatprep.subr.mxu0 0.0
    %2813 = vmatpush2.msra.mxu0 0.0
    %2814 = vmatprep.subr.mxu0 0.0
    %2815 = vmatpush2.msra.mxu0 0.0
    %2816 = vmatprep.subr.mxu0 0.0
    %2817 = vmatpush2.msra.mxu0 0.0
    %2818 = vmatprep.subr.mxu0 0.0
    %2819 = vmatpush2.msra.mxu0 0.0
    %2820 = vmatprep.subr.mxu0 0.0
    %2821 = vmatpush2.msra.mxu0 0.0
    %2822 = vmatprep.subr.mxu0 0.0
    %2823 = vmatpush2.msra.mxu0 0.0
    %2824 = vmatprep.subr.mxu0 0.0
    %2825 = vmatpush2.msra.mxu0 0.0
    %2826 = vmatprep.subr.mxu0 0.0
    %2827 = vmatpush2.msra.mxu0 0.0
    %2828 = vmatprep.subr.mxu0 0.0
    %2829 = vmatpush2.msra.mxu0 0.0
    %2830 = vmatprep.subr.mxu0 0.0
    %2831 = vmatpush2.msra.mxu0 0.0
    %2832 = vmatprep.subr.mxu0 0.0
    %2833 = vmatpush2.msra.mxu0 0.0
    %2834 = vmatprep.subr.mxu0 0.0
    %2835 = vmatpush2.msra.mxu0 0.0
    %2836 = vmatprep.subr.mxu0 0.0
    %2837 = vmatpush2.msra.mxu0 0.0
    %2838 = vmatprep.subr.mxu0 0.0
    %2839 = vmatpush2.msra.mxu0 0.0
    %2840 = vmatprep.subr.mxu0 0.0
    %2841 = vmatpush2.msra.mxu0 0.0
    %2842 = vmatprep.mubr.f32.mxu0 0.0
    %2843 = vmatmul.mubr.f32.gmra.mxu0 %v2681
    %v2844 = vpop.f32.mrf.mxu0
    %v2845 = vadd.f32 0.0, %v2844
    %v2846 = vpop.f32.mrf.mxu0
    %v2847 = vadd.f32 0.0, %v2846
    %2848 = vdwg.mxu0
    %2849 = vmatprep.subr.mxu0 %v2777
    %2850 = vmatpush1.msra.mxu0 %v2776
    %2851 = vmatprep.subr.mxu0 %v2773
    %2852 = vmatpush1.msra.mxu0 %v2772
    %2853 = vmatprep.subr.mxu0 %v2769
    %2854 = vmatpush1.msra.mxu0 %v2768
    %2855 = vmatprep.subr.mxu0 %v2765
    %2856 = vmatpush1.msra.mxu0 %v2764
    %2857 = vmatprep.subr.mxu0 %v2761
    %2858 = vmatpush1.msra.mxu0 %v2760
    %2859 = vmatprep.subr.mxu0 %v2757
    %2860 = vmatpush1.msra.mxu0 %v2756
    %2861 = vmatprep.subr.mxu0 %v2753
    %2862 = vmatpush1.msra.mxu0 %v2752
    %2863 = vmatprep.subr.mxu0 %v2749
    %2864 = vmatpush1.msra.mxu0 %v2748
    %2865 = vmatprep.subr.mxu0 %v2745
    %2866 = vmatpush1.msra.mxu0 %v2744
    %2867 = vmatprep.subr.mxu0 %v2741
    %2868 = vmatpush1.msra.mxu0 %v2740
    %2869 = vmatprep.subr.mxu0 %v2737
    %2870 = vmatpush1.msra.mxu0 %v2736
    %2871 = vmatprep.subr.mxu0 %v2733
    %2872 = vmatpush1.msra.mxu0 %v2732
    %2873 = vmatprep.subr.mxu0 %v2729
    %2874 = vmatpush1.msra.mxu0 %v2728
    %2875 = vmatprep.subr.mxu0 %v2725
    %2876 = vmatpush1.msra.mxu0 %v2724
    %2877 = vmatprep.subr.mxu0 %v2721
    %2878 = vmatpush1.msra.mxu0 %v2720
    %2879 = vmatprep.subr.mxu0 %v2717
    %2880 = vmatpush1.msra.mxu0 %v2716
    %2881 = vmatprep.subr.mxu0 0.0
    %2882 = vmatpush2.msra.mxu0 0.0
    %2883 = vmatprep.subr.mxu0 0.0
    %2884 = vmatpush2.msra.mxu0 0.0
    %2885 = vmatprep.subr.mxu0 0.0
    %2886 = vmatpush2.msra.mxu0 0.0
    %2887 = vmatprep.subr.mxu0 0.0
    %2888 = vmatpush2.msra.mxu0 0.0
    %2889 = vmatprep.subr.mxu0 0.0
    %2890 = vmatpush2.msra.mxu0 0.0
    %2891 = vmatprep.subr.mxu0 0.0
    %2892 = vmatpush2.msra.mxu0 0.0
    %2893 = vmatprep.subr.mxu0 0.0
    %2894 = vmatpush2.msra.mxu0 0.0
    %2895 = vmatprep.subr.mxu0 0.0
    %2896 = vmatpush2.msra.mxu0 0.0
    %2897 = vmatprep.subr.mxu0 0.0
    %2898 = vmatpush2.msra.mxu0 0.0
    %2899 = vmatprep.subr.mxu0 0.0
    %2900 = vmatpush2.msra.mxu0 0.0
    %2901 = vmatprep.subr.mxu0 0.0
    %2902 = vmatpush2.msra.mxu0 0.0
    %2903 = vmatprep.subr.mxu0 0.0
    %2904 = vmatpush2.msra.mxu0 0.0
    %2905 = vmatprep.subr.mxu0 0.0
    %2906 = vmatpush2.msra.mxu0 0.0
    %2907 = vmatprep.subr.mxu0 0.0
    %2908 = vmatpush2.msra.mxu0 0.0
    %2909 = vmatprep.subr.mxu0 0.0
    %2910 = vmatpush2.msra.mxu0 0.0
    %2911 = vmatprep.subr.mxu0 0.0
    %2912 = vmatpush2.msra.mxu0 0.0
    %2913 = vmatprep.mubr.f32.mxu0 0.0
    %2914 = vmatmul.mubr.f32.gmra.mxu0 %v2681
    %v2915 = vpop.f32.mrf.mxu0
    %v2916 = vadd.f32 0.0, %v2915
    %v2917 = vpop.f32.mrf.mxu0
    %v2918 = vadd.f32 0.0, %v2917
    %2919 = vdwg.mxu0
    %v2920 = vadd.f32 %v2710, %v2845
    %v2921 = vadd.f32 %v2711, %v2847
    %v2922 = vadd.f32 %v2712, %v2916
    %v2923 = vadd.f32 %v2713, %v2918
    %v2924 = vld [vmem:[%s2228 + $0x20] sm:$0xff]
    %v2925 = vld [vmem:[%s2228 + $0x28] sm:$0xff]
    %v2926 = vld [vmem:[%s2228 + $0x30] sm:$0xff]
    %v2927 = vld [vmem:[%s2228 + $0x38] sm:$0xff]
    %v2928 = vld [vmem:[#allocation9] sm:$0xff]
    %v2929 = vld [vmem:[#allocation9 + $0x8] sm:$0xff]
    %v2930 = vld [vmem:[#allocation9 + $0x10] sm:$0xff]
    %v2931 = vld [vmem:[#allocation9 + $0x18] sm:$0xff]
    %v2932 = vld [vmem:[#allocation9 + $0x20] sm:$0xff]
    %v2933 = vld [vmem:[#allocation9 + $0x28] sm:$0xff]
    %v2934 = vld [vmem:[#allocation9 + $0x30] sm:$0xff]
    %v2935 = vld [vmem:[#allocation9 + $0x38] sm:$0xff]
    %v2936 = vld [vmem:[#allocation9 + $0x40] sm:$0xff]
    %v2937 = vld [vmem:[#allocation9 + $0x48] sm:$0xff]
    %v2938 = vld [vmem:[#allocation9 + $0x50] sm:$0xff]
    %v2939 = vld [vmem:[#allocation9 + $0x58] sm:$0xff]
    %v2940 = vld [vmem:[#allocation9 + $0x60] sm:$0xff]
    %v2941 = vld [vmem:[#allocation9 + $0x68] sm:$0xff]
    %v2942 = vld [vmem:[#allocation9 + $0x70] sm:$0xff]
    %v2943 = vld [vmem:[#allocation9 + $0x78] sm:$0xff]
    %v2944 = vld [vmem:[#allocation9 + $0x80] sm:$0xff]
    %v2945 = vld [vmem:[#allocation9 + $0x88] sm:$0xff]
    %v2946 = vld [vmem:[#allocation9 + $0x90] sm:$0xff]
    %v2947 = vld [vmem:[#allocation9 + $0x98] sm:$0xff]
    %v2948 = vld [vmem:[#allocation9 + $0xa0] sm:$0xff]
    %v2949 = vld [vmem:[#allocation9 + $0xa8] sm:$0xff]
    %v2950 = vld [vmem:[#allocation9 + $0xb0] sm:$0xff]
    %v2951 = vld [vmem:[#allocation9 + $0xb8] sm:$0xff]
    %v2952 = vld [vmem:[#allocation9 + $0xc0] sm:$0xff]
    %v2953 = vld [vmem:[#allocation9 + $0xc8] sm:$0xff]
    %v2954 = vld [vmem:[#allocation9 + $0xd0] sm:$0xff]
    %v2955 = vld [vmem:[#allocation9 + $0xd8] sm:$0xff]
    %v2956 = vld [vmem:[#allocation9 + $0xe0] sm:$0xff]
    %v2957 = vld [vmem:[#allocation9 + $0xe8] sm:$0xff]
    %v2958 = vld [vmem:[#allocation9 + $0xf0] sm:$0xff]
    %v2959 = vld [vmem:[#allocation9 + $0xf8] sm:$0xff]
    %v2960 = vld [vmem:[#allocation9 + $0x100] sm:$0xff]
    %v2961 = vld [vmem:[#allocation9 + $0x108] sm:$0xff]
    %v2962 = vld [vmem:[#allocation9 + $0x110] sm:$0xff]
    %v2963 = vld [vmem:[#allocation9 + $0x118] sm:$0xff]
    %v2964 = vld [vmem:[#allocation9 + $0x120] sm:$0xff]
    %v2965 = vld [vmem:[#allocation9 + $0x128] sm:$0xff]
    %v2966 = vld [vmem:[#allocation9 + $0x130] sm:$0xff]
    %v2967 = vld [vmem:[#allocation9 + $0x138] sm:$0xff]
    %v2968 = vld [vmem:[#allocation9 + $0x140] sm:$0xff]
    %v2969 = vld [vmem:[#allocation9 + $0x148] sm:$0xff]
    %v2970 = vld [vmem:[#allocation9 + $0x150] sm:$0xff]
    %v2971 = vld [vmem:[#allocation9 + $0x158] sm:$0xff]
    %v2972 = vld [vmem:[#allocation9 + $0x160] sm:$0xff]
    %v2973 = vld [vmem:[#allocation9 + $0x168] sm:$0xff]
    %v2974 = vld [vmem:[#allocation9 + $0x170] sm:$0xff]
    %v2975 = vld [vmem:[#allocation9 + $0x178] sm:$0xff]
    %v2976 = vld [vmem:[#allocation9 + $0x180] sm:$0xff]
    %v2977 = vld [vmem:[#allocation9 + $0x188] sm:$0xff]
    %v2978 = vld [vmem:[#allocation9 + $0x190] sm:$0xff]
    %v2979 = vld [vmem:[#allocation9 + $0x198] sm:$0xff]
    %v2980 = vld [vmem:[#allocation9 + $0x1a0] sm:$0xff]
    %v2981 = vld [vmem:[#allocation9 + $0x1a8] sm:$0xff]
    %v2982 = vld [vmem:[#allocation9 + $0x1b0] sm:$0xff]
    %v2983 = vld [vmem:[#allocation9 + $0x1b8] sm:$0xff]
    %v2984 = vld [vmem:[#allocation9 + $0x1c0] sm:$0xff]
    %v2985 = vld [vmem:[#allocation9 + $0x1c8] sm:$0xff]
    %v2986 = vld [vmem:[#allocation9 + $0x1d0] sm:$0xff]
    %v2987 = vld [vmem:[#allocation9 + $0x1d8] sm:$0xff]
    %v2988 = vld [vmem:[#allocation9 + $0x1e0] sm:$0xff]
    %v2989 = vld [vmem:[#allocation9 + $0x1e8] sm:$0xff]
    %v2990 = vld [vmem:[#allocation9 + $0x1f0] sm:$0xff]
    %v2991 = vld [vmem:[#allocation9 + $0x1f8] sm:$0xff]
    %2992 = vmatprep.subr.mxu0 %v2989
    %2993 = vmatpush1.msra.mxu0 %v2988
    %2994 = vmatprep.subr.mxu0 %v2985
    %2995 = vmatpush1.msra.mxu0 %v2984
    %2996 = vmatprep.subr.mxu0 %v2981
    %2997 = vmatpush1.msra.mxu0 %v2980
    %2998 = vmatprep.subr.mxu0 %v2977
    %2999 = vmatpush1.msra.mxu0 %v2976
    %3000 = vmatprep.subr.mxu0 %v2973
    %3001 = vmatpush1.msra.mxu0 %v2972
    %3002 = vmatprep.subr.mxu0 %v2969
    %3003 = vmatpush1.msra.mxu0 %v2968
    %3004 = vmatprep.subr.mxu0 %v2965
    %3005 = vmatpush1.msra.mxu0 %v2964
    %3006 = vmatprep.subr.mxu0 %v2961
    %3007 = vmatpush1.msra.mxu0 %v2960
    %3008 = vmatprep.subr.mxu0 %v2957
    %3009 = vmatpush1.msra.mxu0 %v2956
    %3010 = vmatprep.subr.mxu0 %v2953
    %3011 = vmatpush1.msra.mxu0 %v2952
    %3012 = vmatprep.subr.mxu0 %v2949
    %3013 = vmatpush1.msra.mxu0 %v2948
    %3014 = vmatprep.subr.mxu0 %v2945
    %3015 = vmatpush1.msra.mxu0 %v2944
    %3016 = vmatprep.subr.mxu0 %v2941
    %3017 = vmatpush1.msra.mxu0 %v2940
    %3018 = vmatprep.subr.mxu0 %v2937
    %3019 = vmatpush1.msra.mxu0 %v2936
    %3020 = vmatprep.subr.mxu0 %v2933
    %3021 = vmatpush1.msra.mxu0 %v2932
    %3022 = vmatprep.subr.mxu0 %v2929
    %3023 = vmatpush1.msra.mxu0 %v2928
    %3024 = vmatprep.subr.mxu0 0.0
    %3025 = vmatpush2.msra.mxu0 0.0
    %3026 = vmatprep.subr.mxu0 0.0
    %3027 = vmatpush2.msra.mxu0 0.0
    %3028 = vmatprep.subr.mxu0 0.0
    %3029 = vmatpush2.msra.mxu0 0.0
    %3030 = vmatprep.subr.mxu0 0.0
    %3031 = vmatpush2.msra.mxu0 0.0
    %3032 = vmatprep.subr.mxu0 0.0
    %3033 = vmatpush2.msra.mxu0 0.0
    %3034 = vmatprep.subr.mxu0 0.0
    %3035 = vmatpush2.msra.mxu0 0.0
    %3036 = vmatprep.subr.mxu0 0.0
    %3037 = vmatpush2.msra.mxu0 0.0
    %3038 = vmatprep.subr.mxu0 0.0
    %3039 = vmatpush2.msra.mxu0 0.0
    %3040 = vmatprep.subr.mxu0 0.0
    %3041 = vmatpush2.msra.mxu0 0.0
    %3042 = vmatprep.subr.mxu0 0.0
    %3043 = vmatpush2.msra.mxu0 0.0
    %3044 = vmatprep.subr.mxu0 0.0
    %3045 = vmatpush2.msra.mxu0 0.0
    %3046 = vmatprep.subr.mxu0 0.0
    %3047 = vmatpush2.msra.mxu0 0.0
    %3048 = vmatprep.subr.mxu0 0.0
    %3049 = vmatpush2.msra.mxu0 0.0
    %3050 = vmatprep.subr.mxu0 0.0
    %3051 = vmatpush2.msra.mxu0 0.0
    %3052 = vmatprep.subr.mxu0 0.0
    %3053 = vmatpush2.msra.mxu0 0.0
    %3054 = vmatprep.subr.mxu0 0.0
    %3055 = vmatpush2.msra.mxu0 0.0
    %3056 = vmatprep.mubr.f32.mxu0 0.0
    %3057 = vmatmul.mubr.f32.gmra.mxu0 %v2705
    %v3058 = vpop.f32.mrf.mxu0
    %v3059 = vadd.f32 0.0, %v3058
    %v3060 = vpop.f32.mrf.mxu0
    %v3061 = vadd.f32 0.0, %v3060
    %3062 = vdwg.mxu0
    %3063 = vmatprep.subr.mxu0 %v2991
    %3064 = vmatpush1.msra.mxu0 %v2990
    %3065 = vmatprep.subr.mxu0 %v2987
    %3066 = vmatpush1.msra.mxu0 %v2986
    %3067 = vmatprep.subr.mxu0 %v2983
    %3068 = vmatpush1.msra.mxu0 %v2982
    %3069 = vmatprep.subr.mxu0 %v2979
    %3070 = vmatpush1.msra.mxu0 %v2978
    %3071 = vmatprep.subr.mxu0 %v2975
    %3072 = vmatpush1.msra.mxu0 %v2974
    %3073 = vmatprep.subr.mxu0 %v2971
    %3074 = vmatpush1.msra.mxu0 %v2970
    %3075 = vmatprep.subr.mxu0 %v2967
    %3076 = vmatpush1.msra.mxu0 %v2966
    %3077 = vmatprep.subr.mxu0 %v2963
    %3078 = vmatpush1.msra.mxu0 %v2962
    %3079 = vmatprep.subr.mxu0 %v2959
    %3080 = vmatpush1.msra.mxu0 %v2958
    %3081 = vmatprep.subr.mxu0 %v2955
    %3082 = vmatpush1.msra.mxu0 %v2954
    %3083 = vmatprep.subr.mxu0 %v2951
    %3084 = vmatpush1.msra.mxu0 %v2950
    %3085 = vmatprep.subr.mxu0 %v2947
    %3086 = vmatpush1.msra.mxu0 %v2946
    %3087 = vmatprep.subr.mxu0 %v2943
    %3088 = vmatpush1.msra.mxu0 %v2942
    %3089 = vmatprep.subr.mxu0 %v2939
    %3090 = vmatpush1.msra.mxu0 %v2938
    %3091 = vmatprep.subr.mxu0 %v2935
    %3092 = vmatpush1.msra.mxu0 %v2934
    %3093 = vmatprep.subr.mxu0 %v2931
    %3094 = vmatpush1.msra.mxu0 %v2930
    %3095 = vmatprep.subr.mxu0 0.0
    %3096 = vmatpush2.msra.mxu0 0.0
    %3097 = vmatprep.subr.mxu0 0.0
    %3098 = vmatpush2.msra.mxu0 0.0
    %3099 = vmatprep.subr.mxu0 0.0
    %3100 = vmatpush2.msra.mxu0 0.0
    %3101 = vmatprep.subr.mxu0 0.0
    %3102 = vmatpush2.msra.mxu0 0.0
    %3103 = vmatprep.subr.mxu0 0.0
    %3104 = vmatpush2.msra.mxu0 0.0
    %3105 = vmatprep.subr.mxu0 0.0
    %3106 = vmatpush2.msra.mxu0 0.0
    %3107 = vmatprep.subr.mxu0 0.0
    %3108 = vmatpush2.msra.mxu0 0.0
    %3109 = vmatprep.subr.mxu0 0.0
    %3110 = vmatpush2.msra.mxu0 0.0
    %3111 = vmatprep.subr.mxu0 0.0
    %3112 = vmatpush2.msra.mxu0 0.0
    %3113 = vmatprep.subr.mxu0 0.0
    %3114 = vmatpush2.msra.mxu0 0.0
    %3115 = vmatprep.subr.mxu0 0.0
    %3116 = vmatpush2.msra.mxu0 0.0
    %3117 = vmatprep.subr.mxu0 0.0
    %3118 = vmatpush2.msra.mxu0 0.0
    %3119 = vmatprep.subr.mxu0 0.0
    %3120 = vmatpush2.msra.mxu0 0.0
    %3121 = vmatprep.subr.mxu0 0.0
    %3122 = vmatpush2.msra.mxu0 0.0
    %3123 = vmatprep.subr.mxu0 0.0
    %3124 = vmatpush2.msra.mxu0 0.0
    %3125 = vmatprep.subr.mxu0 0.0
    %3126 = vmatpush2.msra.mxu0 0.0
    %3127 = vmatprep.mubr.f32.mxu0 0.0
    %3128 = vmatmul.mubr.f32.gmra.mxu0 %v2705
    %v3129 = vpop.f32.mrf.mxu0
    %v3130 = vadd.f32 0.0, %v3129
    %v3131 = vpop.f32.mrf.mxu0
    %v3132 = vadd.f32 0.0, %v3131
    %3133 = vdwg.mxu0
    %v3134 = vadd.f32 %v2924, %v3059
    %v3135 = vadd.f32 %v2925, %v3061
    %v3136 = vadd.f32 %v2926, %v3130
    %v3137 = vadd.f32 %v2927, %v3132
    %v3138 = vxor.u32 %v2920, 2147483648
    %v3139 = vmul.f32 %v3138, 1.442695
    %v3140 = vpow.pop %v3139
    %v3141 = vadd.f32 %v3140, 1.0
    %v3142 = vrcp.pop %v3141
    %v3143 = vmul.f32 1.0, %v3142
    %v3144 = vxor.u32 %v2921, 2147483648
    %v3145 = vmul.f32 %v3144, 1.442695
    %v3146 = vpow.pop %v3145
    %v3147 = vadd.f32 %v3146, 1.0
    %v3148 = vrcp.pop %v3147
    %v3149 = vmul.f32 1.0, %v3148
    %v3150 = vtanh.pop %v2922
    %v3151 = vxor.u32 %v2923, 2147483648
    %v3152 = vmul.f32 %v3151, 1.442695
    %v3153 = vpow.pop %v3152
    %v3154 = vadd.f32 %v3153, 1.0
    %v3155 = vrcp.pop %v3154
    %v3156 = vmul.f32 1.0, %v3155
    %v3157 = vmul.f32 %v3149, %v2679
    %v3158 = vmul.f32 %v3143, %v3150
    %v3159 = vadd.f32 %v3157, %v3158
    %v3160 = vtanh.pop %v3159
    %v3161 = vmul.f32 %v3156, %v3160
    %v3162 = vxor.u32 %v3134, 2147483648
    %v3163 = vmul.f32 %v3162, 1.442695
    %v3164 = vpow.pop %v3163
    %v3165 = vadd.f32 %v3164, 1.0
    %v3166 = vrcp.pop %v3165
    %v3167 = vmul.f32 1.0, %v3166
    %v3168 = vxor.u32 %v3135, 2147483648
    %v3169 = vmul.f32 %v3168, 1.442695
    %v3170 = vpow.pop %v3169
    %v3171 = vadd.f32 %v3170, 1.0
    %v3172 = vrcp.pop %v3171
    %v3173 = vmul.f32 1.0, %v3172
    %v3174 = vtanh.pop %v3136
    %v3175 = vxor.u32 %v3137, 2147483648
    %v3176 = vmul.f32 %v3175, 1.442695
    %v3177 = vpow.pop %v3176
    %v3178 = vadd.f32 %v3177, 1.0
    %v3179 = vrcp.pop %v3178
    %v3180 = vmul.f32 1.0, %v3179
    %v3181 = vmul.f32 %v3173, %v2703
    %v3182 = vmul.f32 %v3167, %v3174
    %v3183 = vadd.f32 %v3181, %v3182
    %v3184 = vtanh.pop %v3183
    %v3185 = vmul.f32 %v3180, %v3184
    %3186 = vst [vmem:[%s2708] sm:$0xff] %v3161
    %3187 = vst [vmem:[%s2706 + $0x8] sm:$0xff] %v3185
    %v3188 = vld [vmem:[%s1961] sm:$0xff]
    %v3189 = vld [vmem:[%s1961 + $0x8] sm:$0xff]
    %v3190 = vld [vmem:[%s1961 + $0x10] sm:$0xff]
    %v3191 = vld [vmem:[%s1961 + $0x18] sm:$0xff]
    %v3192 = vld [vmem:[#allocation8] sm:$0xff]
    %v3193 = vld [vmem:[#allocation8 + $0x8] sm:$0xff]
    %v3194 = vld [vmem:[#allocation8 + $0x10] sm:$0xff]
    %v3195 = vld [vmem:[#allocation8 + $0x18] sm:$0xff]
    %v3196 = vld [vmem:[#allocation8 + $0x20] sm:$0xff]
    %v3197 = vld [vmem:[#allocation8 + $0x28] sm:$0xff]
    %v3198 = vld [vmem:[#allocation8 + $0x30] sm:$0xff]
    %v3199 = vld [vmem:[#allocation8 + $0x38] sm:$0xff]
    %v3200 = vld [vmem:[#allocation8 + $0x40] sm:$0xff]
    %v3201 = vld [vmem:[#allocation8 + $0x48] sm:$0xff]
    %v3202 = vld [vmem:[#allocation8 + $0x50] sm:$0xff]
    %v3203 = vld [vmem:[#allocation8 + $0x58] sm:$0xff]
    %v3204 = vld [vmem:[#allocation8 + $0x60] sm:$0xff]
    %v3205 = vld [vmem:[#allocation8 + $0x68] sm:$0xff]
    %v3206 = vld [vmem:[#allocation8 + $0x70] sm:$0xff]
    %v3207 = vld [vmem:[#allocation8 + $0x78] sm:$0xff]
    %v3208 = vld [vmem:[#allocation8 + $0x80] sm:$0xff]
    %v3209 = vld [vmem:[#allocation8 + $0x88] sm:$0xff]
    %v3210 = vld [vmem:[#allocation8 + $0x90] sm:$0xff]
    %v3211 = vld [vmem:[#allocation8 + $0x98] sm:$0xff]
    %v3212 = vld [vmem:[#allocation8 + $0xa0] sm:$0xff]
    %v3213 = vld [vmem:[#allocation8 + $0xa8] sm:$0xff]
    %v3214 = vld [vmem:[#allocation8 + $0xb0] sm:$0xff]
    %v3215 = vld [vmem:[#allocation8 + $0xb8] sm:$0xff]
    %v3216 = vld [vmem:[#allocation8 + $0xc0] sm:$0xff]
    %v3217 = vld [vmem:[#allocation8 + $0xc8] sm:$0xff]
    %v3218 = vld [vmem:[#allocation8 + $0xd0] sm:$0xff]
    %v3219 = vld [vmem:[#allocation8 + $0xd8] sm:$0xff]
    %v3220 = vld [vmem:[#allocation8 + $0xe0] sm:$0xff]
    %v3221 = vld [vmem:[#allocation8 + $0xe8] sm:$0xff]
    %v3222 = vld [vmem:[#allocation8 + $0xf0] sm:$0xff]
    %v3223 = vld [vmem:[#allocation8 + $0xf8] sm:$0xff]
    %v3224 = vld [vmem:[#allocation8 + $0x100] sm:$0xff]
    %v3225 = vld [vmem:[#allocation8 + $0x108] sm:$0xff]
    %v3226 = vld [vmem:[#allocation8 + $0x110] sm:$0xff]
    %v3227 = vld [vmem:[#allocation8 + $0x118] sm:$0xff]
    %v3228 = vld [vmem:[#allocation8 + $0x120] sm:$0xff]
    %v3229 = vld [vmem:[#allocation8 + $0x128] sm:$0xff]
    %v3230 = vld [vmem:[#allocation8 + $0x130] sm:$0xff]
    %v3231 = vld [vmem:[#allocation8 + $0x138] sm:$0xff]
    %v3232 = vld [vmem:[#allocation8 + $0x140] sm:$0xff]
    %v3233 = vld [vmem:[#allocation8 + $0x148] sm:$0xff]
    %v3234 = vld [vmem:[#allocation8 + $0x150] sm:$0xff]
    %v3235 = vld [vmem:[#allocation8 + $0x158] sm:$0xff]
    %v3236 = vld [vmem:[#allocation8 + $0x160] sm:$0xff]
    %v3237 = vld [vmem:[#allocation8 + $0x168] sm:$0xff]
    %v3238 = vld [vmem:[#allocation8 + $0x170] sm:$0xff]
    %v3239 = vld [vmem:[#allocation8 + $0x178] sm:$0xff]
    %v3240 = vld [vmem:[#allocation8 + $0x180] sm:$0xff]
    %v3241 = vld [vmem:[#allocation8 + $0x188] sm:$0xff]
    %v3242 = vld [vmem:[#allocation8 + $0x190] sm:$0xff]
    %v3243 = vld [vmem:[#allocation8 + $0x198] sm:$0xff]
    %v3244 = vld [vmem:[#allocation8 + $0x1a0] sm:$0xff]
    %v3245 = vld [vmem:[#allocation8 + $0x1a8] sm:$0xff]
    %v3246 = vld [vmem:[#allocation8 + $0x1b0] sm:$0xff]
    %v3247 = vld [vmem:[#allocation8 + $0x1b8] sm:$0xff]
    %v3248 = vld [vmem:[#allocation8 + $0x1c0] sm:$0xff]
    %v3249 = vld [vmem:[#allocation8 + $0x1c8] sm:$0xff]
    %v3250 = vld [vmem:[#allocation8 + $0x1d0] sm:$0xff]
    %v3251 = vld [vmem:[#allocation8 + $0x1d8] sm:$0xff]
    %v3252 = vld [vmem:[#allocation8 + $0x1e0] sm:$0xff]
    %v3253 = vld [vmem:[#allocation8 + $0x1e8] sm:$0xff]
    %v3254 = vld [vmem:[#allocation8 + $0x1f0] sm:$0xff]
    %v3255 = vld [vmem:[#allocation8 + $0x1f8] sm:$0xff]
    %3256 = vmatprep.subr.mxu0 %v3253
    %3257 = vmatpush1.msra.mxu0 %v3252
    %3258 = vmatprep.subr.mxu0 %v3249
    %3259 = vmatpush1.msra.mxu0 %v3248
    %3260 = vmatprep.subr.mxu0 %v3245
    %3261 = vmatpush1.msra.mxu0 %v3244
    %3262 = vmatprep.subr.mxu0 %v3241
    %3263 = vmatpush1.msra.mxu0 %v3240
    %3264 = vmatprep.subr.mxu0 %v3237
    %3265 = vmatpush1.msra.mxu0 %v3236
    %3266 = vmatprep.subr.mxu0 %v3233
    %3267 = vmatpush1.msra.mxu0 %v3232
    %3268 = vmatprep.subr.mxu0 %v3229
    %3269 = vmatpush1.msra.mxu0 %v3228
    %3270 = vmatprep.subr.mxu0 %v3225
    %3271 = vmatpush1.msra.mxu0 %v3224
    %3272 = vmatprep.subr.mxu0 %v3221
    %3273 = vmatpush1.msra.mxu0 %v3220
    %3274 = vmatprep.subr.mxu0 %v3217
    %3275 = vmatpush1.msra.mxu0 %v3216
    %3276 = vmatprep.subr.mxu0 %v3213
    %3277 = vmatpush1.msra.mxu0 %v3212
    %3278 = vmatprep.subr.mxu0 %v3209
    %3279 = vmatpush1.msra.mxu0 %v3208
    %3280 = vmatprep.subr.mxu0 %v3205
    %3281 = vmatpush1.msra.mxu0 %v3204
    %3282 = vmatprep.subr.mxu0 %v3201
    %3283 = vmatpush1.msra.mxu0 %v3200
    %3284 = vmatprep.subr.mxu0 %v3197
    %3285 = vmatpush1.msra.mxu0 %v3196
    %3286 = vmatprep.subr.mxu0 %v3193
    %3287 = vmatpush1.msra.mxu0 %v3192
    %3288 = vmatprep.subr.mxu0 0.0
    %3289 = vmatpush2.msra.mxu0 0.0
    %3290 = vmatprep.subr.mxu0 0.0
    %3291 = vmatpush2.msra.mxu0 0.0
    %3292 = vmatprep.subr.mxu0 0.0
    %3293 = vmatpush2.msra.mxu0 0.0
    %3294 = vmatprep.subr.mxu0 0.0
    %3295 = vmatpush2.msra.mxu0 0.0
    %3296 = vmatprep.subr.mxu0 0.0
    %3297 = vmatpush2.msra.mxu0 0.0
    %3298 = vmatprep.subr.mxu0 0.0
    %3299 = vmatpush2.msra.mxu0 0.0
    %3300 = vmatprep.subr.mxu0 0.0
    %3301 = vmatpush2.msra.mxu0 0.0
    %3302 = vmatprep.subr.mxu0 0.0
    %3303 = vmatpush2.msra.mxu0 0.0
    %3304 = vmatprep.subr.mxu0 0.0
    %3305 = vmatpush2.msra.mxu0 0.0
    %3306 = vmatprep.subr.mxu0 0.0
    %3307 = vmatpush2.msra.mxu0 0.0
    %3308 = vmatprep.subr.mxu0 0.0
    %3309 = vmatpush2.msra.mxu0 0.0
    %3310 = vmatprep.subr.mxu0 0.0
    %3311 = vmatpush2.msra.mxu0 0.0
    %3312 = vmatprep.subr.mxu0 0.0
    %3313 = vmatpush2.msra.mxu0 0.0
    %3314 = vmatprep.subr.mxu0 0.0
    %3315 = vmatpush2.msra.mxu0 0.0
    %3316 = vmatprep.subr.mxu0 0.0
    %3317 = vmatpush2.msra.mxu0 0.0
    %3318 = vmatprep.subr.mxu0 0.0
    %3319 = vmatpush2.msra.mxu0 0.0
    %3320 = vmatprep.mubr.f32.mxu0 0.0
    %3321 = vmatmul.mubr.f32.gmra.mxu0 %v3161
    %v3322 = vpop.f32.mrf.mxu0
    %v3323 = vadd.f32 0.0, %v3322
    %v3324 = vpop.f32.mrf.mxu0
    %v3325 = vadd.f32 0.0, %v3324
    %3326 = vdwg.mxu0
    %3327 = vmatprep.subr.mxu0 %v3255
    %3328 = vmatpush1.msra.mxu0 %v3254
    %3329 = vmatprep.subr.mxu0 %v3251
    %3330 = vmatpush1.msra.mxu0 %v3250
    %3331 = vmatprep.subr.mxu0 %v3247
    %3332 = vmatpush1.msra.mxu0 %v3246
    %3333 = vmatprep.subr.mxu0 %v3243
    %3334 = vmatpush1.msra.mxu0 %v3242
    %3335 = vmatprep.subr.mxu0 %v3239
    %3336 = vmatpush1.msra.mxu0 %v3238
    %3337 = vmatprep.subr.mxu0 %v3235
    %3338 = vmatpush1.msra.mxu0 %v3234
    %3339 = vmatprep.subr.mxu0 %v3231
    %3340 = vmatpush1.msra.mxu0 %v3230
    %3341 = vmatprep.subr.mxu0 %v3227
    %3342 = vmatpush1.msra.mxu0 %v3226
    %3343 = vmatprep.subr.mxu0 %v3223
    %3344 = vmatpush1.msra.mxu0 %v3222
    %3345 = vmatprep.subr.mxu0 %v3219
    %3346 = vmatpush1.msra.mxu0 %v3218
    %3347 = vmatprep.subr.mxu0 %v3215
    %3348 = vmatpush1.msra.mxu0 %v3214
    %3349 = vmatprep.subr.mxu0 %v3211
    %3350 = vmatpush1.msra.mxu0 %v3210
    %3351 = vmatprep.subr.mxu0 %v3207
    %3352 = vmatpush1.msra.mxu0 %v3206
    %3353 = vmatprep.subr.mxu0 %v3203
    %3354 = vmatpush1.msra.mxu0 %v3202
    %3355 = vmatprep.subr.mxu0 %v3199
    %3356 = vmatpush1.msra.mxu0 %v3198
    %3357 = vmatprep.subr.mxu0 %v3195
    %3358 = vmatpush1.msra.mxu0 %v3194
    %3359 = vmatprep.subr.mxu0 0.0
    %3360 = vmatpush2.msra.mxu0 0.0
    %3361 = vmatprep.subr.mxu0 0.0
    %3362 = vmatpush2.msra.mxu0 0.0
    %3363 = vmatprep.subr.mxu0 0.0
    %3364 = vmatpush2.msra.mxu0 0.0
    %3365 = vmatprep.subr.mxu0 0.0
    %3366 = vmatpush2.msra.mxu0 0.0
    %3367 = vmatprep.subr.mxu0 0.0
    %3368 = vmatpush2.msra.mxu0 0.0
    %3369 = vmatprep.subr.mxu0 0.0
    %3370 = vmatpush2.msra.mxu0 0.0
    %3371 = vmatprep.subr.mxu0 0.0
    %3372 = vmatpush2.msra.mxu0 0.0
    %3373 = vmatprep.subr.mxu0 0.0
    %3374 = vmatpush2.msra.mxu0 0.0
    %3375 = vmatprep.subr.mxu0 0.0
    %3376 = vmatpush2.msra.mxu0 0.0
    %3377 = vmatprep.subr.mxu0 0.0
    %3378 = vmatpush2.msra.mxu0 0.0
    %3379 = vmatprep.subr.mxu0 0.0
    %3380 = vmatpush2.msra.mxu0 0.0
    %3381 = vmatprep.subr.mxu0 0.0
    %3382 = vmatpush2.msra.mxu0 0.0
    %3383 = vmatprep.subr.mxu0 0.0
    %3384 = vmatpush2.msra.mxu0 0.0
    %3385 = vmatprep.subr.mxu0 0.0
    %3386 = vmatpush2.msra.mxu0 0.0
    %3387 = vmatprep.subr.mxu0 0.0
    %3388 = vmatpush2.msra.mxu0 0.0
    %3389 = vmatprep.subr.mxu0 0.0
    %3390 = vmatpush2.msra.mxu0 0.0
    %3391 = vmatprep.mubr.f32.mxu0 0.0
    %3392 = vmatmul.mubr.f32.gmra.mxu0 %v3161
    %v3393 = vpop.f32.mrf.mxu0
    %v3394 = vadd.f32 0.0, %v3393
    %v3395 = vpop.f32.mrf.mxu0
    %v3396 = vadd.f32 0.0, %v3395
    %3397 = vdwg.mxu0
    %v3398 = vadd.f32 %v3188, %v3323
    %v3399 = vadd.f32 %v3189, %v3325
    %v3400 = vadd.f32 %v3190, %v3394
    %v3401 = vadd.f32 %v3191, %v3396
    %v3402 = vld [vmem:[%s1746 + $0x20] sm:$0xff]
    %v3403 = vld [vmem:[%s1746 + $0x28] sm:$0xff]
    %v3404 = vld [vmem:[%s1746 + $0x30] sm:$0xff]
    %v3405 = vld [vmem:[%s1746 + $0x38] sm:$0xff]
    %v3406 = vld [vmem:[#allocation9] sm:$0xff]
    %v3407 = vld [vmem:[#allocation9 + $0x8] sm:$0xff]
    %v3408 = vld [vmem:[#allocation9 + $0x10] sm:$0xff]
    %v3409 = vld [vmem:[#allocation9 + $0x18] sm:$0xff]
    %v3410 = vld [vmem:[#allocation9 + $0x20] sm:$0xff]
    %v3411 = vld [vmem:[#allocation9 + $0x28] sm:$0xff]
    %v3412 = vld [vmem:[#allocation9 + $0x30] sm:$0xff]
    %v3413 = vld [vmem:[#allocation9 + $0x38] sm:$0xff]
    %v3414 = vld [vmem:[#allocation9 + $0x40] sm:$0xff]
    %v3415 = vld [vmem:[#allocation9 + $0x48] sm:$0xff]
    %v3416 = vld [vmem:[#allocation9 + $0x50] sm:$0xff]
    %v3417 = vld [vmem:[#allocation9 + $0x58] sm:$0xff]
    %v3418 = vld [vmem:[#allocation9 + $0x60] sm:$0xff]
    %v3419 = vld [vmem:[#allocation9 + $0x68] sm:$0xff]
    %v3420 = vld [vmem:[#allocation9 + $0x70] sm:$0xff]
    %v3421 = vld [vmem:[#allocation9 + $0x78] sm:$0xff]
    %v3422 = vld [vmem:[#allocation9 + $0x80] sm:$0xff]
    %v3423 = vld [vmem:[#allocation9 + $0x88] sm:$0xff]
    %v3424 = vld [vmem:[#allocation9 + $0x90] sm:$0xff]
    %v3425 = vld [vmem:[#allocation9 + $0x98] sm:$0xff]
    %v3426 = vld [vmem:[#allocation9 + $0xa0] sm:$0xff]
    %v3427 = vld [vmem:[#allocation9 + $0xa8] sm:$0xff]
    %v3428 = vld [vmem:[#allocation9 + $0xb0] sm:$0xff]
    %v3429 = vld [vmem:[#allocation9 + $0xb8] sm:$0xff]
    %v3430 = vld [vmem:[#allocation9 + $0xc0] sm:$0xff]
    %v3431 = vld [vmem:[#allocation9 + $0xc8] sm:$0xff]
    %v3432 = vld [vmem:[#allocation9 + $0xd0] sm:$0xff]
    %v3433 = vld [vmem:[#allocation9 + $0xd8] sm:$0xff]
    %v3434 = vld [vmem:[#allocation9 + $0xe0] sm:$0xff]
    %v3435 = vld [vmem:[#allocation9 + $0xe8] sm:$0xff]
    %v3436 = vld [vmem:[#allocation9 + $0xf0] sm:$0xff]
    %v3437 = vld [vmem:[#allocation9 + $0xf8] sm:$0xff]
    %v3438 = vld [vmem:[#allocation9 + $0x100] sm:$0xff]
    %v3439 = vld [vmem:[#allocation9 + $0x108] sm:$0xff]
    %v3440 = vld [vmem:[#allocation9 + $0x110] sm:$0xff]
    %v3441 = vld [vmem:[#allocation9 + $0x118] sm:$0xff]
    %v3442 = vld [vmem:[#allocation9 + $0x120] sm:$0xff]
    %v3443 = vld [vmem:[#allocation9 + $0x128] sm:$0xff]
    %v3444 = vld [vmem:[#allocation9 + $0x130] sm:$0xff]
    %v3445 = vld [vmem:[#allocation9 + $0x138] sm:$0xff]
    %v3446 = vld [vmem:[#allocation9 + $0x140] sm:$0xff]
    %v3447 = vld [vmem:[#allocation9 + $0x148] sm:$0xff]
    %v3448 = vld [vmem:[#allocation9 + $0x150] sm:$0xff]
    %v3449 = vld [vmem:[#allocation9 + $0x158] sm:$0xff]
    %v3450 = vld [vmem:[#allocation9 + $0x160] sm:$0xff]
    %v3451 = vld [vmem:[#allocation9 + $0x168] sm:$0xff]
    %v3452 = vld [vmem:[#allocation9 + $0x170] sm:$0xff]
    %v3453 = vld [vmem:[#allocation9 + $0x178] sm:$0xff]
    %v3454 = vld [vmem:[#allocation9 + $0x180] sm:$0xff]
    %v3455 = vld [vmem:[#allocation9 + $0x188] sm:$0xff]
    %v3456 = vld [vmem:[#allocation9 + $0x190] sm:$0xff]
    %v3457 = vld [vmem:[#allocation9 + $0x198] sm:$0xff]
    %v3458 = vld [vmem:[#allocation9 + $0x1a0] sm:$0xff]
    %v3459 = vld [vmem:[#allocation9 + $0x1a8] sm:$0xff]
    %v3460 = vld [vmem:[#allocation9 + $0x1b0] sm:$0xff]
    %v3461 = vld [vmem:[#allocation9 + $0x1b8] sm:$0xff]
    %v3462 = vld [vmem:[#allocation9 + $0x1c0] sm:$0xff]
    %v3463 = vld [vmem:[#allocation9 + $0x1c8] sm:$0xff]
    %v3464 = vld [vmem:[#allocation9 + $0x1d0] sm:$0xff]
    %v3465 = vld [vmem:[#allocation9 + $0x1d8] sm:$0xff]
    %v3466 = vld [vmem:[#allocation9 + $0x1e0] sm:$0xff]
    %v3467 = vld [vmem:[#allocation9 + $0x1e8] sm:$0xff]
    %v3468 = vld [vmem:[#allocation9 + $0x1f0] sm:$0xff]
    %v3469 = vld [vmem:[#allocation9 + $0x1f8] sm:$0xff]
    %3470 = vmatprep.subr.mxu0 %v3467
    %3471 = vmatpush1.msra.mxu0 %v3466
    %3472 = vmatprep.subr.mxu0 %v3463
    %3473 = vmatpush1.msra.mxu0 %v3462
    %3474 = vmatprep.subr.mxu0 %v3459
    %3475 = vmatpush1.msra.mxu0 %v3458
    %3476 = vmatprep.subr.mxu0 %v3455
    %3477 = vmatpush1.msra.mxu0 %v3454
    %3478 = vmatprep.subr.mxu0 %v3451
    %3479 = vmatpush1.msra.mxu0 %v3450
    %3480 = vmatprep.subr.mxu0 %v3447
    %3481 = vmatpush1.msra.mxu0 %v3446
    %3482 = vmatprep.subr.mxu0 %v3443
    %3483 = vmatpush1.msra.mxu0 %v3442
    %3484 = vmatprep.subr.mxu0 %v3439
    %3485 = vmatpush1.msra.mxu0 %v3438
    %3486 = vmatprep.subr.mxu0 %v3435
    %3487 = vmatpush1.msra.mxu0 %v3434
    %3488 = vmatprep.subr.mxu0 %v3431
    %3489 = vmatpush1.msra.mxu0 %v3430
    %3490 = vmatprep.subr.mxu0 %v3427
    %3491 = vmatpush1.msra.mxu0 %v3426
    %3492 = vmatprep.subr.mxu0 %v3423
    %3493 = vmatpush1.msra.mxu0 %v3422
    %3494 = vmatprep.subr.mxu0 %v3419
    %3495 = vmatpush1.msra.mxu0 %v3418
    %3496 = vmatprep.subr.mxu0 %v3415
    %3497 = vmatpush1.msra.mxu0 %v3414
    %3498 = vmatprep.subr.mxu0 %v3411
    %3499 = vmatpush1.msra.mxu0 %v3410
    %3500 = vmatprep.subr.mxu0 %v3407
    %3501 = vmatpush1.msra.mxu0 %v3406
    %3502 = vmatprep.subr.mxu0 0.0
    %3503 = vmatpush2.msra.mxu0 0.0
    %3504 = vmatprep.subr.mxu0 0.0
    %3505 = vmatpush2.msra.mxu0 0.0
    %3506 = vmatprep.subr.mxu0 0.0
    %3507 = vmatpush2.msra.mxu0 0.0
    %3508 = vmatprep.subr.mxu0 0.0
    %3509 = vmatpush2.msra.mxu0 0.0
    %3510 = vmatprep.subr.mxu0 0.0
    %3511 = vmatpush2.msra.mxu0 0.0
    %3512 = vmatprep.subr.mxu0 0.0
    %3513 = vmatpush2.msra.mxu0 0.0
    %3514 = vmatprep.subr.mxu0 0.0
    %3515 = vmatpush2.msra.mxu0 0.0
    %3516 = vmatprep.subr.mxu0 0.0
    %3517 = vmatpush2.msra.mxu0 0.0
    %3518 = vmatprep.subr.mxu0 0.0
    %3519 = vmatpush2.msra.mxu0 0.0
    %3520 = vmatprep.subr.mxu0 0.0
    %3521 = vmatpush2.msra.mxu0 0.0
    %3522 = vmatprep.subr.mxu0 0.0
    %3523 = vmatpush2.msra.mxu0 0.0
    %3524 = vmatprep.subr.mxu0 0.0
    %3525 = vmatpush2.msra.mxu0 0.0
    %3526 = vmatprep.subr.mxu0 0.0
    %3527 = vmatpush2.msra.mxu0 0.0
    %3528 = vmatprep.subr.mxu0 0.0
    %3529 = vmatpush2.msra.mxu0 0.0
    %3530 = vmatprep.subr.mxu0 0.0
    %3531 = vmatpush2.msra.mxu0 0.0
    %3532 = vmatprep.subr.mxu0 0.0
    %3533 = vmatpush2.msra.mxu0 0.0
    %3534 = vmatprep.mubr.f32.mxu0 0.0
    %3535 = vmatmul.mubr.f32.gmra.mxu0 %v3185
    %v3536 = vpop.f32.mrf.mxu0
    %v3537 = vadd.f32 0.0, %v3536
    %v3538 = vpop.f32.mrf.mxu0
    %v3539 = vadd.f32 0.0, %v3538
    %3540 = vdwg.mxu0
    %3541 = vmatprep.subr.mxu0 %v3469
    %3542 = vmatpush1.msra.mxu0 %v3468
    %3543 = vmatprep.subr.mxu0 %v3465
    %3544 = vmatpush1.msra.mxu0 %v3464
    %3545 = vmatprep.subr.mxu0 %v3461
    %3546 = vmatpush1.msra.mxu0 %v3460
    %3547 = vmatprep.subr.mxu0 %v3457
    %3548 = vmatpush1.msra.mxu0 %v3456
    %3549 = vmatprep.subr.mxu0 %v3453
    %3550 = vmatpush1.msra.mxu0 %v3452
    %3551 = vmatprep.subr.mxu0 %v3449
    %3552 = vmatpush1.msra.mxu0 %v3448
    %3553 = vmatprep.subr.mxu0 %v3445
    %3554 = vmatpush1.msra.mxu0 %v3444
    %3555 = vmatprep.subr.mxu0 %v3441
    %3556 = vmatpush1.msra.mxu0 %v3440
    %3557 = vmatprep.subr.mxu0 %v3437
    %3558 = vmatpush1.msra.mxu0 %v3436
    %3559 = vmatprep.subr.mxu0 %v3433
    %3560 = vmatpush1.msra.mxu0 %v3432
    %3561 = vmatprep.subr.mxu0 %v3429
    %3562 = vmatpush1.msra.mxu0 %v3428
    %3563 = vmatprep.subr.mxu0 %v3425
    %3564 = vmatpush1.msra.mxu0 %v3424
    %3565 = vmatprep.subr.mxu0 %v3421
    %3566 = vmatpush1.msra.mxu0 %v3420
    %3567 = vmatprep.subr.mxu0 %v3417
    %3568 = vmatpush1.msra.mxu0 %v3416
    %3569 = vmatprep.subr.mxu0 %v3413
    %3570 = vmatpush1.msra.mxu0 %v3412
    %3571 = vmatprep.subr.mxu0 %v3409
    %3572 = vmatpush1.msra.mxu0 %v3408
    %3573 = vmatprep.subr.mxu0 0.0
    %3574 = vmatpush2.msra.mxu0 0.0
    %3575 = vmatprep.subr.mxu0 0.0
    %3576 = vmatpush2.msra.mxu0 0.0
    %3577 = vmatprep.subr.mxu0 0.0
    %3578 = vmatpush2.msra.mxu0 0.0
    %3579 = vmatprep.subr.mxu0 0.0
    %3580 = vmatpush2.msra.mxu0 0.0
    %3581 = vmatprep.subr.mxu0 0.0
    %3582 = vmatpush2.msra.mxu0 0.0
    %3583 = vmatprep.subr.mxu0 0.0
    %3584 = vmatpush2.msra.mxu0 0.0
    %3585 = vmatprep.subr.mxu0 0.0
    %3586 = vmatpush2.msra.mxu0 0.0
    %3587 = vmatprep.subr.mxu0 0.0
    %3588 = vmatpush2.msra.mxu0 0.0
    %3589 = vmatprep.subr.mxu0 0.0
    %3590 = vmatpush2.msra.mxu0 0.0
    %3591 = vmatprep.subr.mxu0 0.0
    %3592 = vmatpush2.msra.mxu0 0.0
    %3593 = vmatprep.subr.mxu0 0.0
    %3594 = vmatpush2.msra.mxu0 0.0
    %3595 = vmatprep.subr.mxu0 0.0
    %3596 = vmatpush2.msra.mxu0 0.0
    %3597 = vmatprep.subr.mxu0 0.0
    %3598 = vmatpush2.msra.mxu0 0.0
    %3599 = vmatprep.subr.mxu0 0.0
    %3600 = vmatpush2.msra.mxu0 0.0
    %3601 = vmatprep.subr.mxu0 0.0
    %3602 = vmatpush2.msra.mxu0 0.0
    %3603 = vmatprep.subr.mxu0 0.0
    %3604 = vmatpush2.msra.mxu0 0.0
    %3605 = vmatprep.mubr.f32.mxu0 0.0
    %3606 = vmatmul.mubr.f32.gmra.mxu0 %v3185
    %v3607 = vpop.f32.mrf.mxu0
    %v3608 = vadd.f32 0.0, %v3607
    %v3609 = vpop.f32.mrf.mxu0
    %v3610 = vadd.f32 0.0, %v3609
    %3611 = vdwg.mxu0
    %v3612 = vadd.f32 %v3402, %v3537
    %v3613 = vadd.f32 %v3403, %v3539
    %v3614 = vadd.f32 %v3404, %v3608
    %v3615 = vadd.f32 %v3405, %v3610
    %v3616 = vxor.u32 %v3398, 2147483648
    %v3617 = vmul.f32 %v3616, 1.442695
    %v3618 = vpow.pop %v3617
    %v3619 = vadd.f32 %v3618, 1.0
    %v3620 = vrcp.pop %v3619
    %v3621 = vmul.f32 1.0, %v3620
    %v3622 = vxor.u32 %v3399, 2147483648
    %v3623 = vmul.f32 %v3622, 1.442695
    %v3624 = vpow.pop %v3623
    %v3625 = vadd.f32 %v3624, 1.0
    %v3626 = vrcp.pop %v3625
    %v3627 = vmul.f32 1.0, %v3626
    %v3628 = vtanh.pop %v3400
    %v3629 = vxor.u32 %v3401, 2147483648
    %v3630 = vmul.f32 %v3629, 1.442695
    %v3631 = vpow.pop %v3630
    %v3632 = vadd.f32 %v3631, 1.0
    %v3633 = vrcp.pop %v3632
    %v3634 = vmul.f32 1.0, %v3633
    %v3635 = vmul.f32 %v3627, %v3159
    %v3636 = vmul.f32 %v3621, %v3628
    %v3637 = vadd.f32 %v3635, %v3636
    %v3638 = vtanh.pop %v3637
    %v3639 = vmul.f32 %v3634, %v3638
    %v3640 = vxor.u32 %v3612, 2147483648
    %v3641 = vmul.f32 %v3640, 1.442695
    %v3642 = vpow.pop %v3641
    %v3643 = vadd.f32 %v3642, 1.0
    %v3644 = vrcp.pop %v3643
    %v3645 = vmul.f32 1.0, %v3644
    %v3646 = vxor.u32 %v3613, 2147483648
    %v3647 = vmul.f32 %v3646, 1.442695
    %v3648 = vpow.pop %v3647
    %v3649 = vadd.f32 %v3648, 1.0
    %v3650 = vrcp.pop %v3649
    %v3651 = vmul.f32 1.0, %v3650
    %v3652 = vtanh.pop %v3614
    %v3653 = vxor.u32 %v3615, 2147483648
    %v3654 = vmul.f32 %v3653, 1.442695
    %v3655 = vpow.pop %v3654
    %v3656 = vadd.f32 %v3655, 1.0
    %v3657 = vrcp.pop %v3656
    %v3658 = vmul.f32 1.0, %v3657
    %v3659 = vmul.f32 %v3651, %v3183
    %v3660 = vmul.f32 %v3645, %v3652
    %v3661 = vadd.f32 %v3659, %v3660
    %v3662 = vtanh.pop %v3661
    %v3663 = vmul.f32 %v3658, %v3662
    %3664 = vst [vmem:[%s2226] sm:$0xff] %v3639
    %3665 = vst [vmem:[%s2224 + $0x8] sm:$0xff] %v3663
    %v3666 = vld [vmem:[%s1479] sm:$0xff]
    %v3667 = vld [vmem:[%s1479 + $0x8] sm:$0xff]
    %v3668 = vld [vmem:[%s1479 + $0x10] sm:$0xff]
    %v3669 = vld [vmem:[%s1479 + $0x18] sm:$0xff]
    %v3670 = vld [vmem:[#allocation8] sm:$0xff]
    %v3671 = vld [vmem:[#allocation8 + $0x8] sm:$0xff]
    %v3672 = vld [vmem:[#allocation8 + $0x10] sm:$0xff]
    %v3673 = vld [vmem:[#allocation8 + $0x18] sm:$0xff]
    %v3674 = vld [vmem:[#allocation8 + $0x20] sm:$0xff]
    %v3675 = vld [vmem:[#allocation8 + $0x28] sm:$0xff]
    %v3676 = vld [vmem:[#allocation8 + $0x30] sm:$0xff]
    %v3677 = vld [vmem:[#allocation8 + $0x38] sm:$0xff]
    %v3678 = vld [vmem:[#allocation8 + $0x40] sm:$0xff]
    %v3679 = vld [vmem:[#allocation8 + $0x48] sm:$0xff]
    %v3680 = vld [vmem:[#allocation8 + $0x50] sm:$0xff]
    %v3681 = vld [vmem:[#allocation8 + $0x58] sm:$0xff]
    %v3682 = vld [vmem:[#allocation8 + $0x60] sm:$0xff]
    %v3683 = vld [vmem:[#allocation8 + $0x68] sm:$0xff]
    %v3684 = vld [vmem:[#allocation8 + $0x70] sm:$0xff]
    %v3685 = vld [vmem:[#allocation8 + $0x78] sm:$0xff]
    %v3686 = vld [vmem:[#allocation8 + $0x80] sm:$0xff]
    %v3687 = vld [vmem:[#allocation8 + $0x88] sm:$0xff]
    %v3688 = vld [vmem:[#allocation8 + $0x90] sm:$0xff]
    %v3689 = vld [vmem:[#allocation8 + $0x98] sm:$0xff]
    %v3690 = vld [vmem:[#allocation8 + $0xa0] sm:$0xff]
    %v3691 = vld [vmem:[#allocation8 + $0xa8] sm:$0xff]
    %v3692 = vld [vmem:[#allocation8 + $0xb0] sm:$0xff]
    %v3693 = vld [vmem:[#allocation8 + $0xb8] sm:$0xff]
    %v3694 = vld [vmem:[#allocation8 + $0xc0] sm:$0xff]
    %v3695 = vld [vmem:[#allocation8 + $0xc8] sm:$0xff]
    %v3696 = vld [vmem:[#allocation8 + $0xd0] sm:$0xff]
    %v3697 = vld [vmem:[#allocation8 + $0xd8] sm:$0xff]
    %v3698 = vld [vmem:[#allocation8 + $0xe0] sm:$0xff]
    %v3699 = vld [vmem:[#allocation8 + $0xe8] sm:$0xff]
    %v3700 = vld [vmem:[#allocation8 + $0xf0] sm:$0xff]
    %v3701 = vld [vmem:[#allocation8 + $0xf8] sm:$0xff]
    %v3702 = vld [vmem:[#allocation8 + $0x100] sm:$0xff]
    %v3703 = vld [vmem:[#allocation8 + $0x108] sm:$0xff]
    %v3704 = vld [vmem:[#allocation8 + $0x110] sm:$0xff]
    %v3705 = vld [vmem:[#allocation8 + $0x118] sm:$0xff]
    %v3706 = vld [vmem:[#allocation8 + $0x120] sm:$0xff]
    %v3707 = vld [vmem:[#allocation8 + $0x128] sm:$0xff]
    %v3708 = vld [vmem:[#allocation8 + $0x130] sm:$0xff]
    %v3709 = vld [vmem:[#allocation8 + $0x138] sm:$0xff]
    %v3710 = vld [vmem:[#allocation8 + $0x140] sm:$0xff]
    %v3711 = vld [vmem:[#allocation8 + $0x148] sm:$0xff]
    %v3712 = vld [vmem:[#allocation8 + $0x150] sm:$0xff]
    %v3713 = vld [vmem:[#allocation8 + $0x158] sm:$0xff]
    %v3714 = vld [vmem:[#allocation8 + $0x160] sm:$0xff]
    %v3715 = vld [vmem:[#allocation8 + $0x168] sm:$0xff]
    %v3716 = vld [vmem:[#allocation8 + $0x170] sm:$0xff]
    %v3717 = vld [vmem:[#allocation8 + $0x178] sm:$0xff]
    %v3718 = vld [vmem:[#allocation8 + $0x180] sm:$0xff]
    %v3719 = vld [vmem:[#allocation8 + $0x188] sm:$0xff]
    %v3720 = vld [vmem:[#allocation8 + $0x190] sm:$0xff]
    %v3721 = vld [vmem:[#allocation8 + $0x198] sm:$0xff]
    %v3722 = vld [vmem:[#allocation8 + $0x1a0] sm:$0xff]
    %v3723 = vld [vmem:[#allocation8 + $0x1a8] sm:$0xff]
    %v3724 = vld [vmem:[#allocation8 + $0x1b0] sm:$0xff]
    %v3725 = vld [vmem:[#allocation8 + $0x1b8] sm:$0xff]
    %v3726 = vld [vmem:[#allocation8 + $0x1c0] sm:$0xff]
    %v3727 = vld [vmem:[#allocation8 + $0x1c8] sm:$0xff]
    %v3728 = vld [vmem:[#allocation8 + $0x1d0] sm:$0xff]
    %v3729 = vld [vmem:[#allocation8 + $0x1d8] sm:$0xff]
    %v3730 = vld [vmem:[#allocation8 + $0x1e0] sm:$0xff]
    %v3731 = vld [vmem:[#allocation8 + $0x1e8] sm:$0xff]
    %v3732 = vld [vmem:[#allocation8 + $0x1f0] sm:$0xff]
    %v3733 = vld [vmem:[#allocation8 + $0x1f8] sm:$0xff]
    %3734 = vmatprep.subr.mxu0 %v3731
    %3735 = vmatpush1.msra.mxu0 %v3730
    %3736 = vmatprep.subr.mxu0 %v3727
    %3737 = vmatpush1.msra.mxu0 %v3726
    %3738 = vmatprep.subr.mxu0 %v3723
    %3739 = vmatpush1.msra.mxu0 %v3722
    %3740 = vmatprep.subr.mxu0 %v3719
    %3741 = vmatpush1.msra.mxu0 %v3718
    %3742 = vmatprep.subr.mxu0 %v3715
    %3743 = vmatpush1.msra.mxu0 %v3714
    %3744 = vmatprep.subr.mxu0 %v3711
    %3745 = vmatpush1.msra.mxu0 %v3710
    %3746 = vmatprep.subr.mxu0 %v3707
    %3747 = vmatpush1.msra.mxu0 %v3706
    %3748 = vmatprep.subr.mxu0 %v3703
    %3749 = vmatpush1.msra.mxu0 %v3702
    %3750 = vmatprep.subr.mxu0 %v3699
    %3751 = vmatpush1.msra.mxu0 %v3698
    %3752 = vmatprep.subr.mxu0 %v3695
    %3753 = vmatpush1.msra.mxu0 %v3694
    %3754 = vmatprep.subr.mxu0 %v3691
    %3755 = vmatpush1.msra.mxu0 %v3690
    %3756 = vmatprep.subr.mxu0 %v3687
    %3757 = vmatpush1.msra.mxu0 %v3686
    %3758 = vmatprep.subr.mxu0 %v3683
    %3759 = vmatpush1.msra.mxu0 %v3682
    %3760 = vmatprep.subr.mxu0 %v3679
    %3761 = vmatpush1.msra.mxu0 %v3678
    %3762 = vmatprep.subr.mxu0 %v3675
    %3763 = vmatpush1.msra.mxu0 %v3674
    %3764 = vmatprep.subr.mxu0 %v3671
    %3765 = vmatpush1.msra.mxu0 %v3670
    %3766 = vmatprep.subr.mxu0 0.0
    %3767 = vmatpush2.msra.mxu0 0.0
    %3768 = vmatprep.subr.mxu0 0.0
    %3769 = vmatpush2.msra.mxu0 0.0
    %3770 = vmatprep.subr.mxu0 0.0
    %3771 = vmatpush2.msra.mxu0 0.0
    %3772 = vmatprep.subr.mxu0 0.0
    %3773 = vmatpush2.msra.mxu0 0.0
    %3774 = vmatprep.subr.mxu0 0.0
    %3775 = vmatpush2.msra.mxu0 0.0
    %3776 = vmatprep.subr.mxu0 0.0
    %3777 = vmatpush2.msra.mxu0 0.0
    %3778 = vmatprep.subr.mxu0 0.0
    %3779 = vmatpush2.msra.mxu0 0.0
    %3780 = vmatprep.subr.mxu0 0.0
    %3781 = vmatpush2.msra.mxu0 0.0
    %3782 = vmatprep.subr.mxu0 0.0
    %3783 = vmatpush2.msra.mxu0 0.0
    %3784 = vmatprep.subr.mxu0 0.0
    %3785 = vmatpush2.msra.mxu0 0.0
    %3786 = vmatprep.subr.mxu0 0.0
    %3787 = vmatpush2.msra.mxu0 0.0
    %3788 = vmatprep.subr.mxu0 0.0
    %3789 = vmatpush2.msra.mxu0 0.0
    %3790 = vmatprep.subr.mxu0 0.0
    %3791 = vmatpush2.msra.mxu0 0.0
    %3792 = vmatprep.subr.mxu0 0.0
    %3793 = vmatpush2.msra.mxu0 0.0
    %3794 = vmatprep.subr.mxu0 0.0
    %3795 = vmatpush2.msra.mxu0 0.0
    %3796 = vmatprep.subr.mxu0 0.0
    %3797 = vmatpush2.msra.mxu0 0.0
    %3798 = vmatprep.mubr.f32.mxu0 0.0
    %3799 = vmatmul.mubr.f32.gmra.mxu0 %v3639
    %v3800 = vpop.f32.mrf.mxu0
    %v3801 = vadd.f32 0.0, %v3800
    %v3802 = vpop.f32.mrf.mxu0
    %v3803 = vadd.f32 0.0, %v3802
    %3804 = vdwg.mxu0
    %3805 = vmatprep.subr.mxu0 %v3733
    %3806 = vmatpush1.msra.mxu0 %v3732
    %3807 = vmatprep.subr.mxu0 %v3729
    %3808 = vmatpush1.msra.mxu0 %v3728
    %3809 = vmatprep.subr.mxu0 %v3725
    %3810 = vmatpush1.msra.mxu0 %v3724
    %3811 = vmatprep.subr.mxu0 %v3721
    %3812 = vmatpush1.msra.mxu0 %v3720
    %3813 = vmatprep.subr.mxu0 %v3717
    %3814 = vmatpush1.msra.mxu0 %v3716
    %3815 = vmatprep.subr.mxu0 %v3713
    %3816 = vmatpush1.msra.mxu0 %v3712
    %3817 = vmatprep.subr.mxu0 %v3709
    %3818 = vmatpush1.msra.mxu0 %v3708
    %3819 = vmatprep.subr.mxu0 %v3705
    %3820 = vmatpush1.msra.mxu0 %v3704
    %3821 = vmatprep.subr.mxu0 %v3701
    %3822 = vmatpush1.msra.mxu0 %v3700
    %3823 = vmatprep.subr.mxu0 %v3697
    %3824 = vmatpush1.msra.mxu0 %v3696
    %3825 = vmatprep.subr.mxu0 %v3693
    %3826 = vmatpush1.msra.mxu0 %v3692
    %3827 = vmatprep.subr.mxu0 %v3689
    %3828 = vmatpush1.msra.mxu0 %v3688
    %3829 = vmatprep.subr.mxu0 %v3685
    %3830 = vmatpush1.msra.mxu0 %v3684
    %3831 = vmatprep.subr.mxu0 %v3681
    %3832 = vmatpush1.msra.mxu0 %v3680
    %3833 = vmatprep.subr.mxu0 %v3677
    %3834 = vmatpush1.msra.mxu0 %v3676
    %3835 = vmatprep.subr.mxu0 %v3673
    %3836 = vmatpush1.msra.mxu0 %v3672
    %3837 = vmatprep.subr.mxu0 0.0
    %3838 = vmatpush2.msra.mxu0 0.0
    %3839 = vmatprep.subr.mxu0 0.0
    %3840 = vmatpush2.msra.mxu0 0.0
    %3841 = vmatprep.subr.mxu0 0.0
    %3842 = vmatpush2.msra.mxu0 0.0
    %3843 = vmatprep.subr.mxu0 0.0
    %3844 = vmatpush2.msra.mxu0 0.0
    %3845 = vmatprep.subr.mxu0 0.0
    %3846 = vmatpush2.msra.mxu0 0.0
    %3847 = vmatprep.subr.mxu0 0.0
    %3848 = vmatpush2.msra.mxu0 0.0
    %3849 = vmatprep.subr.mxu0 0.0
    %3850 = vmatpush2.msra.mxu0 0.0
    %3851 = vmatprep.subr.mxu0 0.0
    %3852 = vmatpush2.msra.mxu0 0.0
    %3853 = vmatprep.subr.mxu0 0.0
    %3854 = vmatpush2.msra.mxu0 0.0
    %3855 = vmatprep.subr.mxu0 0.0
    %3856 = vmatpush2.msra.mxu0 0.0
    %3857 = vmatprep.subr.mxu0 0.0
    %3858 = vmatpush2.msra.mxu0 0.0
    %3859 = vmatprep.subr.mxu0 0.0
    %3860 = vmatpush2.msra.mxu0 0.0
    %3861 = vmatprep.subr.mxu0 0.0
    %3862 = vmatpush2.msra.mxu0 0.0
    %3863 = vmatprep.subr.mxu0 0.0
    %3864 = vmatpush2.msra.mxu0 0.0
    %3865 = vmatprep.subr.mxu0 0.0
    %3866 = vmatpush2.msra.mxu0 0.0
    %3867 = vmatprep.subr.mxu0 0.0
    %3868 = vmatpush2.msra.mxu0 0.0
    %3869 = vmatprep.mubr.f32.mxu0 0.0
    %3870 = vmatmul.mubr.f32.gmra.mxu0 %v3639
    %v3871 = vpop.f32.mrf.mxu0
    %v3872 = vadd.f32 0.0, %v3871
    %v3873 = vpop.f32.mrf.mxu0
    %v3874 = vadd.f32 0.0, %v3873
    %3875 = vdwg.mxu0
    %v3876 = vadd.f32 %v3666, %v3801
    %v3877 = vadd.f32 %v3667, %v3803
    %v3878 = vadd.f32 %v3668, %v3872
    %v3879 = vadd.f32 %v3669, %v3874
    %v3880 = vld [vmem:[%s1264 + $0x20] sm:$0xff]
    %v3881 = vld [vmem:[%s1264 + $0x28] sm:$0xff]
    %v3882 = vld [vmem:[%s1264 + $0x30] sm:$0xff]
    %v3883 = vld [vmem:[%s1264 + $0x38] sm:$0xff]
    %v3884 = vld [vmem:[#allocation9] sm:$0xff]
    %v3885 = vld [vmem:[#allocation9 + $0x8] sm:$0xff]
    %v3886 = vld [vmem:[#allocation9 + $0x10] sm:$0xff]
    %v3887 = vld [vmem:[#allocation9 + $0x18] sm:$0xff]
    %v3888 = vld [vmem:[#allocation9 + $0x20] sm:$0xff]
    %v3889 = vld [vmem:[#allocation9 + $0x28] sm:$0xff]
    %v3890 = vld [vmem:[#allocation9 + $0x30] sm:$0xff]
    %v3891 = vld [vmem:[#allocation9 + $0x38] sm:$0xff]
    %v3892 = vld [vmem:[#allocation9 + $0x40] sm:$0xff]
    %v3893 = vld [vmem:[#allocation9 + $0x48] sm:$0xff]
    %v3894 = vld [vmem:[#allocation9 + $0x50] sm:$0xff]
    %v3895 = vld [vmem:[#allocation9 + $0x58] sm:$0xff]
    %v3896 = vld [vmem:[#allocation9 + $0x60] sm:$0xff]
    %v3897 = vld [vmem:[#allocation9 + $0x68] sm:$0xff]
    %v3898 = vld [vmem:[#allocation9 + $0x70] sm:$0xff]
    %v3899 = vld [vmem:[#allocation9 + $0x78] sm:$0xff]
    %v3900 = vld [vmem:[#allocation9 + $0x80] sm:$0xff]
    %v3901 = vld [vmem:[#allocation9 + $0x88] sm:$0xff]
    %v3902 = vld [vmem:[#allocation9 + $0x90] sm:$0xff]
    %v3903 = vld [vmem:[#allocation9 + $0x98] sm:$0xff]
    %v3904 = vld [vmem:[#allocation9 + $0xa0] sm:$0xff]
    %v3905 = vld [vmem:[#allocation9 + $0xa8] sm:$0xff]
    %v3906 = vld [vmem:[#allocation9 + $0xb0] sm:$0xff]
    %v3907 = vld [vmem:[#allocation9 + $0xb8] sm:$0xff]
    %v3908 = vld [vmem:[#allocation9 + $0xc0] sm:$0xff]
    %v3909 = vld [vmem:[#allocation9 + $0xc8] sm:$0xff]
    %v3910 = vld [vmem:[#allocation9 + $0xd0] sm:$0xff]
    %v3911 = vld [vmem:[#allocation9 + $0xd8] sm:$0xff]
    %v3912 = vld [vmem:[#allocation9 + $0xe0] sm:$0xff]
    %v3913 = vld [vmem:[#allocation9 + $0xe8] sm:$0xff]
    %v3914 = vld [vmem:[#allocation9 + $0xf0] sm:$0xff]
    %v3915 = vld [vmem:[#allocation9 + $0xf8] sm:$0xff]
    %v3916 = vld [vmem:[#allocation9 + $0x100] sm:$0xff]
    %v3917 = vld [vmem:[#allocation9 + $0x108] sm:$0xff]
    %v3918 = vld [vmem:[#allocation9 + $0x110] sm:$0xff]
    %v3919 = vld [vmem:[#allocation9 + $0x118] sm:$0xff]
    %v3920 = vld [vmem:[#allocation9 + $0x120] sm:$0xff]
    %v3921 = vld [vmem:[#allocation9 + $0x128] sm:$0xff]
    %v3922 = vld [vmem:[#allocation9 + $0x130] sm:$0xff]
    %v3923 = vld [vmem:[#allocation9 + $0x138] sm:$0xff]
    %v3924 = vld [vmem:[#allocation9 + $0x140] sm:$0xff]
    %v3925 = vld [vmem:[#allocation9 + $0x148] sm:$0xff]
    %v3926 = vld [vmem:[#allocation9 + $0x150] sm:$0xff]
    %v3927 = vld [vmem:[#allocation9 + $0x158] sm:$0xff]
    %v3928 = vld [vmem:[#allocation9 + $0x160] sm:$0xff]
    %v3929 = vld [vmem:[#allocation9 + $0x168] sm:$0xff]
    %v3930 = vld [vmem:[#allocation9 + $0x170] sm:$0xff]
    %v3931 = vld [vmem:[#allocation9 + $0x178] sm:$0xff]
    %v3932 = vld [vmem:[#allocation9 + $0x180] sm:$0xff]
    %v3933 = vld [vmem:[#allocation9 + $0x188] sm:$0xff]
    %v3934 = vld [vmem:[#allocation9 + $0x190] sm:$0xff]
    %v3935 = vld [vmem:[#allocation9 + $0x198] sm:$0xff]
    %v3936 = vld [vmem:[#allocation9 + $0x1a0] sm:$0xff]
    %v3937 = vld [vmem:[#allocation9 + $0x1a8] sm:$0xff]
    %v3938 = vld [vmem:[#allocation9 + $0x1b0] sm:$0xff]
    %v3939 = vld [vmem:[#allocation9 + $0x1b8] sm:$0xff]
    %v3940 = vld [vmem:[#allocation9 + $0x1c0] sm:$0xff]
    %v3941 = vld [vmem:[#allocation9 + $0x1c8] sm:$0xff]
    %v3942 = vld [vmem:[#allocation9 + $0x1d0] sm:$0xff]
    %v3943 = vld [vmem:[#allocation9 + $0x1d8] sm:$0xff]
    %v3944 = vld [vmem:[#allocation9 + $0x1e0] sm:$0xff]
    %v3945 = vld [vmem:[#allocation9 + $0x1e8] sm:$0xff]
    %v3946 = vld [vmem:[#allocation9 + $0x1f0] sm:$0xff]
    %v3947 = vld [vmem:[#allocation9 + $0x1f8] sm:$0xff]
    %3948 = vmatprep.subr.mxu0 %v3945
    %3949 = vmatpush1.msra.mxu0 %v3944
    %3950 = vmatprep.subr.mxu0 %v3941
    %3951 = vmatpush1.msra.mxu0 %v3940
    %3952 = vmatprep.subr.mxu0 %v3937
    %3953 = vmatpush1.msra.mxu0 %v3936
    %3954 = vmatprep.subr.mxu0 %v3933
    %3955 = vmatpush1.msra.mxu0 %v3932
    %3956 = vmatprep.subr.mxu0 %v3929
    %3957 = vmatpush1.msra.mxu0 %v3928
    %3958 = vmatprep.subr.mxu0 %v3925
    %3959 = vmatpush1.msra.mxu0 %v3924
    %3960 = vmatprep.subr.mxu0 %v3921
    %3961 = vmatpush1.msra.mxu0 %v3920
    %3962 = vmatprep.subr.mxu0 %v3917
    %3963 = vmatpush1.msra.mxu0 %v3916
    %3964 = vmatprep.subr.mxu0 %v3913
    %3965 = vmatpush1.msra.mxu0 %v3912
    %3966 = vmatprep.subr.mxu0 %v3909
    %3967 = vmatpush1.msra.mxu0 %v3908
    %3968 = vmatprep.subr.mxu0 %v3905
    %3969 = vmatpush1.msra.mxu0 %v3904
    %3970 = vmatprep.subr.mxu0 %v3901
    %3971 = vmatpush1.msra.mxu0 %v3900
    %3972 = vmatprep.subr.mxu0 %v3897
    %3973 = vmatpush1.msra.mxu0 %v3896
    %3974 = vmatprep.subr.mxu0 %v3893
    %3975 = vmatpush1.msra.mxu0 %v3892
    %3976 = vmatprep.subr.mxu0 %v3889
    %3977 = vmatpush1.msra.mxu0 %v3888
    %3978 = vmatprep.subr.mxu0 %v3885
    %3979 = vmatpush1.msra.mxu0 %v3884
    %3980 = vmatprep.subr.mxu0 0.0
    %3981 = vmatpush2.msra.mxu0 0.0
    %3982 = vmatprep.subr.mxu0 0.0
    %3983 = vmatpush2.msra.mxu0 0.0
    %3984 = vmatprep.subr.mxu0 0.0
    %3985 = vmatpush2.msra.mxu0 0.0
    %3986 = vmatprep.subr.mxu0 0.0
    %3987 = vmatpush2.msra.mxu0 0.0
    %3988 = vmatprep.subr.mxu0 0.0
    %3989 = vmatpush2.msra.mxu0 0.0
    %3990 = vmatprep.subr.mxu0 0.0
    %3991 = vmatpush2.msra.mxu0 0.0
    %3992 = vmatprep.subr.mxu0 0.0
    %3993 = vmatpush2.msra.mxu0 0.0
    %3994 = vmatprep.subr.mxu0 0.0
    %3995 = vmatpush2.msra.mxu0 0.0
    %3996 = vmatprep.subr.mxu0 0.0
    %3997 = vmatpush2.msra.mxu0 0.0
    %3998 = vmatprep.subr.mxu0 0.0
    %3999 = vmatpush2.msra.mxu0 0.0
    %4000 = vmatprep.subr.mxu0 0.0
    %4001 = vmatpush2.msra.mxu0 0.0
    %4002 = vmatprep.subr.mxu0 0.0
    %4003 = vmatpush2.msra.mxu0 0.0
    %4004 = vmatprep.subr.mxu0 0.0
    %4005 = vmatpush2.msra.mxu0 0.0
    %4006 = vmatprep.subr.mxu0 0.0
    %4007 = vmatpush2.msra.mxu0 0.0
    %4008 = vmatprep.subr.mxu0 0.0
    %4009 = vmatpush2.msra.mxu0 0.0
    %4010 = vmatprep.subr.mxu0 0.0
    %4011 = vmatpush2.msra.mxu0 0.0
    %4012 = vmatprep.mubr.f32.mxu0 0.0
    %4013 = vmatmul.mubr.f32.gmra.mxu0 %v3663
    %v4014 = vpop.f32.mrf.mxu0
    %v4015 = vadd.f32 0.0, %v4014
    %v4016 = vpop.f32.mrf.mxu0
    %v4017 = vadd.f32 0.0, %v4016
    %4018 = vdwg.mxu0
    %4019 = vmatprep.subr.mxu0 %v3947
    %4020 = vmatpush1.msra.mxu0 %v3946
    %4021 = vmatprep.subr.mxu0 %v3943
    %4022 = vmatpush1.msra.mxu0 %v3942
    %4023 = vmatprep.subr.mxu0 %v3939
    %4024 = vmatpush1.msra.mxu0 %v3938
    %4025 = vmatprep.subr.mxu0 %v3935
    %4026 = vmatpush1.msra.mxu0 %v3934
    %4027 = vmatprep.subr.mxu0 %v3931
    %4028 = vmatpush1.msra.mxu0 %v3930
    %4029 = vmatprep.subr.mxu0 %v3927
    %4030 = vmatpush1.msra.mxu0 %v3926
    %4031 = vmatprep.subr.mxu0 %v3923
    %4032 = vmatpush1.msra.mxu0 %v3922
    %4033 = vmatprep.subr.mxu0 %v3919
    %4034 = vmatpush1.msra.mxu0 %v3918
    %4035 = vmatprep.subr.mxu0 %v3915
    %4036 = vmatpush1.msra.mxu0 %v3914
    %4037 = vmatprep.subr.mxu0 %v3911
    %4038 = vmatpush1.msra.mxu0 %v3910
    %4039 = vmatprep.subr.mxu0 %v3907
    %4040 = vmatpush1.msra.mxu0 %v3906
    %4041 = vmatprep.subr.mxu0 %v3903
    %4042 = vmatpush1.msra.mxu0 %v3902
    %4043 = vmatprep.subr.mxu0 %v3899
    %4044 = vmatpush1.msra.mxu0 %v3898
    %4045 = vmatprep.subr.mxu0 %v3895
    %4046 = vmatpush1.msra.mxu0 %v3894
    %4047 = vmatprep.subr.mxu0 %v3891
    %4048 = vmatpush1.msra.mxu0 %v3890
    %4049 = vmatprep.subr.mxu0 %v3887
    %4050 = vmatpush1.msra.mxu0 %v3886
    %4051 = vmatprep.subr.mxu0 0.0
    %4052 = vmatpush2.msra.mxu0 0.0
    %4053 = vmatprep.subr.mxu0 0.0
    %4054 = vmatpush2.msra.mxu0 0.0
    %4055 = vmatprep.subr.mxu0 0.0
    %4056 = vmatpush2.msra.mxu0 0.0
    %4057 = vmatprep.subr.mxu0 0.0
    %4058 = vmatpush2.msra.mxu0 0.0
    %4059 = vmatprep.subr.mxu0 0.0
    %4060 = vmatpush2.msra.mxu0 0.0
    %4061 = vmatprep.subr.mxu0 0.0
    %4062 = vmatpush2.msra.mxu0 0.0
    %4063 = vmatprep.subr.mxu0 0.0
    %4064 = vmatpush2.msra.mxu0 0.0
    %4065 = vmatprep.subr.mxu0 0.0
    %4066 = vmatpush2.msra.mxu0 0.0
    %4067 = vmatprep.subr.mxu0 0.0
    %4068 = vmatpush2.msra.mxu0 0.0
    %4069 = vmatprep.subr.mxu0 0.0
    %4070 = vmatpush2.msra.mxu0 0.0
    %4071 = vmatprep.subr.mxu0 0.0
    %4072 = vmatpush2.msra.mxu0 0.0
    %4073 = vmatprep.subr.mxu0 0.0
    %4074 = vmatpush2.msra.mxu0 0.0
    %4075 = vmatprep.subr.mxu0 0.0
    %4076 = vmatpush2.msra.mxu0 0.0
    %4077 = vmatprep.subr.mxu0 0.0
    %4078 = vmatpush2.msra.mxu0 0.0
    %4079 = vmatprep.subr.mxu0 0.0
    %4080 = vmatpush2.msra.mxu0 0.0
    %4081 = vmatprep.subr.mxu0 0.0
    %4082 = vmatpush2.msra.mxu0 0.0
    %4083 = vmatprep.mubr.f32.mxu0 0.0
    %4084 = vmatmul.mubr.f32.gmra.mxu0 %v3663
    %v4085 = vpop.f32.mrf.mxu0
    %v4086 = vadd.f32 0.0, %v4085
    %v4087 = vpop.f32.mrf.mxu0
    %v4088 = vadd.f32 0.0, %v4087
    %4089 = vdwg.mxu0
    %v4090 = vadd.f32 %v3880, %v4015
    %v4091 = vadd.f32 %v3881, %v4017
    %v4092 = vadd.f32 %v3882, %v4086
    %v4093 = vadd.f32 %v3883, %v4088
    %v4094 = vxor.u32 %v3876, 2147483648
    %v4095 = vmul.f32 %v4094, 1.442695
    %v4096 = vpow.pop %v4095
    %v4097 = vadd.f32 %v4096, 1.0
    %v4098 = vrcp.pop %v4097
    %v4099 = vmul.f32 1.0, %v4098
    %v4100 = vxor.u32 %v3877, 2147483648
    %v4101 = vmul.f32 %v4100, 1.442695
    %v4102 = vpow.pop %v4101
    %v4103 = vadd.f32 %v4102, 1.0
    %v4104 = vrcp.pop %v4103
    %v4105 = vmul.f32 1.0, %v4104
    %v4106 = vtanh.pop %v3878
    %v4107 = vxor.u32 %v3879, 2147483648
    %v4108 = vmul.f32 %v4107, 1.442695
    %v4109 = vpow.pop %v4108
    %v4110 = vadd.f32 %v4109, 1.0
    %v4111 = vrcp.pop %v4110
    %v4112 = vmul.f32 1.0, %v4111
    %v4113 = vmul.f32 %v4105, %v3637
    %v4114 = vmul.f32 %v4099, %v4106
    %v4115 = vadd.f32 %v4113, %v4114
    %v4116 = vtanh.pop %v4115
    %v4117 = vmul.f32 %v4112, %v4116
    %v4118 = vxor.u32 %v4090, 2147483648
    %v4119 = vmul.f32 %v4118, 1.442695
    %v4120 = vpow.pop %v4119
    %v4121 = vadd.f32 %v4120, 1.0
    %v4122 = vrcp.pop %v4121
    %v4123 = vmul.f32 1.0, %v4122
    %v4124 = vxor.u32 %v4091, 2147483648
    %v4125 = vmul.f32 %v4124, 1.442695
    %v4126 = vpow.pop %v4125
    %v4127 = vadd.f32 %v4126, 1.0
    %v4128 = vrcp.pop %v4127
    %v4129 = vmul.f32 1.0, %v4128
    %v4130 = vtanh.pop %v4092
    %v4131 = vxor.u32 %v4093, 2147483648
    %v4132 = vmul.f32 %v4131, 1.442695
    %v4133 = vpow.pop %v4132
    %v4134 = vadd.f32 %v4133, 1.0
    %v4135 = vrcp.pop %v4134
    %v4136 = vmul.f32 1.0, %v4135
    %v4137 = vmul.f32 %v4129, %v3661
    %v4138 = vmul.f32 %v4123, %v4130
    %v4139 = vadd.f32 %v4137, %v4138
    %v4140 = vtanh.pop %v4139
    %v4141 = vmul.f32 %v4136, %v4140
    %4142 = vst [vmem:[%s1744] sm:$0xff] %v4117
    %4143 = vst [vmem:[%s1742 + $0x8] sm:$0xff] %v4141
    %v4144 = vld [vmem:[%s998] sm:$0xff]
    %v4145 = vld [vmem:[%s998 + $0x8] sm:$0xff]
    %v4146 = vld [vmem:[%s998 + $0x10] sm:$0xff]
    %v4147 = vld [vmem:[%s998 + $0x18] sm:$0xff]
    %v4148 = vld [vmem:[#allocation8] sm:$0xff]
    %v4149 = vld [vmem:[#allocation8 + $0x8] sm:$0xff]
    %v4150 = vld [vmem:[#allocation8 + $0x10] sm:$0xff]
    %v4151 = vld [vmem:[#allocation8 + $0x18] sm:$0xff]
    %v4152 = vld [vmem:[#allocation8 + $0x20] sm:$0xff]
    %v4153 = vld [vmem:[#allocation8 + $0x28] sm:$0xff]
    %v4154 = vld [vmem:[#allocation8 + $0x30] sm:$0xff]
    %v4155 = vld [vmem:[#allocation8 + $0x38] sm:$0xff]
    %v4156 = vld [vmem:[#allocation8 + $0x40] sm:$0xff]
    %v4157 = vld [vmem:[#allocation8 + $0x48] sm:$0xff]
    %v4158 = vld [vmem:[#allocation8 + $0x50] sm:$0xff]
    %v4159 = vld [vmem:[#allocation8 + $0x58] sm:$0xff]
    %v4160 = vld [vmem:[#allocation8 + $0x60] sm:$0xff]
    %v4161 = vld [vmem:[#allocation8 + $0x68] sm:$0xff]
    %v4162 = vld [vmem:[#allocation8 + $0x70] sm:$0xff]
    %v4163 = vld [vmem:[#allocation8 + $0x78] sm:$0xff]
    %v4164 = vld [vmem:[#allocation8 + $0x80] sm:$0xff]
    %v4165 = vld [vmem:[#allocation8 + $0x88] sm:$0xff]
    %v4166 = vld [vmem:[#allocation8 + $0x90] sm:$0xff]
    %v4167 = vld [vmem:[#allocation8 + $0x98] sm:$0xff]
    %v4168 = vld [vmem:[#allocation8 + $0xa0] sm:$0xff]
    %v4169 = vld [vmem:[#allocation8 + $0xa8] sm:$0xff]
    %v4170 = vld [vmem:[#allocation8 + $0xb0] sm:$0xff]
    %v4171 = vld [vmem:[#allocation8 + $0xb8] sm:$0xff]
    %v4172 = vld [vmem:[#allocation8 + $0xc0] sm:$0xff]
    %v4173 = vld [vmem:[#allocation8 + $0xc8] sm:$0xff]
    %v4174 = vld [vmem:[#allocation8 + $0xd0] sm:$0xff]
    %v4175 = vld [vmem:[#allocation8 + $0xd8] sm:$0xff]
    %v4176 = vld [vmem:[#allocation8 + $0xe0] sm:$0xff]
    %v4177 = vld [vmem:[#allocation8 + $0xe8] sm:$0xff]
    %v4178 = vld [vmem:[#allocation8 + $0xf0] sm:$0xff]
    %v4179 = vld [vmem:[#allocation8 + $0xf8] sm:$0xff]
    %v4180 = vld [vmem:[#allocation8 + $0x100] sm:$0xff]
    %v4181 = vld [vmem:[#allocation8 + $0x108] sm:$0xff]
    %v4182 = vld [vmem:[#allocation8 + $0x110] sm:$0xff]
    %v4183 = vld [vmem:[#allocation8 + $0x118] sm:$0xff]
    %v4184 = vld [vmem:[#allocation8 + $0x120] sm:$0xff]
    %v4185 = vld [vmem:[#allocation8 + $0x128] sm:$0xff]
    %v4186 = vld [vmem:[#allocation8 + $0x130] sm:$0xff]
    %v4187 = vld [vmem:[#allocation8 + $0x138] sm:$0xff]
    %v4188 = vld [vmem:[#allocation8 + $0x140] sm:$0xff]
    %v4189 = vld [vmem:[#allocation8 + $0x148] sm:$0xff]
    %v4190 = vld [vmem:[#allocation8 + $0x150] sm:$0xff]
    %v4191 = vld [vmem:[#allocation8 + $0x158] sm:$0xff]
    %v4192 = vld [vmem:[#allocation8 + $0x160] sm:$0xff]
    %v4193 = vld [vmem:[#allocation8 + $0x168] sm:$0xff]
    %v4194 = vld [vmem:[#allocation8 + $0x170] sm:$0xff]
    %v4195 = vld [vmem:[#allocation8 + $0x178] sm:$0xff]
    %v4196 = vld [vmem:[#allocation8 + $0x180] sm:$0xff]
    %v4197 = vld [vmem:[#allocation8 + $0x188] sm:$0xff]
    %v4198 = vld [vmem:[#allocation8 + $0x190] sm:$0xff]
    %v4199 = vld [vmem:[#allocation8 + $0x198] sm:$0xff]
    %v4200 = vld [vmem:[#allocation8 + $0x1a0] sm:$0xff]
    %v4201 = vld [vmem:[#allocation8 + $0x1a8] sm:$0xff]
    %v4202 = vld [vmem:[#allocation8 + $0x1b0] sm:$0xff]
    %v4203 = vld [vmem:[#allocation8 + $0x1b8] sm:$0xff]
    %v4204 = vld [vmem:[#allocation8 + $0x1c0] sm:$0xff]
    %v4205 = vld [vmem:[#allocation8 + $0x1c8] sm:$0xff]
    %v4206 = vld [vmem:[#allocation8 + $0x1d0] sm:$0xff]
    %v4207 = vld [vmem:[#allocation8 + $0x1d8] sm:$0xff]
    %v4208 = vld [vmem:[#allocation8 + $0x1e0] sm:$0xff]
    %v4209 = vld [vmem:[#allocation8 + $0x1e8] sm:$0xff]
    %v4210 = vld [vmem:[#allocation8 + $0x1f0] sm:$0xff]
    %v4211 = vld [vmem:[#allocation8 + $0x1f8] sm:$0xff]
    %4212 = vmatprep.subr.mxu0 %v4209
    %4213 = vmatpush1.msra.mxu0 %v4208
    %4214 = vmatprep.subr.mxu0 %v4205
    %4215 = vmatpush1.msra.mxu0 %v4204
    %4216 = vmatprep.subr.mxu0 %v4201
    %4217 = vmatpush1.msra.mxu0 %v4200
    %4218 = vmatprep.subr.mxu0 %v4197
    %4219 = vmatpush1.msra.mxu0 %v4196
    %4220 = vmatprep.subr.mxu0 %v4193
    %4221 = vmatpush1.msra.mxu0 %v4192
    %4222 = vmatprep.subr.mxu0 %v4189
    %4223 = vmatpush1.msra.mxu0 %v4188
    %4224 = vmatprep.subr.mxu0 %v4185
    %4225 = vmatpush1.msra.mxu0 %v4184
    %4226 = vmatprep.subr.mxu0 %v4181
    %4227 = vmatpush1.msra.mxu0 %v4180
    %4228 = vmatprep.subr.mxu0 %v4177
    %4229 = vmatpush1.msra.mxu0 %v4176
    %4230 = vmatprep.subr.mxu0 %v4173
    %4231 = vmatpush1.msra.mxu0 %v4172
    %4232 = vmatprep.subr.mxu0 %v4169
    %4233 = vmatpush1.msra.mxu0 %v4168
    %4234 = vmatprep.subr.mxu0 %v4165
    %4235 = vmatpush1.msra.mxu0 %v4164
    %4236 = vmatprep.subr.mxu0 %v4161
    %4237 = vmatpush1.msra.mxu0 %v4160
    %4238 = vmatprep.subr.mxu0 %v4157
    %4239 = vmatpush1.msra.mxu0 %v4156
    %4240 = vmatprep.subr.mxu0 %v4153
    %4241 = vmatpush1.msra.mxu0 %v4152
    %4242 = vmatprep.subr.mxu0 %v4149
    %4243 = vmatpush1.msra.mxu0 %v4148
    %4244 = vmatprep.subr.mxu0 0.0
    %4245 = vmatpush2.msra.mxu0 0.0
    %4246 = vmatprep.subr.mxu0 0.0
    %4247 = vmatpush2.msra.mxu0 0.0
    %4248 = vmatprep.subr.mxu0 0.0
    %4249 = vmatpush2.msra.mxu0 0.0
    %4250 = vmatprep.subr.mxu0 0.0
    %4251 = vmatpush2.msra.mxu0 0.0
    %4252 = vmatprep.subr.mxu0 0.0
    %4253 = vmatpush2.msra.mxu0 0.0
    %4254 = vmatprep.subr.mxu0 0.0
    %4255 = vmatpush2.msra.mxu0 0.0
    %4256 = vmatprep.subr.mxu0 0.0
    %4257 = vmatpush2.msra.mxu0 0.0
    %4258 = vmatprep.subr.mxu0 0.0
    %4259 = vmatpush2.msra.mxu0 0.0
    %4260 = vmatprep.subr.mxu0 0.0
    %4261 = vmatpush2.msra.mxu0 0.0
    %4262 = vmatprep.subr.mxu0 0.0
    %4263 = vmatpush2.msra.mxu0 0.0
    %4264 = vmatprep.subr.mxu0 0.0
    %4265 = vmatpush2.msra.mxu0 0.0
    %4266 = vmatprep.subr.mxu0 0.0
    %4267 = vmatpush2.msra.mxu0 0.0
    %4268 = vmatprep.subr.mxu0 0.0
    %4269 = vmatpush2.msra.mxu0 0.0
    %4270 = vmatprep.subr.mxu0 0.0
    %4271 = vmatpush2.msra.mxu0 0.0
    %4272 = vmatprep.subr.mxu0 0.0
    %4273 = vmatpush2.msra.mxu0 0.0
    %4274 = vmatprep.subr.mxu0 0.0
    %4275 = vmatpush2.msra.mxu0 0.0
    %4276 = vmatprep.mubr.f32.mxu0 0.0
    %4277 = vmatmul.mubr.f32.gmra.mxu0 %v4117
    %v4278 = vpop.f32.mrf.mxu0
    %v4279 = vadd.f32 0.0, %v4278
    %v4280 = vpop.f32.mrf.mxu0
    %v4281 = vadd.f32 0.0, %v4280
    %4282 = vdwg.mxu0
    %4283 = vmatprep.subr.mxu0 %v4211
    %4284 = vmatpush1.msra.mxu0 %v4210
    %4285 = vmatprep.subr.mxu0 %v4207
    %4286 = vmatpush1.msra.mxu0 %v4206
    %4287 = vmatprep.subr.mxu0 %v4203
    %4288 = vmatpush1.msra.mxu0 %v4202
    %4289 = vmatprep.subr.mxu0 %v4199
    %4290 = vmatpush1.msra.mxu0 %v4198
    %4291 = vmatprep.subr.mxu0 %v4195
    %4292 = vmatpush1.msra.mxu0 %v4194
    %4293 = vmatprep.subr.mxu0 %v4191
    %4294 = vmatpush1.msra.mxu0 %v4190
    %4295 = vmatprep.subr.mxu0 %v4187
    %4296 = vmatpush1.msra.mxu0 %v4186
    %4297 = vmatprep.subr.mxu0 %v4183
    %4298 = vmatpush1.msra.mxu0 %v4182
    %4299 = vmatprep.subr.mxu0 %v4179
    %4300 = vmatpush1.msra.mxu0 %v4178
    %4301 = vmatprep.subr.mxu0 %v4175
    %4302 = vmatpush1.msra.mxu0 %v4174
    %4303 = vmatprep.subr.mxu0 %v4171
    %4304 = vmatpush1.msra.mxu0 %v4170
    %4305 = vmatprep.subr.mxu0 %v4167
    %4306 = vmatpush1.msra.mxu0 %v4166
    %4307 = vmatprep.subr.mxu0 %v4163
    %4308 = vmatpush1.msra.mxu0 %v4162
    %4309 = vmatprep.subr.mxu0 %v4159
    %4310 = vmatpush1.msra.mxu0 %v4158
    %4311 = vmatprep.subr.mxu0 %v4155
    %4312 = vmatpush1.msra.mxu0 %v4154
    %4313 = vmatprep.subr.mxu0 %v4151
    %4314 = vmatpush1.msra.mxu0 %v4150
    %4315 = vmatprep.subr.mxu0 0.0
    %4316 = vmatpush2.msra.mxu0 0.0
    %4317 = vmatprep.subr.mxu0 0.0
    %4318 = vmatpush2.msra.mxu0 0.0
    %4319 = vmatprep.subr.mxu0 0.0
    %4320 = vmatpush2.msra.mxu0 0.0
    %4321 = vmatprep.subr.mxu0 0.0
    %4322 = vmatpush2.msra.mxu0 0.0
    %4323 = vmatprep.subr.mxu0 0.0
    %4324 = vmatpush2.msra.mxu0 0.0
    %4325 = vmatprep.subr.mxu0 0.0
    %4326 = vmatpush2.msra.mxu0 0.0
    %4327 = vmatprep.subr.mxu0 0.0
    %4328 = vmatpush2.msra.mxu0 0.0
    %4329 = vmatprep.subr.mxu0 0.0
    %4330 = vmatpush2.msra.mxu0 0.0
    %4331 = vmatprep.subr.mxu0 0.0
    %4332 = vmatpush2.msra.mxu0 0.0
    %4333 = vmatprep.subr.mxu0 0.0
    %4334 = vmatpush2.msra.mxu0 0.0
    %4335 = vmatprep.subr.mxu0 0.0
    %4336 = vmatpush2.msra.mxu0 0.0
    %4337 = vmatprep.subr.mxu0 0.0
    %4338 = vmatpush2.msra.mxu0 0.0
    %4339 = vmatprep.subr.mxu0 0.0
    %4340 = vmatpush2.msra.mxu0 0.0
    %4341 = vmatprep.subr.mxu0 0.0
    %4342 = vmatpush2.msra.mxu0 0.0
    %4343 = vmatprep.subr.mxu0 0.0
    %4344 = vmatpush2.msra.mxu0 0.0
    %4345 = vmatprep.subr.mxu0 0.0
    %4346 = vmatpush2.msra.mxu0 0.0
    %4347 = vmatprep.mubr.f32.mxu0 0.0
    %4348 = vmatmul.mubr.f32.gmra.mxu0 %v4117
    %v4349 = vpop.f32.mrf.mxu0
    %v4350 = vadd.f32 0.0, %v4349
    %v4351 = vpop.f32.mrf.mxu0
    %v4352 = vadd.f32 0.0, %v4351
    %4353 = vdwg.mxu0
    %v4354 = vadd.f32 %v4144, %v4279
    %v4355 = vadd.f32 %v4145, %v4281
    %v4356 = vadd.f32 %v4146, %v4350
    %v4357 = vadd.f32 %v4147, %v4352
    %v4358 = vld [vmem:[#allocation2 + $0x20] sm:$0xff]
    %v4359 = vld [vmem:[#allocation2 + $0x28] sm:$0xff]
    %v4360 = vld [vmem:[#allocation2 + $0x30] sm:$0xff]
    %v4361 = vld [vmem:[#allocation2 + $0x38] sm:$0xff]
    %v4362 = vld [vmem:[#allocation9] sm:$0xff]
    %v4363 = vld [vmem:[#allocation9 + $0x8] sm:$0xff]
    %v4364 = vld [vmem:[#allocation9 + $0x10] sm:$0xff]
    %v4365 = vld [vmem:[#allocation9 + $0x18] sm:$0xff]
    %v4366 = vld [vmem:[#allocation9 + $0x20] sm:$0xff]
    %v4367 = vld [vmem:[#allocation9 + $0x28] sm:$0xff]
    %v4368 = vld [vmem:[#allocation9 + $0x30] sm:$0xff]
    %v4369 = vld [vmem:[#allocation9 + $0x38] sm:$0xff]
    %v4370 = vld [vmem:[#allocation9 + $0x40] sm:$0xff]
    %v4371 = vld [vmem:[#allocation9 + $0x48] sm:$0xff]
    %v4372 = vld [vmem:[#allocation9 + $0x50] sm:$0xff]
    %v4373 = vld [vmem:[#allocation9 + $0x58] sm:$0xff]
    %v4374 = vld [vmem:[#allocation9 + $0x60] sm:$0xff]
    %v4375 = vld [vmem:[#allocation9 + $0x68] sm:$0xff]
    %v4376 = vld [vmem:[#allocation9 + $0x70] sm:$0xff]
    %v4377 = vld [vmem:[#allocation9 + $0x78] sm:$0xff]
    %v4378 = vld [vmem:[#allocation9 + $0x80] sm:$0xff]
    %v4379 = vld [vmem:[#allocation9 + $0x88] sm:$0xff]
    %v4380 = vld [vmem:[#allocation9 + $0x90] sm:$0xff]
    %v4381 = vld [vmem:[#allocation9 + $0x98] sm:$0xff]
    %v4382 = vld [vmem:[#allocation9 + $0xa0] sm:$0xff]
    %v4383 = vld [vmem:[#allocation9 + $0xa8] sm:$0xff]
    %v4384 = vld [vmem:[#allocation9 + $0xb0] sm:$0xff]
    %v4385 = vld [vmem:[#allocation9 + $0xb8] sm:$0xff]
    %v4386 = vld [vmem:[#allocation9 + $0xc0] sm:$0xff]
    %v4387 = vld [vmem:[#allocation9 + $0xc8] sm:$0xff]
    %v4388 = vld [vmem:[#allocation9 + $0xd0] sm:$0xff]
    %v4389 = vld [vmem:[#allocation9 + $0xd8] sm:$0xff]
    %v4390 = vld [vmem:[#allocation9 + $0xe0] sm:$0xff]
    %v4391 = vld [vmem:[#allocation9 + $0xe8] sm:$0xff]
    %v4392 = vld [vmem:[#allocation9 + $0xf0] sm:$0xff]
    %v4393 = vld [vmem:[#allocation9 + $0xf8] sm:$0xff]
    %v4394 = vld [vmem:[#allocation9 + $0x100] sm:$0xff]
    %v4395 = vld [vmem:[#allocation9 + $0x108] sm:$0xff]
    %v4396 = vld [vmem:[#allocation9 + $0x110] sm:$0xff]
    %v4397 = vld [vmem:[#allocation9 + $0x118] sm:$0xff]
    %v4398 = vld [vmem:[#allocation9 + $0x120] sm:$0xff]
    %v4399 = vld [vmem:[#allocation9 + $0x128] sm:$0xff]
    %v4400 = vld [vmem:[#allocation9 + $0x130] sm:$0xff]
    %v4401 = vld [vmem:[#allocation9 + $0x138] sm:$0xff]
    %v4402 = vld [vmem:[#allocation9 + $0x140] sm:$0xff]
    %v4403 = vld [vmem:[#allocation9 + $0x148] sm:$0xff]
    %v4404 = vld [vmem:[#allocation9 + $0x150] sm:$0xff]
    %v4405 = vld [vmem:[#allocation9 + $0x158] sm:$0xff]
    %v4406 = vld [vmem:[#allocation9 + $0x160] sm:$0xff]
    %v4407 = vld [vmem:[#allocation9 + $0x168] sm:$0xff]
    %v4408 = vld [vmem:[#allocation9 + $0x170] sm:$0xff]
    %v4409 = vld [vmem:[#allocation9 + $0x178] sm:$0xff]
    %v4410 = vld [vmem:[#allocation9 + $0x180] sm:$0xff]
    %v4411 = vld [vmem:[#allocation9 + $0x188] sm:$0xff]
    %v4412 = vld [vmem:[#allocation9 + $0x190] sm:$0xff]
    %v4413 = vld [vmem:[#allocation9 + $0x198] sm:$0xff]
    %v4414 = vld [vmem:[#allocation9 + $0x1a0] sm:$0xff]
    %v4415 = vld [vmem:[#allocation9 + $0x1a8] sm:$0xff]
    %v4416 = vld [vmem:[#allocation9 + $0x1b0] sm:$0xff]
    %v4417 = vld [vmem:[#allocation9 + $0x1b8] sm:$0xff]
    %v4418 = vld [vmem:[#allocation9 + $0x1c0] sm:$0xff]
    %v4419 = vld [vmem:[#allocation9 + $0x1c8] sm:$0xff]
    %v4420 = vld [vmem:[#allocation9 + $0x1d0] sm:$0xff]
    %v4421 = vld [vmem:[#allocation9 + $0x1d8] sm:$0xff]
    %v4422 = vld [vmem:[#allocation9 + $0x1e0] sm:$0xff]
    %v4423 = vld [vmem:[#allocation9 + $0x1e8] sm:$0xff]
    %v4424 = vld [vmem:[#allocation9 + $0x1f0] sm:$0xff]
    %v4425 = vld [vmem:[#allocation9 + $0x1f8] sm:$0xff]
    %4426 = vmatprep.subr.mxu0 %v4423
    %4427 = vmatpush1.msra.mxu0 %v4422
    %4428 = vmatprep.subr.mxu0 %v4419
    %4429 = vmatpush1.msra.mxu0 %v4418
    %4430 = vmatprep.subr.mxu0 %v4415
    %4431 = vmatpush1.msra.mxu0 %v4414
    %4432 = vmatprep.subr.mxu0 %v4411
    %4433 = vmatpush1.msra.mxu0 %v4410
    %4434 = vmatprep.subr.mxu0 %v4407
    %4435 = vmatpush1.msra.mxu0 %v4406
    %4436 = vmatprep.subr.mxu0 %v4403
    %4437 = vmatpush1.msra.mxu0 %v4402
    %4438 = vmatprep.subr.mxu0 %v4399
    %4439 = vmatpush1.msra.mxu0 %v4398
    %4440 = vmatprep.subr.mxu0 %v4395
    %4441 = vmatpush1.msra.mxu0 %v4394
    %4442 = vmatprep.subr.mxu0 %v4391
    %4443 = vmatpush1.msra.mxu0 %v4390
    %4444 = vmatprep.subr.mxu0 %v4387
    %4445 = vmatpush1.msra.mxu0 %v4386
    %4446 = vmatprep.subr.mxu0 %v4383
    %4447 = vmatpush1.msra.mxu0 %v4382
    %4448 = vmatprep.subr.mxu0 %v4379
    %4449 = vmatpush1.msra.mxu0 %v4378
    %4450 = vmatprep.subr.mxu0 %v4375
    %4451 = vmatpush1.msra.mxu0 %v4374
    %4452 = vmatprep.subr.mxu0 %v4371
    %4453 = vmatpush1.msra.mxu0 %v4370
    %4454 = vmatprep.subr.mxu0 %v4367
    %4455 = vmatpush1.msra.mxu0 %v4366
    %4456 = vmatprep.subr.mxu0 %v4363
    %4457 = vmatpush1.msra.mxu0 %v4362
    %4458 = vmatprep.subr.mxu0 0.0
    %4459 = vmatpush2.msra.mxu0 0.0
    %4460 = vmatprep.subr.mxu0 0.0
    %4461 = vmatpush2.msra.mxu0 0.0
    %4462 = vmatprep.subr.mxu0 0.0
    %4463 = vmatpush2.msra.mxu0 0.0
    %4464 = vmatprep.subr.mxu0 0.0
    %4465 = vmatpush2.msra.mxu0 0.0
    %4466 = vmatprep.subr.mxu0 0.0
    %4467 = vmatpush2.msra.mxu0 0.0
    %4468 = vmatprep.subr.mxu0 0.0
    %4469 = vmatpush2.msra.mxu0 0.0
    %4470 = vmatprep.subr.mxu0 0.0
    %4471 = vmatpush2.msra.mxu0 0.0
    %4472 = vmatprep.subr.mxu0 0.0
    %4473 = vmatpush2.msra.mxu0 0.0
    %4474 = vmatprep.subr.mxu0 0.0
    %4475 = vmatpush2.msra.mxu0 0.0
    %4476 = vmatprep.subr.mxu0 0.0
    %4477 = vmatpush2.msra.mxu0 0.0
    %4478 = vmatprep.subr.mxu0 0.0
    %4479 = vmatpush2.msra.mxu0 0.0
    %4480 = vmatprep.subr.mxu0 0.0
    %4481 = vmatpush2.msra.mxu0 0.0
    %4482 = vmatprep.subr.mxu0 0.0
    %4483 = vmatpush2.msra.mxu0 0.0
    %4484 = vmatprep.subr.mxu0 0.0
    %4485 = vmatpush2.msra.mxu0 0.0
    %4486 = vmatprep.subr.mxu0 0.0
    %4487 = vmatpush2.msra.mxu0 0.0
    %4488 = vmatprep.subr.mxu0 0.0
    %4489 = vmatpush2.msra.mxu0 0.0
    %4490 = vmatprep.mubr.f32.mxu0 0.0
    %4491 = vmatmul.mubr.f32.gmra.mxu0 %v4141
    %v4492 = vpop.f32.mrf.mxu0
    %v4493 = vadd.f32 0.0, %v4492
    %v4494 = vpop.f32.mrf.mxu0
    %v4495 = vadd.f32 0.0, %v4494
    %4496 = vdwg.mxu0
    %4497 = vmatprep.subr.mxu0 %v4425
    %4498 = vmatpush1.msra.mxu0 %v4424
    %4499 = vmatprep.subr.mxu0 %v4421
    %4500 = vmatpush1.msra.mxu0 %v4420
    %4501 = vmatprep.subr.mxu0 %v4417
    %4502 = vmatpush1.msra.mxu0 %v4416
    %4503 = vmatprep.subr.mxu0 %v4413
    %4504 = vmatpush1.msra.mxu0 %v4412
    %4505 = vmatprep.subr.mxu0 %v4409
    %4506 = vmatpush1.msra.mxu0 %v4408
    %4507 = vmatprep.subr.mxu0 %v4405
    %4508 = vmatpush1.msra.mxu0 %v4404
    %4509 = vmatprep.subr.mxu0 %v4401
    %4510 = vmatpush1.msra.mxu0 %v4400
    %4511 = vmatprep.subr.mxu0 %v4397
    %4512 = vmatpush1.msra.mxu0 %v4396
    %4513 = vmatprep.subr.mxu0 %v4393
    %4514 = vmatpush1.msra.mxu0 %v4392
    %4515 = vmatprep.subr.mxu0 %v4389
    %4516 = vmatpush1.msra.mxu0 %v4388
    %4517 = vmatprep.subr.mxu0 %v4385
    %4518 = vmatpush1.msra.mxu0 %v4384
    %4519 = vmatprep.subr.mxu0 %v4381
    %4520 = vmatpush1.msra.mxu0 %v4380
    %4521 = vmatprep.subr.mxu0 %v4377
    %4522 = vmatpush1.msra.mxu0 %v4376
    %4523 = vmatprep.subr.mxu0 %v4373
    %4524 = vmatpush1.msra.mxu0 %v4372
    %4525 = vmatprep.subr.mxu0 %v4369
    %4526 = vmatpush1.msra.mxu0 %v4368
    %4527 = vmatprep.subr.mxu0 %v4365
    %4528 = vmatpush1.msra.mxu0 %v4364
    %4529 = vmatprep.subr.mxu0 0.0
    %4530 = vmatpush2.msra.mxu0 0.0
    %4531 = vmatprep.subr.mxu0 0.0
    %4532 = vmatpush2.msra.mxu0 0.0
    %4533 = vmatprep.subr.mxu0 0.0
    %4534 = vmatpush2.msra.mxu0 0.0
    %4535 = vmatprep.subr.mxu0 0.0
    %4536 = vmatpush2.msra.mxu0 0.0
    %4537 = vmatprep.subr.mxu0 0.0
    %4538 = vmatpush2.msra.mxu0 0.0
    %4539 = vmatprep.subr.mxu0 0.0
    %4540 = vmatpush2.msra.mxu0 0.0
    %4541 = vmatprep.subr.mxu0 0.0
    %4542 = vmatpush2.msra.mxu0 0.0
    %4543 = vmatprep.subr.mxu0 0.0
    %4544 = vmatpush2.msra.mxu0 0.0
    %4545 = vmatprep.subr.mxu0 0.0
    %4546 = vmatpush2.msra.mxu0 0.0
    %4547 = vmatprep.subr.mxu0 0.0
    %4548 = vmatpush2.msra.mxu0 0.0
    %4549 = vmatprep.subr.mxu0 0.0
    %4550 = vmatpush2.msra.mxu0 0.0
    %4551 = vmatprep.subr.mxu0 0.0
    %4552 = vmatpush2.msra.mxu0 0.0
    %4553 = vmatprep.subr.mxu0 0.0
    %4554 = vmatpush2.msra.mxu0 0.0
    %4555 = vmatprep.subr.mxu0 0.0
    %4556 = vmatpush2.msra.mxu0 0.0
    %4557 = vmatprep.subr.mxu0 0.0
    %4558 = vmatpush2.msra.mxu0 0.0
    %4559 = vmatprep.subr.mxu0 0.0
    %4560 = vmatpush2.msra.mxu0 0.0
    %4561 = vmatprep.mubr.f32.mxu0 0.0
    %4562 = vmatmul.mubr.f32.gmra.mxu0 %v4141
    %v4563 = vpop.f32.mrf.mxu0
    %v4564 = vadd.f32 0.0, %v4563
    %v4565 = vpop.f32.mrf.mxu0
    %v4566 = vadd.f32 0.0, %v4565
    %4567 = vdwg.mxu0
    %v4568 = vadd.f32 %v4358, %v4493
    %v4569 = vadd.f32 %v4359, %v4495
    %v4570 = vadd.f32 %v4360, %v4564
    %v4571 = vadd.f32 %v4361, %v4566
    %v4572 = vxor.u32 %v4354, 2147483648
    %v4573 = vmul.f32 %v4572, 1.442695
    %v4574 = vpow.pop %v4573
    %v4575 = vadd.f32 %v4574, 1.0
    %v4576 = vrcp.pop %v4575
    %v4577 = vmul.f32 1.0, %v4576
    %v4578 = vxor.u32 %v4355, 2147483648
    %v4579 = vmul.f32 %v4578, 1.442695
    %v4580 = vpow.pop %v4579
    %v4581 = vadd.f32 %v4580, 1.0
    %v4582 = vrcp.pop %v4581
    %v4583 = vmul.f32 1.0, %v4582
    %v4584 = vtanh.pop %v4356
    %v4585 = vxor.u32 %v4357, 2147483648
    %v4586 = vmul.f32 %v4585, 1.442695
    %v4587 = vpow.pop %v4586
    %v4588 = vadd.f32 %v4587, 1.0
    %v4589 = vrcp.pop %v4588
    %v4590 = vmul.f32 1.0, %v4589
    %v4591 = vmul.f32 %v4583, %v4115
    %v4592 = vmul.f32 %v4577, %v4584
    %v4593 = vadd.f32 %v4591, %v4592
    %v4594 = vtanh.pop %v4593
    %v4595 = vmul.f32 %v4590, %v4594
    %v4596 = vxor.u32 %v4568, 2147483648
    %v4597 = vmul.f32 %v4596, 1.442695
    %v4598 = vpow.pop %v4597
    %v4599 = vadd.f32 %v4598, 1.0
    %v4600 = vrcp.pop %v4599
    %v4601 = vmul.f32 1.0, %v4600
    %v4602 = vxor.u32 %v4569, 2147483648
    %v4603 = vmul.f32 %v4602, 1.442695
    %v4604 = vpow.pop %v4603
    %v4605 = vadd.f32 %v4604, 1.0
    %v4606 = vrcp.pop %v4605
    %v4607 = vmul.f32 1.0, %v4606
    %v4608 = vtanh.pop %v4570
    %v4609 = vxor.u32 %v4571, 2147483648
    %v4610 = vmul.f32 %v4609, 1.442695
    %v4611 = vpow.pop %v4610
    %v4612 = vadd.f32 %v4611, 1.0
    %v4613 = vrcp.pop %v4612
    %v4614 = vmul.f32 1.0, %v4613
    %v4615 = vmul.f32 %v4607, %v4139
    %v4616 = vmul.f32 %v4601, %v4608
    %v4617 = vadd.f32 %v4615, %v4616
    %v4618 = vtanh.pop %v4617
    %v4619 = vmul.f32 %v4614, %v4618
    %4620 = vst [vmem:[%s1262] sm:$0xff] %v4595
    %4621 = vst [vmem:[#allocation12 + $0x8] sm:$0xff] %v4619
    %4622 = vst [vmem:[#allocation13] sm:$0xff] %v4619
    %4623 = vst [vmem:[#allocation13 + $0x8] sm:$0xff] %v4595
    // Predicated region
    $region42: #{tpu_custom_call.1} parent=1 // pred_check
      _
    $region43: #{tpu_custom_call.1} parent=1 // pred_check_branch
      %4625 = sbr.rel (0) target = $region45
    $region44: #{tpu_custom_call.1} parent=1 // pred_region
      %s4627 = ssub.s32 2048, 2048
      %4628 = vsyncadd [#allocation5], %s4627
      %s4629 = sshll.u32 [#allocation12], 4
      %s4630 = int_to_ptr.vmem [resolvable:$true] %s4629
      %4635 = dma.vmem_to_hbm [thread:$0]  %s4630, 2048, %s5, [#allocation5], 256, 256, 16
    $region45: #{tpu_custom_call.1} parent=1 // pred_fallthru
      _
    // Predicated region
    $region46: #{tpu_custom_call.1} parent=1 // pred_check
      _
    $region47: #{tpu_custom_call.1} parent=1 // pred_check_branch
      %4637 = sbr.rel (0) target = $region49
    $region48: #{tpu_custom_call.1} parent=1 // pred_region
      %s4639 = ssub.s32 256, 256
      %4640 = vsyncadd [#allocation14], %s4639
      %s4642 = sshll.u32 [#allocation13], 4
      %s4643 = int_to_ptr.vmem [resolvable:$true] %s4642
      %4645 = dma.vmem_to_hbm [thread:$0]  %s4643, 256, %s6, [#allocation14]
    $region49: #{tpu_custom_call.1} parent=1 // pred_fallthru
      _
    // Predicated region
    $region50: #{tpu_custom_call.1} parent=1 // pred_check
      _
    $region51: #{tpu_custom_call.1} parent=1 // pred_check_branch
      %4647 = sbr.rel (0) target = $region53
    $region52: #{tpu_custom_call.1} parent=1 // pred_region
      %4648 = dma.done [#allocation5], 2048
    $region53: #{tpu_custom_call.1} parent=1 // pred_fallthru
      _
    // Predicated region
    $region54: #{tpu_custom_call.1} parent=1 // pred_check
      _
    $region55: #{tpu_custom_call.1} parent=1 // pred_check_branch
      %4650 = sbr.rel (0) target = $region57
    $region56: #{tpu_custom_call.1} parent=1 // pred_region
      %4651 = dma.done [#allocation14], 256
    $region57: #{tpu_custom_call.1} parent=1 // pred_fallthru
      _
    %4652 = vsyncpa [#allocation4], 1
    %4653 = vsyncpa [#allocation7], 1
    %4654 = vsyncpa [#allocation10], 1
    %4655 = vsyncpa [#allocation5], 1
    %4656 = vsyncpa [#allocation14], 1

</llo_original>
